<compile_context>
chip_gen: v7x
topology: tpu7x:2x2x1
jax: 0.10.0
libtpu: 0.0.40
codegen_flags: <defaults>
</compile_context>

<pallas_src>
import jax
import jax.numpy as jnp
from jax.experimental import pallas as pl
from jax.experimental.pallas import tpu as pltpu

INPUT_CHANNELS = 4800            # hard-coded in the PyTorch module
CONV_CHANNELS = (512, 128, 64)
KERNEL_SIZE = 5
LSTM_HIDDEN = 8
LSTM_LAYERS = 2
LINEAR_OUT = 6
BN_EPS = 1e-5

# K tiling for the conv0 mat-vec.  2432 = 19*128 (lane-aligned blocks of the
# activation row, sublane-aligned weight rows); two tiles cover the padded
# 4864-row reduction.  Weight tile = 2432*512*4 B ≈ 5 MiB per buffer,
# double-buffered ≈ 10 MiB: fits every generation's default scoped VMEM.
K_TILE = 2432
K_PAD = 2 * K_TILE               # 4864 >= 4800, zero-padded tail contributes 0


# ---------------------------------------------------------------------------
# Single fused kernel:
#   grid axis k tiles the conv0 reduction (activation row @ center-tap W0).
#   The final k step runs the whole tail: BN+ReLU, conv1, conv2 (center taps),
#   2-layer zero-state LSTM, Linear + ReLU, and writes the (1, 6) output.
# ---------------------------------------------------------------------------
def _network_kernel(x_ref, w0_ref, b0_ref, g0_ref, be0_ref,
                    w1_ref, b1_ref, g1_ref, be1_ref,
                    w2_ref, b2_ref, g2_ref, be2_ref,
                    wih0_ref, bl0_ref, wih1_ref, bl1_ref,
                    wlin_ref, blin_ref,
                    o_ref, acc_ref):
    k = pl.program_id(0)

    @pl.when(k == 0)
    def _():
        acc_ref[...] = jnp.zeros_like(acc_ref)

    # conv0 as a K-tiled mat-vec: (1, K_TILE) @ (K_TILE, 512)
    acc_ref[...] += jnp.dot(x_ref[...], w0_ref[...],
                            preferred_element_type=jnp.float32)

    @pl.when(k == pl.num_programs(0) - 1)
    def _():
        H = LSTM_HIDDEN

        def bn_relu(y, gamma, beta):
            # BatchNorm1d(1), training mode: the PyTorch tensor (C_out, L=1)
            # is a batch of C_out samples with one feature, so the batch
            # statistics are taken over the channel (lane) axis here.
            mean = jnp.mean(y, axis=1, keepdims=True)
            var = jnp.mean((y - mean) ** 2, axis=1, keepdims=True)  # biased
            y = (y - mean) * jax.lax.rsqrt(var + BN_EPS)
            return jnp.maximum(y * gamma + beta, 0.0)

        # conv0 epilogue
        y0 = bn_relu(acc_ref[...] + b0_ref[...], g0_ref[...], be0_ref[...])
        # conv1 / conv2 (center taps only; all other taps hit zero padding)
        y1 = bn_relu(jnp.dot(y0, w1_ref[...],
                             preferred_element_type=jnp.float32) + b1_ref[...],
                     g1_ref[...], be1_ref[...])
        y2 = bn_relu(jnp.dot(y1, w2_ref[...],
                             preferred_element_type=jnp.float32) + b2_ref[...],
                     g2_ref[...], be2_ref[...])

        # 2-layer LSTM, single time step, zero initial state:
        # h_prev @ W_hh == 0 and f * c_prev == 0, so they are dropped.
        def lstm_cell_zero_state(inp, wih_t, b):
            gates = jnp.dot(inp, wih_t,
                            preferred_element_type=jnp.float32) + b
            i = jax.nn.sigmoid(gates[:, 0 * H:1 * H])
            g = jnp.tanh(gates[:, 2 * H:3 * H])
            o = jax.nn.sigmoid(gates[:, 3 * H:4 * H])
            c = i * g
            return o * jnp.tanh(c)

        h1 = lstm_cell_zero_state(y2, wih0_ref[...], bl0_ref[...])
        h2 = lstm_cell_zero_state(h1, wih1_ref[...], bl1_ref[...])

        y = jnp.dot(h2, wlin_ref[...],
                    preferred_element_type=jnp.float32) + blin_ref[...]
        o_ref[...] = jnp.maximum(y, 0.0).astype(o_ref.dtype)


def _const_spec(shape):
    """Full-extent block, resident in VMEM across the whole grid."""
    return pl.BlockSpec(shape, lambda k: (0,) * len(shape))


def network_forward(x, kp):
    """x: (INPUT_CHANNELS, 1) -- PyTorch's unbatched Conv1d layout (C_in, L).

    `kp` are the kernel-layout params produced once by `prepare_params`.
    Returns the (LINEAR_OUT,) output of the module.
    """
    assert x.shape == (INPUT_CHANNELS, 1), x.shape
    c0, c1, c2 = CONV_CHANNELS
    h4 = 4 * LSTM_HIDDEN

    # (C_in, 1) -> (1, C_in), zero-padded to the tiled reduction length.
    x_row = jnp.pad(x.T, ((0, 0), (0, K_PAD - INPUT_CHANNELS)))

    out = pl.pallas_call(
        _network_kernel,
        out_shape=jax.ShapeDtypeStruct((1, LINEAR_OUT), jnp.float32),
        grid_spec=pltpu.PrefetchScalarGridSpec(
            num_scalar_prefetch=0,
            grid=(K_PAD // K_TILE,),
            in_specs=[
                pl.BlockSpec((1, K_TILE), lambda k: (0, k)),        # x row
                pl.BlockSpec((K_TILE, c0), lambda k: (k, 0)),       # W0 tile
                _const_spec((1, c0)),                               # b0
                _const_spec((1, 1)), _const_spec((1, 1)),           # bn0 γ, β
                _const_spec((c0, c1)),                              # W1 center
                _const_spec((1, c1)),                               # b1
                _const_spec((1, 1)), _const_spec((1, 1)),           # bn1 γ, β
                _const_spec((c1, c2)),                              # W2 center
                _const_spec((1, c2)),                               # b2
                _const_spec((1, 1)), _const_spec((1, 1)),           # bn2 γ, β
                _const_spec((c2, h4)),                              # W_ih_l0^T
                _const_spec((1, h4)),                               # b_l0
                _const_spec((LSTM_HIDDEN, h4)),                     # W_ih_l1^T
                _const_spec((1, h4)),                               # b_l1
                _const_spec((LSTM_HIDDEN, LINEAR_OUT)),             # W_lin^T
                _const_spec((1, LINEAR_OUT)),                       # b_lin
            ],
            out_specs=pl.BlockSpec((1, LINEAR_OUT), lambda k: (0, 0)),
            scratch_shapes=[pltpu.VMEM((1, c0), jnp.float32)],
        ),
        compiler_params=pltpu.CompilerParams(
            dimension_semantics=("arbitrary",),
            vmem_limit_bytes=32 * 1024 * 1024,
        ),
    )(x_row,
      kp["w0"], kp["b0"], kp["g0"], kp["be0"],
      kp["w1"], kp["b1"], kp["g1"], kp["be1"],
      kp["w2"], kp["b2"], kp["g2"], kp["be2"],
      kp["wih0"], kp["bl0"], kp["wih1"], kp["bl1"],
      kp["wlin"], kp["blin"])

    # nn.Flatten + transpose(0,1) + LSTM(seq=1) + Linear + ReLU; x2[0] -> (6,)
    return out[0]


# ---------------------------------------------------------------------------
# Parameter handling.
# ---------------------------------------------------------------------------
def init_params(key):
    """PyTorch-layout parameters (same layouts as the nn.Module)."""
    ks = jax.random.split(key, 16)
    p = {}
    idx = 0
    c_prev = INPUT_CHANNELS
    for i, c_out in enumerate(CONV_CHANNELS):
        fan_in = float(c_prev * KERNEL_SIZE)
        p[f"conv{i}_w"] = (jax.random.normal(
            ks[idx], (c_out, c_prev, KERNEL_SIZE), jnp.float32)
            / jnp.sqrt(fan_in)); idx += 1
        p[f"conv{i}_b"] = jax.random.normal(
            ks[idx], (c_out,), jnp.float32) * 0.1; idx += 1
        p[f"bn{i}_gamma"] = jnp.ones((1,), jnp.float32)
        p[f"bn{i}_beta"] = jnp.zeros((1,), jnp.float32)
        c_prev = c_out
    in_sizes = (CONV_CHANNELS[-1], LSTM_HIDDEN)
    for l in range(LSTM_LAYERS):
        p[f"w_ih_l{l}"] = jax.random.normal(
            ks[idx], (4 * LSTM_HIDDEN, in_sizes[l]), jnp.float32) * 0.1; idx += 1
        p[f"w_hh_l{l}"] = jax.random.normal(
            ks[idx], (4 * LSTM_HIDDEN, LSTM_HIDDEN), jnp.float32) * 0.1; idx += 1
        p[f"b_ih_l{l}"] = jax.random.normal(
            ks[idx], (4 * LSTM_HIDDEN,), jnp.float32) * 0.1; idx += 1
        p[f"b_hh_l{l}"] = jax.random.normal(
            ks[idx], (4 * LSTM_HIDDEN,), jnp.float32) * 0.1; idx += 1
    p["w_lin"] = jax.random.normal(
        ks[idx], (LINEAR_OUT, LSTM_HIDDEN), jnp.float32) * 0.1; idx += 1
    p["b_lin"] = jax.random.normal(
        ks[idx], (LINEAR_OUT,), jnp.float32) * 0.1; idx += 1
    return p


def prepare_params(p):
    """One-time kernel layout (hoisted out of the per-forward path).

    With L == 1 and 'same' padding only the center tap of each Conv1d
    multiplies real data, so each conv weight collapses to W[:, :, 2].T.
    The LSTM recurrent weights are dropped (zero initial state) and the
    two LSTM biases are folded together.
    """
    c = KERNEL_SIZE // 2
    kp = {
        "w0": jnp.pad(p["conv0_w"][:, :, c].T,
                      ((0, K_PAD - INPUT_CHANNELS), (0, 0))),   # (K_PAD, 512)
        "b0": p["conv0_b"].reshape(1, -1),
        "g0": p["bn0_gamma"].reshape(1, 1),
        "be0": p["bn0_beta"].reshape(1, 1),
        "w1": p["conv1_w"][:, :, c].T,                          # (512, 128)
        "b1": p["conv1_b"].reshape(1, -1),
        "g1": p["bn1_gamma"].reshape(1, 1),
        "be1": p["bn1_beta"].reshape(1, 1),
        "w2": p["conv2_w"][:, :, c].T,                          # (128, 64)
        "b2": p["conv2_b"].reshape(1, -1),
        "g2": p["bn2_gamma"].reshape(1, 1),
        "be2": p["bn2_beta"].reshape(1, 1),
        "wih0": p["w_ih_l0"].T,                                 # (64, 32)
        "bl0": (p["b_ih_l0"] + p["b_hh_l0"]).reshape(1, -1),
        "wih1": p["w_ih_l1"].T,                                 # (8, 32)
        "bl1": (p["b_ih_l1"] + p["b_hh_l1"]).reshape(1, -1),
        "wlin": p["w_lin"].T,                                   # (8, 6)
        "blin": p["b_lin"].reshape(1, -1),
    }
    return jax.tree_util.tree_map(lambda a: a.astype(jnp.float32), kp)


# ---------------------------------------------------------------------------
# Plain-JAX reference (full 5-tap conv, train-mode BN, full zero-state LSTM)
# used only to validate the fused/optimized kernel.
# ---------------------------------------------------------------------------
def _reference_forward(x, p):
    hi = jax.lax.Precision.HIGHEST

    def conv_same(x_cl, w, b):                      # x_cl: (C_in, 1)
        pad = (w.shape[2] - 1) // 2
        xp = jnp.pad(x_cl, ((0, 0), (pad, pad)))    # (C_in, 1 + 2*pad)
        out = jnp.einsum("oik,ik->o", w, xp, precision=hi)
        return (out + b)[:, None]                   # (C_out, 1)

    def bn_relu(y_cl, gamma, beta):                 # stats over dim 0 (N=C_out)
        m = jnp.mean(y_cl)
        v = jnp.mean((y_cl - m) ** 2)
        y = (y_cl - m) * jax.lax.rsqrt(v + BN_EPS) * gamma[0] + beta[0]
        return jnp.maximum(y, 0.0)

    h = x
    for i in range(len(CONV_CHANNELS)):
        h = conv_same(h, p[f"conv{i}_w"], p[f"conv{i}_b"])
        h = bn_relu(h, p[f"bn{i}_gamma"], p[f"bn{i}_beta"])
    xt = h[:, 0]                                    # Flatten + transpose -> (64,)

    def lstm_cell(inp, wih, whh, bih, bhh, hprev, cprev):
        gates = (jnp.dot(wih, inp, precision=hi)
                 + jnp.dot(whh, hprev, precision=hi) + bih + bhh)
        i, f, g, o = jnp.split(gates, 4)
        i, f = jax.nn.sigmoid(i), jax.nn.sigmoid(f)
        g, o = jnp.tanh(g), jax.nn.sigmoid(o)
        c = f * cprev + i * g
        return o * jnp.tanh(c), c

    z = jnp.zeros((LSTM_HIDDEN,), jnp.float32)
    h1, _ = lstm_cell(xt, p["w_ih_l0"], p["w_hh_l0"],
                      p["b_ih_l0"], p["b_hh_l0"], z, z)
    h2, _ = lstm_cell(h1, p["w_ih_l1"], p["w_hh_l1"],
                      p["b_ih_l1"], p["b_hh_l1"], z, z)
    y = jnp.dot(p["w_lin"], h2, precision=hi) + p["b_lin"]
    return jnp.maximum(y, 0.0)


if __name__ == "__main__":
    key = jax.random.PRNGKey(0)
    k_in, k_par = jax.random.split(key)
    L = 1  # BatchNorm1d(1) in the module forces sequence length 1
    x = jax.random.normal(k_in, (INPUT_CHANNELS, L), dtype=jnp.float32)

    params = init_params(k_par)
    kparams = prepare_params(params)          # one-time layout, outside forward

    fwd = jax.jit(network_forward)
    out = jax.block_until_ready(fwd(x, kparams))

    assert out.shape == (LINEAR_OUT,), out.shape
    assert out.dtype == jnp.float32
    assert bool(jnp.all(jnp.isfinite(out)))
    assert bool(jnp.all(out >= 0.0))          # final ReLU

    ref = _reference_forward(x, params)
    assert bool(jnp.allclose(out, ref, rtol=1e-2, atol=1e-2)), (out, ref)

    print("KERNEL_OK")
</pallas_src>

<mosaic_0001>
module attributes {stable_mosaic.version = 11 : i64} {
  func.func @_network_kernel(%arg0: i32, %arg1: memref<1x2432xf32, #tpu.memory_space<vmem>>, %arg2: memref<2432x512xf32, #tpu.memory_space<vmem>>, %arg3: memref<1x512xf32, #tpu.memory_space<vmem>>, %arg4: memref<1x1xf32, #tpu.memory_space<vmem>>, %arg5: memref<1x1xf32, #tpu.memory_space<vmem>>, %arg6: memref<512x128xf32, #tpu.memory_space<vmem>>, %arg7: memref<1x128xf32, #tpu.memory_space<vmem>>, %arg8: memref<1x1xf32, #tpu.memory_space<vmem>>, %arg9: memref<1x1xf32, #tpu.memory_space<vmem>>, %arg10: memref<128x64xf32, #tpu.memory_space<vmem>>, %arg11: memref<1x64xf32, #tpu.memory_space<vmem>>, %arg12: memref<1x1xf32, #tpu.memory_space<vmem>>, %arg13: memref<1x1xf32, #tpu.memory_space<vmem>>, %arg14: memref<64x32xf32, #tpu.memory_space<vmem>>, %arg15: memref<1x32xf32, #tpu.memory_space<vmem>>, %arg16: memref<8x32xf32, #tpu.memory_space<vmem>>, %arg17: memref<1x32xf32, #tpu.memory_space<vmem>>, %arg18: memref<8x6xf32, #tpu.memory_space<vmem>>, %arg19: memref<1x6xf32, #tpu.memory_space<vmem>>, %arg20: memref<1x6xf32, #tpu.memory_space<vmem>>, %arg21: memref<1x512xf32, #tpu.memory_space<vmem>>) attributes {dimension_semantics = [#tpu.dimension_semantics<arbitrary>], iteration_bounds = array<i64: 2>, scalar_prefetch = 0 : i64, scratch_operands = 1 : i64, tpu.core_type = #tpu.core_type<tc>, window_params = [{transform_indices = @transform_0, window_bounds = array<i64: 1, 2432>}, {transform_indices = @transform_1, window_bounds = array<i64: 2432, 512>}, {pipeline_mode = #tpu.pipeline_mode<synchronous>, transform_indices = @transform_2, window_bounds = array<i64: 1, 512>}, {pipeline_mode = #tpu.pipeline_mode<synchronous>, transform_indices = @transform_3, window_bounds = array<i64: 1, 1>}, {pipeline_mode = #tpu.pipeline_mode<synchronous>, transform_indices = @transform_4, window_bounds = array<i64: 1, 1>}, {pipeline_mode = #tpu.pipeline_mode<synchronous>, transform_indices = @transform_5, window_bounds = array<i64: 512, 128>}, {pipeline_mode = #tpu.pipeline_mode<synchronous>, transform_indices = @transform_6, window_bounds = array<i64: 1, 128>}, {pipeline_mode = #tpu.pipeline_mode<synchronous>, transform_indices = @transform_7, window_bounds = array<i64: 1, 1>}, {pipeline_mode = #tpu.pipeline_mode<synchronous>, transform_indices = @transform_8, window_bounds = array<i64: 1, 1>}, {pipeline_mode = #tpu.pipeline_mode<synchronous>, transform_indices = @transform_9, window_bounds = array<i64: 128, 64>}, {pipeline_mode = #tpu.pipeline_mode<synchronous>, transform_indices = @transform_10, window_bounds = array<i64: 1, 64>}, {pipeline_mode = #tpu.pipeline_mode<synchronous>, transform_indices = @transform_11, window_bounds = array<i64: 1, 1>}, {pipeline_mode = #tpu.pipeline_mode<synchronous>, transform_indices = @transform_12, window_bounds = array<i64: 1, 1>}, {pipeline_mode = #tpu.pipeline_mode<synchronous>, transform_indices = @transform_13, window_bounds = array<i64: 64, 32>}, {pipeline_mode = #tpu.pipeline_mode<synchronous>, transform_indices = @transform_14, window_bounds = array<i64: 1, 32>}, {pipeline_mode = #tpu.pipeline_mode<synchronous>, transform_indices = @transform_15, window_bounds = array<i64: 8, 32>}, {pipeline_mode = #tpu.pipeline_mode<synchronous>, transform_indices = @transform_16, window_bounds = array<i64: 1, 32>}, {pipeline_mode = #tpu.pipeline_mode<synchronous>, transform_indices = @transform_17, window_bounds = array<i64: 8, 6>}, {pipeline_mode = #tpu.pipeline_mode<synchronous>, transform_indices = @transform_18, window_bounds = array<i64: 1, 6>}, {pipeline_mode = #tpu.pipeline_mode<synchronous>, transform_indices = @transform_19, window_bounds = array<i64: 1, 6>}]} {
    %c0_i32 = arith.constant 0 : i32
    %0 = arith.cmpi eq, %arg0, %c0_i32 : i32
    %1 = arith.extui %0 : i1 to i32
    %c0_i32_0 = arith.constant 0 : i32
    %2 = arith.cmpi ne, %1, %c0_i32_0 : i32
    scf.if %2 {
      %cst_9 = arith.constant 0.000000e+00 : f32
      %12 = vector.broadcast %cst_9 : f32 to vector<1x512xf32>
      %c0_10 = arith.constant 0 : index
      %c0_11 = arith.constant 0 : index
      %13 = vector.load %arg21[%c0_10, %c0_11] : memref<1x512xf32, #tpu.memory_space<vmem>>, vector<1x512xf32>
      tpu.vector_store %arg21[%c0_10, %c0_11], %12 {strides = array<i32>} : memref<1x512xf32, #tpu.memory_space<vmem>>, vector<1x512xf32>,
    } else {
    }
    %c0 = arith.constant 0 : index
    %c0_1 = arith.constant 0 : index
    %3 = vector.load %arg21[%c0, %c0_1] : memref<1x512xf32, #tpu.memory_space<vmem>>, vector<1x512xf32>
    %c0_2 = arith.constant 0 : index
    %c0_3 = arith.constant 0 : index
    %4 = vector.load %arg1[%c0_2, %c0_3] : memref<1x2432xf32, #tpu.memory_space<vmem>>, vector<1x2432xf32>
    %c0_4 = arith.constant 0 : index
    %c0_5 = arith.constant 0 : index
    %5 = vector.load %arg2[%c0_4, %c0_5] : memref<2432x512xf32, #tpu.memory_space<vmem>>, vector<2432x512xf32>
    %cst = arith.constant dense<0.000000e+00> : vector<1x512xf32>
    %6 = tpu.matmul %4, %5, %cst {dimension_numbers = #tpu.dot_dimension_numbers<[1], [0], [0], [1], [0, 0, 1, 1], [], []>} : vector<1x2432xf32>, vector<2432x512xf32>, vector<1x512xf32> -> vector<1x512xf32>
    %7 = arith.addf %3, %6 : vector<1x512xf32>
    %c0_6 = arith.constant 0 : index
    %c0_7 = arith.constant 0 : index
    %8 = vector.load %arg21[%c0_6, %c0_7] : memref<1x512xf32, #tpu.memory_space<vmem>>, vector<1x512xf32>
    tpu.vector_store %arg21[%c0_6, %c0_7], %7 {strides = array<i32>} : memref<1x512xf32, #tpu.memory_space<vmem>>, vector<1x512xf32>,
    %c1_i32 = arith.constant 1 : i32
    %9 = arith.cmpi eq, %arg0, %c1_i32 : i32
    %10 = arith.extui %9 : i1 to i32
    %c0_i32_8 = arith.constant 0 : i32
    %11 = arith.cmpi ne, %10, %c0_i32_8 : i32
    scf.if %11 {
      %c0_9 = arith.constant 0 : index
      %c0_10 = arith.constant 0 : index
      %12 = vector.load %arg21[%c0_9, %c0_10] : memref<1x512xf32, #tpu.memory_space<vmem>>, vector<1x512xf32>
      %c0_11 = arith.constant 0 : index
      %c0_12 = arith.constant 0 : index
      %13 = vector.load %arg3[%c0_11, %c0_12] : memref<1x512xf32, #tpu.memory_space<vmem>>, vector<1x512xf32>
      %14 = arith.addf %12, %13 : vector<1x512xf32>
      %c0_13 = arith.constant 0 : index
      %c0_14 = arith.constant 0 : index
      %15 = vector.load %arg4[%c0_13, %c0_14] : memref<1x1xf32, #tpu.memory_space<vmem>>, vector<1x1xf32>
      %c0_15 = arith.constant 0 : index
      %c0_16 = arith.constant 0 : index
      %16 = vector.load %arg5[%c0_15, %c0_16] : memref<1x1xf32, #tpu.memory_space<vmem>>, vector<1x1xf32>
      %cst_17 = arith.constant dense<0.000000e+00> : vector<1xf32>
      %17 = vector.multi_reduction <add>, %14, %cst_17 [1] : vector<1x512xf32> to vector<1xf32>
      %18 = vector.shape_cast %17 : vector<1xf32> to vector<1x1xf32>
      %cst_18 = arith.constant 5.120000e+02 : f32
      %19 = vector.broadcast %cst_18 : f32 to vector<1x1xf32>
      %20 = arith.divf %18, %19 : vector<1x1xf32>
      %21 = vector.broadcast %20 : vector<1x1xf32> to vector<1x512xf32>
      %22 = arith.subf %14, %21 : vector<1x512xf32>
      %23 = arith.mulf %22, %22 : vector<1x512xf32>
      %cst_19 = arith.constant dense<0.000000e+00> : vector<1xf32>
      %24 = vector.multi_reduction <add>, %23, %cst_19 [1] : vector<1x512xf32> to vector<1xf32>
      %25 = vector.shape_cast %24 : vector<1xf32> to vector<1x1xf32>
      %cst_20 = arith.constant 5.120000e+02 : f32
      %26 = vector.broadcast %cst_20 : f32 to vector<1x1xf32>
      %27 = arith.divf %25, %26 : vector<1x1xf32>
      %28 = vector.broadcast %20 : vector<1x1xf32> to vector<1x512xf32>
      %29 = arith.subf %14, %28 : vector<1x512xf32>
      %cst_21 = arith.constant 9.99999974E-6 : f32
      %30 = vector.broadcast %cst_21 : f32 to vector<1x1xf32>
      %31 = arith.addf %27, %30 : vector<1x1xf32>
      %32 = math.rsqrt %31 : vector<1x1xf32>
      %33 = vector.broadcast %32 : vector<1x1xf32> to vector<1x512xf32>
      %34 = arith.mulf %29, %33 : vector<1x512xf32>
      %35 = vector.broadcast %15 : vector<1x1xf32> to vector<1x512xf32>
      %36 = arith.mulf %34, %35 : vector<1x512xf32>
      %37 = vector.broadcast %16 : vector<1x1xf32> to vector<1x512xf32>
      %38 = arith.addf %36, %37 : vector<1x512xf32>
      %cst_22 = arith.constant 0.000000e+00 : f32
      %39 = vector.broadcast %cst_22 : f32 to vector<1x512xf32>
      %40 = arith.maximumf %38, %39 : vector<1x512xf32>
      %c0_23 = arith.constant 0 : index
      %c0_24 = arith.constant 0 : index
      %41 = vector.load %arg6[%c0_23, %c0_24] : memref<512x128xf32, #tpu.memory_space<vmem>>, vector<512x128xf32>
      %cst_25 = arith.constant dense<0.000000e+00> : vector<1x128xf32>
      %42 = tpu.matmul %40, %41, %cst_25 {dimension_numbers = #tpu.dot_dimension_numbers<[1], [0], [0], [1], [0, 0, 1, 1], [], []>} : vector<1x512xf32>, vector<512x128xf32>, vector<1x128xf32> -> vector<1x128xf32>
      %c0_26 = arith.constant 0 : index
      %c0_27 = arith.constant 0 : index
      %43 = vector.load %arg7[%c0_26, %c0_27] : memref<1x128xf32, #tpu.memory_space<vmem>>, vector<1x128xf32>
      %44 = arith.addf %42, %43 : vector<1x128xf32>
      %c0_28 = arith.constant 0 : index
      %c0_29 = arith.constant 0 : index
      %45 = vector.load %arg8[%c0_28, %c0_29] : memref<1x1xf32, #tpu.memory_space<vmem>>, vector<1x1xf32>
      %c0_30 = arith.constant 0 : index
      %c0_31 = arith.constant 0 : index
      %46 = vector.load %arg9[%c0_30, %c0_31] : memref<1x1xf32, #tpu.memory_space<vmem>>, vector<1x1xf32>
      %cst_32 = arith.constant dense<0.000000e+00> : vector<1xf32>
      %47 = vector.multi_reduction <add>, %44, %cst_32 [1] : vector<1x128xf32> to vector<1xf32>
      %48 = vector.shape_cast %47 : vector<1xf32> to vector<1x1xf32>
      %cst_33 = arith.constant 1.280000e+02 : f32
      %49 = vector.broadcast %cst_33 : f32 to vector<1x1xf32>
      %50 = arith.divf %48, %49 : vector<1x1xf32>
      %51 = vector.broadcast %50 : vector<1x1xf32> to vector<1x128xf32>
      %52 = arith.subf %44, %51 : vector<1x128xf32>
      %53 = arith.mulf %52, %52 : vector<1x128xf32>
      %cst_34 = arith.constant dense<0.000000e+00> : vector<1xf32>
      %54 = vector.multi_reduction <add>, %53, %cst_34 [1] : vector<1x128xf32> to vector<1xf32>
      %55 = vector.shape_cast %54 : vector<1xf32> to vector<1x1xf32>
      %cst_35 = arith.constant 1.280000e+02 : f32
      %56 = vector.broadcast %cst_35 : f32 to vector<1x1xf32>
      %57 = arith.divf %55, %56 : vector<1x1xf32>
      %58 = vector.broadcast %50 : vector<1x1xf32> to vector<1x128xf32>
      %59 = arith.subf %44, %58 : vector<1x128xf32>
      %cst_36 = arith.constant 9.99999974E-6 : f32
      %60 = vector.broadcast %cst_36 : f32 to vector<1x1xf32>
      %61 = arith.addf %57, %60 : vector<1x1xf32>
      %62 = math.rsqrt %61 : vector<1x1xf32>
      %63 = vector.broadcast %62 : vector<1x1xf32> to vector<1x128xf32>
      %64 = arith.mulf %59, %63 : vector<1x128xf32>
      %65 = vector.broadcast %45 : vector<1x1xf32> to vector<1x128xf32>
      %66 = arith.mulf %64, %65 : vector<1x128xf32>
      %67 = vector.broadcast %46 : vector<1x1xf32> to vector<1x128xf32>
      %68 = arith.addf %66, %67 : vector<1x128xf32>
      %cst_37 = arith.constant 0.000000e+00 : f32
      %69 = vector.broadcast %cst_37 : f32 to vector<1x128xf32>
      %70 = arith.maximumf %68, %69 : vector<1x128xf32>
      %c0_38 = arith.constant 0 : index
      %c0_39 = arith.constant 0 : index
      %71 = vector.load %arg10[%c0_38, %c0_39] : memref<128x64xf32, #tpu.memory_space<vmem>>, vector<128x64xf32>
      %cst_40 = arith.constant dense<0.000000e+00> : vector<1x64xf32>
      %72 = tpu.matmul %70, %71, %cst_40 {dimension_numbers = #tpu.dot_dimension_numbers<[1], [0], [0], [1], [0, 0, 1, 1], [], []>} : vector<1x128xf32>, vector<128x64xf32>, vector<1x64xf32> -> vector<1x64xf32>
      %c0_41 = arith.constant 0 : index
      %c0_42 = arith.constant 0 : index
      %73 = vector.load %arg11[%c0_41, %c0_42] : memref<1x64xf32, #tpu.memory_space<vmem>>, vector<1x64xf32>
      %74 = arith.addf %72, %73 : vector<1x64xf32>
      %c0_43 = arith.constant 0 : index
      %c0_44 = arith.constant 0 : index
      %75 = vector.load %arg12[%c0_43, %c0_44] : memref<1x1xf32, #tpu.memory_space<vmem>>, vector<1x1xf32>
      %c0_45 = arith.constant 0 : index
      %c0_46 = arith.constant 0 : index
      %76 = vector.load %arg13[%c0_45, %c0_46] : memref<1x1xf32, #tpu.memory_space<vmem>>, vector<1x1xf32>
      %cst_47 = arith.constant dense<0.000000e+00> : vector<1xf32>
      %77 = vector.multi_reduction <add>, %74, %cst_47 [1] : vector<1x64xf32> to vector<1xf32>
      %78 = vector.shape_cast %77 : vector<1xf32> to vector<1x1xf32>
      %cst_48 = arith.constant 6.400000e+01 : f32
      %79 = vector.broadcast %cst_48 : f32 to vector<1x1xf32>
      %80 = arith.divf %78, %79 : vector<1x1xf32>
      %81 = vector.broadcast %80 : vector<1x1xf32> to vector<1x64xf32>
      %82 = arith.subf %74, %81 : vector<1x64xf32>
      %83 = arith.mulf %82, %82 : vector<1x64xf32>
      %cst_49 = arith.constant dense<0.000000e+00> : vector<1xf32>
      %84 = vector.multi_reduction <add>, %83, %cst_49 [1] : vector<1x64xf32> to vector<1xf32>
      %85 = vector.shape_cast %84 : vector<1xf32> to vector<1x1xf32>
      %cst_50 = arith.constant 6.400000e+01 : f32
      %86 = vector.broadcast %cst_50 : f32 to vector<1x1xf32>
      %87 = arith.divf %85, %86 : vector<1x1xf32>
      %88 = vector.broadcast %80 : vector<1x1xf32> to vector<1x64xf32>
      %89 = arith.subf %74, %88 : vector<1x64xf32>
      %cst_51 = arith.constant 9.99999974E-6 : f32
      %90 = vector.broadcast %cst_51 : f32 to vector<1x1xf32>
      %91 = arith.addf %87, %90 : vector<1x1xf32>
      %92 = math.rsqrt %91 : vector<1x1xf32>
      %93 = vector.broadcast %92 : vector<1x1xf32> to vector<1x64xf32>
      %94 = arith.mulf %89, %93 : vector<1x64xf32>
      %95 = vector.broadcast %75 : vector<1x1xf32> to vector<1x64xf32>
      %96 = arith.mulf %94, %95 : vector<1x64xf32>
      %97 = vector.broadcast %76 : vector<1x1xf32> to vector<1x64xf32>
      %98 = arith.addf %96, %97 : vector<1x64xf32>
      %cst_52 = arith.constant 0.000000e+00 : f32
      %99 = vector.broadcast %cst_52 : f32 to vector<1x64xf32>
      %100 = arith.maximumf %98, %99 : vector<1x64xf32>
      %c0_53 = arith.constant 0 : index
      %c0_54 = arith.constant 0 : index
      %101 = vector.load %arg14[%c0_53, %c0_54] : memref<64x32xf32, #tpu.memory_space<vmem>>, vector<64x32xf32>
      %c0_55 = arith.constant 0 : index
      %c0_56 = arith.constant 0 : index
      %102 = vector.load %arg15[%c0_55, %c0_56] : memref<1x32xf32, #tpu.memory_space<vmem>>, vector<1x32xf32>
      %cst_57 = arith.constant dense<0.000000e+00> : vector<1x32xf32>
      %103 = tpu.matmul %100, %101, %cst_57 {dimension_numbers = #tpu.dot_dimension_numbers<[1], [0], [0], [1], [0, 0, 1, 1], [], []>} : vector<1x64xf32>, vector<64x32xf32>, vector<1x32xf32> -> vector<1x32xf32>
      %104 = arith.addf %103, %102 : vector<1x32xf32>
      %105 = vector.extract_strided_slice %104 {offsets = [0, 0], sizes = [1, 8], strides = [1, 1]} : vector<1x32xf32> to vector<1x8xf32>
      %106 = arith.negf %105 : vector<1x8xf32>
      %107 = math.exp %106 : vector<1x8xf32>
      %cst_58 = arith.constant 1.000000e+00 : f32
      %108 = vector.broadcast %cst_58 : f32 to vector<1x8xf32>
      %109 = arith.addf %108, %107 : vector<1x8xf32>
      %110 = arith.divf %108, %109 : vector<1x8xf32>
      %111 = vector.extract_strided_slice %104 {offsets = [0, 16], sizes = [1, 8], strides = [1, 1]} : vector<1x32xf32> to vector<1x8xf32>
      %112 = math.tanh %111 : vector<1x8xf32>
      %113 = vector.extract_strided_slice %104 {offsets = [0, 24], sizes = [1, 8], strides = [1, 1]} : vector<1x32xf32> to vector<1x8xf32>
      %114 = arith.negf %113 : vector<1x8xf32>
      %115 = math.exp %114 : vector<1x8xf32>
      %cst_59 = arith.constant 1.000000e+00 : f32
      %116 = vector.broadcast %cst_59 : f32 to vector<1x8xf32>
      %117 = arith.addf %116, %115 : vector<1x8xf32>
      %118 = arith.divf %116, %117 : vector<1x8xf32>
      %119 = arith.mulf %110, %112 : vector<1x8xf32>
      %120 = math.tanh %119 : vector<1x8xf32>
      %121 = arith.mulf %118, %120 : vector<1x8xf32>
      %c0_60 = arith.constant 0 : index
      %c0_61 = arith.constant 0 : index
      %122 = vector.load %arg16[%c0_60, %c0_61] : memref<8x32xf32, #tpu.memory_space<vmem>>, vector<8x32xf32>
      %c0_62 = arith.constant 0 : index
      %c0_63 = arith.constant 0 : index
      %123 = vector.load %arg17[%c0_62, %c0_63] : memref<1x32xf32, #tpu.memory_space<vmem>>, vector<1x32xf32>
      %cst_64 = arith.constant dense<0.000000e+00> : vector<1x32xf32>
      %124 = tpu.matmul %121, %122, %cst_64 {dimension_numbers = #tpu.dot_dimension_numbers<[1], [0], [0], [1], [0, 0, 1, 1], [], []>} : vector<1x8xf32>, vector<8x32xf32>, vector<1x32xf32> -> vector<1x32xf32>
      %125 = arith.addf %124, %123 : vector<1x32xf32>
      %126 = vector.extract_strided_slice %125 {offsets = [0, 0], sizes = [1, 8], strides = [1, 1]} : vector<1x32xf32> to vector<1x8xf32>
      %127 = arith.negf %126 : vector<1x8xf32>
      %128 = math.exp %127 : vector<1x8xf32>
      %cst_65 = arith.constant 1.000000e+00 : f32
      %129 = vector.broadcast %cst_65 : f32 to vector<1x8xf32>
      %130 = arith.addf %129, %128 : vector<1x8xf32>
      %131 = arith.divf %129, %130 : vector<1x8xf32>
      %132 = vector.extract_strided_slice %125 {offsets = [0, 16], sizes = [1, 8], strides = [1, 1]} : vector<1x32xf32> to vector<1x8xf32>
      %133 = math.tanh %132 : vector<1x8xf32>
      %134 = vector.extract_strided_slice %125 {offsets = [0, 24], sizes = [1, 8], strides = [1, 1]} : vector<1x32xf32> to vector<1x8xf32>
      %135 = arith.negf %134 : vector<1x8xf32>
      %136 = math.exp %135 : vector<1x8xf32>
      %cst_66 = arith.constant 1.000000e+00 : f32
      %137 = vector.broadcast %cst_66 : f32 to vector<1x8xf32>
      %138 = arith.addf %137, %136 : vector<1x8xf32>
      %139 = arith.divf %137, %138 : vector<1x8xf32>
      %140 = arith.mulf %131, %133 : vector<1x8xf32>
      %141 = math.tanh %140 : vector<1x8xf32>
      %142 = arith.mulf %139, %141 : vector<1x8xf32>
      %c0_67 = arith.constant 0 : index
      %c0_68 = arith.constant 0 : index
      %143 = vector.load %arg18[%c0_67, %c0_68] : memref<8x6xf32, #tpu.memory_space<vmem>>, vector<8x6xf32>
      %cst_69 = arith.constant dense<0.000000e+00> : vector<1x6xf32>
      %144 = tpu.matmul %142, %143, %cst_69 {dimension_numbers = #tpu.dot_dimension_numbers<[1], [0], [0], [1], [0, 0, 1, 1], [], []>} : vector<1x8xf32>, vector<8x6xf32>, vector<1x6xf32> -> vector<1x6xf32>
      %c0_70 = arith.constant 0 : index
      %c0_71 = arith.constant 0 : index
      %145 = vector.load %arg19[%c0_70, %c0_71] : memref<1x6xf32, #tpu.memory_space<vmem>>, vector<1x6xf32>
      %146 = arith.addf %144, %145 : vector<1x6xf32>
      %cst_72 = arith.constant 0.000000e+00 : f32
      %147 = vector.broadcast %cst_72 : f32 to vector<1x6xf32>
      %148 = arith.maximumf %146, %147 : vector<1x6xf32>
      %c0_73 = arith.constant 0 : index
      %c0_74 = arith.constant 0 : index
      %149 = vector.load %arg20[%c0_73, %c0_74] : memref<1x6xf32, #tpu.memory_space<vmem>>, vector<1x6xf32>
      tpu.vector_store %arg20[%c0_73, %c0_74], %148 {strides = array<i32>} : memref<1x6xf32, #tpu.memory_space<vmem>>, vector<1x6xf32>,
    } else {
    }
    return
  }
  func.func @transform_0(%arg0: i32) -> (i32, i32) {
    %c0_i32 = arith.constant 0 : i32
    %c0_i32_0 = arith.constant 0 : i32
    return %c0_i32, %arg0 : i32, i32
  }
  func.func @transform_1(%arg0: i32) -> (i32, i32) {
    %c0_i32 = arith.constant 0 : i32
    %c0_i32_0 = arith.constant 0 : i32
    return %arg0, %c0_i32 : i32, i32
  }
  func.func @transform_2(%arg0: i32) -> (i32, i32) {
    %c0_i32 = arith.constant 0 : i32
    %c0_i32_0 = arith.constant 0 : i32
    %c0_i32_1 = arith.constant 0 : i32
    return %c0_i32, %c0_i32_0 : i32, i32
  }
  func.func @transform_3(%arg0: i32) -> (i32, i32) {
    %c0_i32 = arith.constant 0 : i32
    %c0_i32_0 = arith.constant 0 : i32
    %c0_i32_1 = arith.constant 0 : i32
    return %c0_i32, %c0_i32_0 : i32, i32
  }
  func.func @transform_4(%arg0: i32) -> (i32, i32) {
    %c0_i32 = arith.constant 0 : i32
    %c0_i32_0 = arith.constant 0 : i32
    %c0_i32_1 = arith.constant 0 : i32
    return %c0_i32, %c0_i32_0 : i32, i32
  }
  func.func @transform_5(%arg0: i32) -> (i32, i32) {
    %c0_i32 = arith.constant 0 : i32
    %c0_i32_0 = arith.constant 0 : i32
    %c0_i32_1 = arith.constant 0 : i32
    return %c0_i32, %c0_i32_0 : i32, i32
  }
  func.func @transform_6(%arg0: i32) -> (i32, i32) {
    %c0_i32 = arith.constant 0 : i32
    %c0_i32_0 = arith.constant 0 : i32
    %c0_i32_1 = arith.constant 0 : i32
    return %c0_i32, %c0_i32_0 : i32, i32
  }
  func.func @transform_7(%arg0: i32) -> (i32, i32) {
    %c0_i32 = arith.constant 0 : i32
    %c0_i32_0 = arith.constant 0 : i32
    %c0_i32_1 = arith.constant 0 : i32
    return %c0_i32, %c0_i32_0 : i32, i32
  }
  func.func @transform_8(%arg0: i32) -> (i32, i32) {
    %c0_i32 = arith.constant 0 : i32
    %c0_i32_0 = arith.constant 0 : i32
    %c0_i32_1 = arith.constant 0 : i32
    return %c0_i32, %c0_i32_0 : i32, i32
  }
  func.func @transform_9(%arg0: i32) -> (i32, i32) {
    %c0_i32 = arith.constant 0 : i32
    %c0_i32_0 = arith.constant 0 : i32
    %c0_i32_1 = arith.constant 0 : i32
    return %c0_i32, %c0_i32_0 : i32, i32
  }
  func.func @transform_10(%arg0: i32) -> (i32, i32) {
    %c0_i32 = arith.constant 0 : i32
    %c0_i32_0 = arith.constant 0 : i32
    %c0_i32_1 = arith.constant 0 : i32
    return %c0_i32, %c0_i32_0 : i32, i32
  }
  func.func @transform_11(%arg0: i32) -> (i32, i32) {
    %c0_i32 = arith.constant 0 : i32
    %c0_i32_0 = arith.constant 0 : i32
    %c0_i32_1 = arith.constant 0 : i32
    return %c0_i32, %c0_i32_0 : i32, i32
  }
  func.func @transform_12(%arg0: i32) -> (i32, i32) {
    %c0_i32 = arith.constant 0 : i32
    %c0_i32_0 = arith.constant 0 : i32
    %c0_i32_1 = arith.constant 0 : i32
    return %c0_i32, %c0_i32_0 : i32, i32
  }
  func.func @transform_13(%arg0: i32) -> (i32, i32) {
    %c0_i32 = arith.constant 0 : i32
    %c0_i32_0 = arith.constant 0 : i32
    %c0_i32_1 = arith.constant 0 : i32
    return %c0_i32, %c0_i32_0 : i32, i32
  }
  func.func @transform_14(%arg0: i32) -> (i32, i32) {
    %c0_i32 = arith.constant 0 : i32
    %c0_i32_0 = arith.constant 0 : i32
    %c0_i32_1 = arith.constant 0 : i32
    return %c0_i32, %c0_i32_0 : i32, i32
  }
  func.func @transform_15(%arg0: i32) -> (i32, i32) {
    %c0_i32 = arith.constant 0 : i32
    %c0_i32_0 = arith.constant 0 : i32
    %c0_i32_1 = arith.constant 0 : i32
    return %c0_i32, %c0_i32_0 : i32, i32
  }
  func.func @transform_16(%arg0: i32) -> (i32, i32) {
    %c0_i32 = arith.constant 0 : i32
    %c0_i32_0 = arith.constant 0 : i32
    %c0_i32_1 = arith.constant 0 : i32
    return %c0_i32, %c0_i32_0 : i32, i32
  }
  func.func @transform_17(%arg0: i32) -> (i32, i32) {
    %c0_i32 = arith.constant 0 : i32
    %c0_i32_0 = arith.constant 0 : i32
    %c0_i32_1 = arith.constant 0 : i32
    return %c0_i32, %c0_i32_0 : i32, i32
  }
  func.func @transform_18(%arg0: i32) -> (i32, i32) {
    %c0_i32 = arith.constant 0 : i32
    %c0_i32_0 = arith.constant 0 : i32
    %c0_i32_1 = arith.constant 0 : i32
    return %c0_i32, %c0_i32_0 : i32, i32
  }
  func.func @transform_19(%arg0: i32) -> (i32, i32) {
    %c0_i32 = arith.constant 0 : i32
    %c0_i32_0 = arith.constant 0 : i32
    %c0_i32_1 = arith.constant 0 : i32
    return %c0_i32, %c0_i32_0 : i32, i32
  }
}

</mosaic_0001>

<llo_original>
// kernel: network_forward.1
$region0: #{network_forward.1}
  #allocation0 [shape = 'u32[]', space=smem, size = 0x4, offset = 0x4, fixed_abs, tag = 'smem constant byte address 0x4 - core index']
  #allocation1 [shape = 'u32[144,128]{1,0:T(1,128)}', space=vmem, size = 0x12000, scoped, tag = 'internal scratch']
  #allocation2 [shape = 'f32[1,512]{1,0:T(1,128)}', space=vmem, size = 0x800, scoped, tag = 'scratch operand']
  #allocation3 [shape = 'f32[1,1]{1,0:T(1,128)S(1)}', space=vmem, size = 0x200, scoped, tag = 'scoped memory for network_forward.1']
  #allocation4 [shape = 'f32[1,1]{1,0:T(1,128)S(1)}', space=vmem, size = 0x200, scoped, tag = 'scoped memory for network_forward.1']
  #allocation5 [shape = 'f32[1,1]{1,0:T(1,128)S(1)}', space=vmem, size = 0x200, scoped, tag = 'scoped memory for network_forward.1']
  #allocation6 [shape = 'f32[1,1]{1,0:T(1,128)S(1)}', space=vmem, size = 0x200, scoped, tag = 'scoped memory for network_forward.1']
  #allocation7 [shape = 'f32[1,1]{1,0:T(1,128)S(1)}', space=vmem, size = 0x200, scoped, tag = 'scoped memory for network_forward.1']
  #allocation8 [shape = 'f32[1,1]{1,0:T(1,128)S(1)}', space=vmem, size = 0x200, scoped, tag = 'scoped memory for network_forward.1']
  %s0 = inlined_call_operand.vmem [shape: f32[1,4864], index: 0, kind: input, shape index: {}]
  %s1 = inlined_call_operand.hbm [shape: f32[4864,512], index: 1, kind: input, shape index: {}]
  %s2 = inlined_call_operand.hbm [shape: f32[1,512], index: 2, kind: input, shape index: {}]
  %s3 = inlined_call_operand.<no memory space> [shape: f32[1,1], index: 3, kind: input, shape index: {}]
  %s4 = inlined_call_operand.<no memory space> [shape: f32[1,1], index: 4, kind: input, shape index: {}]
  %s5 = inlined_call_operand.hbm [shape: f32[512,128], index: 5, kind: input, shape index: {}]
  %s6 = inlined_call_operand.hbm [shape: f32[1,128], index: 6, kind: input, shape index: {}]
  %s7 = inlined_call_operand.<no memory space> [shape: f32[1,1], index: 7, kind: input, shape index: {}]
  %s8 = inlined_call_operand.<no memory space> [shape: f32[1,1], index: 8, kind: input, shape index: {}]
  %s9 = inlined_call_operand.vmem [shape: f32[128,64], index: 9, kind: input, shape index: {}]
  %s10 = inlined_call_operand.hbm [shape: f32[1,64], index: 10, kind: input, shape index: {}]
  %s11 = inlined_call_operand.<no memory space> [shape: f32[1,1], index: 11, kind: input, shape index: {}]
  %s12 = inlined_call_operand.<no memory space> [shape: f32[1,1], index: 12, kind: input, shape index: {}]
  %s13 = inlined_call_operand.vmem [shape: f32[64,32], index: 13, kind: input, shape index: {}]
  %s14 = inlined_call_operand.hbm [shape: f32[1,32], index: 14, kind: input, shape index: {}]
  %s15 = inlined_call_operand.hbm [shape: f32[8,32], index: 15, kind: input, shape index: {}]
  %s16 = inlined_call_operand.hbm [shape: f32[1,32], index: 16, kind: input, shape index: {}]
  %s17 = inlined_call_operand.hbm [shape: f32[8,6], index: 17, kind: input, shape index: {}]
  %s18 = inlined_call_operand.hbm [shape: f32[1,6], index: 18, kind: input, shape index: {}]
  %s19 = inlined_call_operand.hbm [shape: f32[1,6], index: 19, kind: output, shape index: {}]
  %s20 = sld [smem:[#allocation0]]
  $region157: #{network_forward.1} parent=0
    _
  %s22 = ssub.s32 1, %s20
  %s23 = scalar_select 0, %s22, %s20
  %v24 = vstv %s3
  %25 = vst [vmem:[#allocation3] sm:$0x1] %v24
  %v26 = vstv %s4
  %27 = vst [vmem:[#allocation4] sm:$0x1] %v26
  %v28 = vstv %s7
  %29 = vst [vmem:[#allocation5] sm:$0x1] %v28
  %v30 = vstv %s8
  %31 = vst [vmem:[#allocation6] sm:$0x1] %v30
  %v32 = vstv %s11
  %33 = vst [vmem:[#allocation7] sm:$0x1] %v32
  %v34 = vstv %s12
  %35 = vst [vmem:[#allocation8] sm:$0x1] %v34
  $region1: #{network_forward.1} parent=0
    #allocation9 [shape = 'u8[9961472]{0}', space=vmem, size = 0x980000, scoped, tag = 'input window, operand 1']
    #allocation10 [shape = 's32[2]{0}', space=sflag, size = 0x8, scoped, tag = 'scoped memory for network_forward.1']
    #allocation11 [shape = 's32[2]{0}', space=sflag, size = 0x8, scoped, tag = 'scoped memory for network_forward.1']
    #allocation12 [shape = 'u8[2048]{0}', space=vmem, size = 0x800, scoped, tag = 'input window, operand 2, single buffered']
    #allocation13 [shape = 's32[1]{0}', space=sflag, size = 0x4, scoped, tag = 'scoped memory for network_forward.1']
    #allocation14 [shape = 'u8[262144]{0}', space=vmem, size = 0x40000, scoped, tag = 'input window, operand 5, single buffered']
    #allocation15 [shape = 'u8[512]{0}', space=vmem, size = 0x400, scoped, tag = 'input window, operand 6, single buffered']
    #allocation16 [shape = 's32[1]{0}', space=sflag, size = 0x4, scoped, tag = 'scoped memory for network_forward.1']
    #allocation17 [shape = 'u8[512]{0}', space=vmem, size = 0x400, scoped, tag = 'input window, operand 10, single buffered']
    #allocation18 [shape = 'u8[512]{0}', space=vmem, size = 0x400, scoped, tag = 'input window, operand 14, single buffered']
    #allocation19 [shape = 's32[1]{0}', space=sflag, size = 0x4, scoped, tag = 'scoped memory for network_forward.1']
    #allocation20 [shape = 'u8[4096]{0}', space=vmem, size = 0x1000, scoped, tag = 'input window, operand 15, single buffered']
    #allocation21 [shape = 'u8[512]{0}', space=vmem, size = 0x400, scoped, tag = 'input window, operand 16, single buffered']
    #allocation22 [shape = 's32[1]{0}', space=sflag, size = 0x4, scoped, tag = 'scoped memory for network_forward.1']
    #allocation23 [shape = 'u8[4096]{0}', space=vmem, size = 0x1000, scoped, tag = 'input window, operand 17, single buffered']
    #allocation24 [shape = 'u8[512]{0}', space=vmem, size = 0x400, scoped, tag = 'input window, operand 18, single buffered']
    #allocation25 [shape = 's32[1]{0}', space=sflag, size = 0x4, scoped, tag = 'scoped memory for network_forward.1']
    #allocation26 [shape = 'u8[512]{0}', space=vmem, size = 0x400, scoped, tag = 'output window, operand 0, single buffered']
    %36 = vsyncpa [#allocation10], 0
    %s37 = scalar_lea.sflag [#allocation10], 1
    %38 = vsyncpa %s37, 0
    %39 = vsyncpa [#allocation13], 0
    %40 = vsyncpa [#allocation16], 0
    %41 = vsyncpa [#allocation19], 0
    %42 = vsyncpa [#allocation22], 0
    %43 = vsyncpa [#allocation25], 0
    %44 = vsyncpa [#allocation11], 0
    loop: start=0, step=1, limit=4
    $region2: #{network_forward.1} parent=1 // loop_pre_header
      _
    $region3: #{network_forward.1} parent=1 // loop_header
      %s46 = sphi 0, %s50
      %p47 = scmp.ge.s32.totalorder %s46, 4
      %s56 = sphi 0, %s58
      %s59 = sphi 0, %s56
      %s60 = sphi 0, %s59
      %s76 = sphi 0, %s60
      %s82 = sphi 0, %s84
      %s85 = sphi 0, %s82
      %s86 = sphi 0, %s85
      %s102 = sphi 0, %s86
      %s106 = sphi 0, %s106
      %s108 = sphi 0, %s106
      %s109 = sphi 0, %s108
      %s123 = sphi 0, %s109
      %s127 = sphi 0, %s127
      %s129 = sphi 0, %s127
      %s130 = sphi 0, %s129
      %s144 = sphi 0, %s130
      %s148 = sphi 0, %s148
      %s150 = sphi 0, %s148
      %s151 = sphi 0, %s150
      %s165 = sphi 0, %s151
      %s169 = sphi 0, %s169
      %s171 = sphi 0, %s169
      %s172 = sphi 0, %s171
      %s186 = sphi 0, %s172
      %s190 = sphi 0, %s190
      %s192 = sphi 0, %s190
      %s193 = sphi 0, %s192
      %s207 = sphi 0, %s193
      %s211 = sphi 0, %s211
      %s213 = sphi 0, %s211
      %s214 = sphi 0, %s213
      %s228 = sphi 0, %s214
      %s232 = sphi 0, %s232
      %s234 = sphi 0, %s232
      %s235 = sphi 0, %s234
      %s249 = sphi 0, %s235
      %s253 = sphi 0, %s253
      %s255 = sphi 0, %s253
      %s256 = sphi 0, %s255
      %s270 = sphi 0, %s256
      %s274 = sphi 0, %s274
      %s276 = sphi 0, %s274
      %s277 = sphi 0, %s276
      %s291 = sphi 0, %s277
      %s295 = sphi 0, %s295
      %s297 = sphi 0, %s295
      %s298 = sphi 0, %s297
      %s312 = sphi 0, %s298
      %s316 = sphi 0, %s316
      %s318 = sphi 0, %s316
      %s319 = sphi 0, %s318
      %s333 = sphi 0, %s319
      %s337 = sphi 0, %s337
      %s339 = sphi 0, %s337
      %s340 = sphi 0, %s339
      %s354 = sphi 0, %s340
      %s358 = sphi 0, %s358
      %s360 = sphi 0, %s358
      %s361 = sphi 0, %s360
      %s375 = sphi 0, %s361
      %s379 = sphi 0, %s379
      %s381 = sphi 0, %s379
      %s382 = sphi 0, %s381
      %s396 = sphi 0, %s382
      %s400 = sphi 0, %s400
      %s402 = sphi 0, %s400
      %s403 = sphi 0, %s402
      %s417 = sphi 0, %s403
      %s421 = sphi 0, %s421
      %s423 = sphi 0, %s421
      %s424 = sphi 0, %s423
      %s438 = sphi 0, %s424
      %s442 = sphi 0, %s442
      %s444 = sphi 0, %s442
      %s445 = sphi 0, %s444
      %s459 = sphi 0, %s445
      %s463 = sphi 0, %s463
      %s465 = sphi 0, %s463
      %s466 = sphi 0, %s465
      %s480 = sphi 0, %s466
    $region4: #{network_forward.1} parent=1 // loop_header_branch
      %49 = sbr.rel (%p47) target = $region8
    $region5: #{network_forward.1} parent=1 // loop_body
      %s51 = ssub.s32 %s46, 1
      %s52 = ssub.s32 %s46, 2
      %s53 = sadd.s32 %s46, 1
      %s54 = ssub.s32 %s46, %s53
      %p55 = scmp.eq.s32.totalorder %s54, 0
      %s57 = sadd.s32 %s56, 1
      %s58 = scalar_select %p55, %s56, %s57
      %p61 = pneg %p55
      %p62 = scmp.eq.s32.totalorder %s46, 1
      %p63 = por %p61, %p62
      %p64 = scmp.ne.s32.totalorder %s56, %s59
      %p65 = scmp.eq.s32.totalorder %s46, 0
      %p66 = por %p64, %p65
      %p67 = scmp.ne.s32.totalorder %s56, %s59
      %p68 = scmp.eq.s32.totalorder %s51, 1
      %p69 = por %p67, %p68
      %p70 = scmp.ne.s32.totalorder %s59, %s60
      %p71 = scmp.eq.s32.totalorder %s51, 0
      %p72 = por %p70, %p71
      %p73 = scmp.ne.s32.totalorder %s59, %s60
      %p74 = scmp.eq.s32.totalorder %s52, 1
      %p75 = por %p73, %p74
      %p77 = scmp.ne.s32.totalorder %s60, %s76
      %p78 = scmp.eq.s32.totalorder %s52, 0
      %p79 = por %p77, %p78
      %s80 = ssub.s32 %s46, %s53
      %p81 = scmp.eq.s32.totalorder %s80, 0
      %s83 = sadd.s32 %s82, 1
      %s84 = scalar_select %p81, %s82, %s83
      %p87 = pneg %p81
      %p88 = scmp.eq.s32.totalorder %s46, 1
      %p89 = por %p87, %p88
      %p90 = scmp.ne.s32.totalorder %s82, %s85
      %p91 = scmp.eq.s32.totalorder %s46, 0
      %p92 = por %p90, %p91
      %p93 = scmp.ne.s32.totalorder %s82, %s85
      %p94 = scmp.eq.s32.totalorder %s51, 1
      %p95 = por %p93, %p94
      %p96 = scmp.ne.s32.totalorder %s85, %s86
      %p97 = scmp.eq.s32.totalorder %s51, 0
      %p98 = por %p96, %p97
      %p99 = scmp.ne.s32.totalorder %s85, %s86
      %p100 = scmp.eq.s32.totalorder %s52, 1
      %p101 = por %p99, %p100
      %p103 = scmp.ne.s32.totalorder %s86, %s102
      %p104 = scmp.eq.s32.totalorder %s52, 0
      %p105 = por %p103, %p104
      %s107 = sadd.s32 %s106, 1
      %p110 = scmp.eq.s32.totalorder %s46, 1
      %p111 = scmp.ne.s32.totalorder %s106, %s108
      %p112 = scmp.eq.s32.totalorder %s46, 0
      %p113 = por %p111, %p112
      %p114 = scmp.ne.s32.totalorder %s106, %s108
      %p115 = scmp.eq.s32.totalorder %s51, 1
      %p116 = por %p114, %p115
      %p117 = scmp.ne.s32.totalorder %s108, %s109
      %p118 = scmp.eq.s32.totalorder %s51, 0
      %p119 = por %p117, %p118
      %p120 = scmp.ne.s32.totalorder %s108, %s109
      %p121 = scmp.eq.s32.totalorder %s52, 1
      %p122 = por %p120, %p121
      %p124 = scmp.ne.s32.totalorder %s109, %s123
      %p125 = scmp.eq.s32.totalorder %s52, 0
      %p126 = por %p124, %p125
      %s128 = sadd.s32 %s127, 1
      %p131 = scmp.eq.s32.totalorder %s46, 1
      %p132 = scmp.ne.s32.totalorder %s127, %s129
      %p133 = scmp.eq.s32.totalorder %s46, 0
      %p134 = por %p132, %p133
      %p135 = scmp.ne.s32.totalorder %s127, %s129
      %p136 = scmp.eq.s32.totalorder %s51, 1
      %p137 = por %p135, %p136
      %p138 = scmp.ne.s32.totalorder %s129, %s130
      %p139 = scmp.eq.s32.totalorder %s51, 0
      %p140 = por %p138, %p139
      %p141 = scmp.ne.s32.totalorder %s129, %s130
      %p142 = scmp.eq.s32.totalorder %s52, 1
      %p143 = por %p141, %p142
      %p145 = scmp.ne.s32.totalorder %s130, %s144
      %p146 = scmp.eq.s32.totalorder %s52, 0
      %p147 = por %p145, %p146
      %s149 = sadd.s32 %s148, 1
      %p152 = scmp.eq.s32.totalorder %s46, 1
      %p153 = scmp.ne.s32.totalorder %s148, %s150
      %p154 = scmp.eq.s32.totalorder %s46, 0
      %p155 = por %p153, %p154
      %p156 = scmp.ne.s32.totalorder %s148, %s150
      %p157 = scmp.eq.s32.totalorder %s51, 1
      %p158 = por %p156, %p157
      %p159 = scmp.ne.s32.totalorder %s150, %s151
      %p160 = scmp.eq.s32.totalorder %s51, 0
      %p161 = por %p159, %p160
      %p162 = scmp.ne.s32.totalorder %s150, %s151
      %p163 = scmp.eq.s32.totalorder %s52, 1
      %p164 = por %p162, %p163
      %p166 = scmp.ne.s32.totalorder %s151, %s165
      %p167 = scmp.eq.s32.totalorder %s52, 0
      %p168 = por %p166, %p167
      %s170 = sadd.s32 %s169, 1
      %p173 = scmp.eq.s32.totalorder %s46, 1
      %p174 = scmp.ne.s32.totalorder %s169, %s171
      %p175 = scmp.eq.s32.totalorder %s46, 0
      %p176 = por %p174, %p175
      %p177 = scmp.ne.s32.totalorder %s169, %s171
      %p178 = scmp.eq.s32.totalorder %s51, 1
      %p179 = por %p177, %p178
      %p180 = scmp.ne.s32.totalorder %s171, %s172
      %p181 = scmp.eq.s32.totalorder %s51, 0
      %p182 = por %p180, %p181
      %p183 = scmp.ne.s32.totalorder %s171, %s172
      %p184 = scmp.eq.s32.totalorder %s52, 1
      %p185 = por %p183, %p184
      %p187 = scmp.ne.s32.totalorder %s172, %s186
      %p188 = scmp.eq.s32.totalorder %s52, 0
      %p189 = por %p187, %p188
      %s191 = sadd.s32 %s190, 1
      %p194 = scmp.eq.s32.totalorder %s46, 1
      %p195 = scmp.ne.s32.totalorder %s190, %s192
      %p196 = scmp.eq.s32.totalorder %s46, 0
      %p197 = por %p195, %p196
      %p198 = scmp.ne.s32.totalorder %s190, %s192
      %p199 = scmp.eq.s32.totalorder %s51, 1
      %p200 = por %p198, %p199
      %p201 = scmp.ne.s32.totalorder %s192, %s193
      %p202 = scmp.eq.s32.totalorder %s51, 0
      %p203 = por %p201, %p202
      %p204 = scmp.ne.s32.totalorder %s192, %s193
      %p205 = scmp.eq.s32.totalorder %s52, 1
      %p206 = por %p204, %p205
      %p208 = scmp.ne.s32.totalorder %s193, %s207
      %p209 = scmp.eq.s32.totalorder %s52, 0
      %p210 = por %p208, %p209
      %s212 = sadd.s32 %s211, 1
      %p215 = scmp.eq.s32.totalorder %s46, 1
      %p216 = scmp.ne.s32.totalorder %s211, %s213
      %p217 = scmp.eq.s32.totalorder %s46, 0
      %p218 = por %p216, %p217
      %p219 = scmp.ne.s32.totalorder %s211, %s213
      %p220 = scmp.eq.s32.totalorder %s51, 1
      %p221 = por %p219, %p220
      %p222 = scmp.ne.s32.totalorder %s213, %s214
      %p223 = scmp.eq.s32.totalorder %s51, 0
      %p224 = por %p222, %p223
      %p225 = scmp.ne.s32.totalorder %s213, %s214
      %p226 = scmp.eq.s32.totalorder %s52, 1
      %p227 = por %p225, %p226
      %p229 = scmp.ne.s32.totalorder %s214, %s228
      %p230 = scmp.eq.s32.totalorder %s52, 0
      %p231 = por %p229, %p230
      %s233 = sadd.s32 %s232, 1
      %p236 = scmp.eq.s32.totalorder %s46, 1
      %p237 = scmp.ne.s32.totalorder %s232, %s234
      %p238 = scmp.eq.s32.totalorder %s46, 0
      %p239 = por %p237, %p238
      %p240 = scmp.ne.s32.totalorder %s232, %s234
      %p241 = scmp.eq.s32.totalorder %s51, 1
      %p242 = por %p240, %p241
      %p243 = scmp.ne.s32.totalorder %s234, %s235
      %p244 = scmp.eq.s32.totalorder %s51, 0
      %p245 = por %p243, %p244
      %p246 = scmp.ne.s32.totalorder %s234, %s235
      %p247 = scmp.eq.s32.totalorder %s52, 1
      %p248 = por %p246, %p247
      %p250 = scmp.ne.s32.totalorder %s235, %s249
      %p251 = scmp.eq.s32.totalorder %s52, 0
      %p252 = por %p250, %p251
      %s254 = sadd.s32 %s253, 1
      %p257 = scmp.eq.s32.totalorder %s46, 1
      %p258 = scmp.ne.s32.totalorder %s253, %s255
      %p259 = scmp.eq.s32.totalorder %s46, 0
      %p260 = por %p258, %p259
      %p261 = scmp.ne.s32.totalorder %s253, %s255
      %p262 = scmp.eq.s32.totalorder %s51, 1
      %p263 = por %p261, %p262
      %p264 = scmp.ne.s32.totalorder %s255, %s256
      %p265 = scmp.eq.s32.totalorder %s51, 0
      %p266 = por %p264, %p265
      %p267 = scmp.ne.s32.totalorder %s255, %s256
      %p268 = scmp.eq.s32.totalorder %s52, 1
      %p269 = por %p267, %p268
      %p271 = scmp.ne.s32.totalorder %s256, %s270
      %p272 = scmp.eq.s32.totalorder %s52, 0
      %p273 = por %p271, %p272
      %s275 = sadd.s32 %s274, 1
      %p278 = scmp.eq.s32.totalorder %s46, 1
      %p279 = scmp.ne.s32.totalorder %s274, %s276
      %p280 = scmp.eq.s32.totalorder %s46, 0
      %p281 = por %p279, %p280
      %p282 = scmp.ne.s32.totalorder %s274, %s276
      %p283 = scmp.eq.s32.totalorder %s51, 1
      %p284 = por %p282, %p283
      %p285 = scmp.ne.s32.totalorder %s276, %s277
      %p286 = scmp.eq.s32.totalorder %s51, 0
      %p287 = por %p285, %p286
      %p288 = scmp.ne.s32.totalorder %s276, %s277
      %p289 = scmp.eq.s32.totalorder %s52, 1
      %p290 = por %p288, %p289
      %p292 = scmp.ne.s32.totalorder %s277, %s291
      %p293 = scmp.eq.s32.totalorder %s52, 0
      %p294 = por %p292, %p293
      %s296 = sadd.s32 %s295, 1
      %p299 = scmp.eq.s32.totalorder %s46, 1
      %p300 = scmp.ne.s32.totalorder %s295, %s297
      %p301 = scmp.eq.s32.totalorder %s46, 0
      %p302 = por %p300, %p301
      %p303 = scmp.ne.s32.totalorder %s295, %s297
      %p304 = scmp.eq.s32.totalorder %s51, 1
      %p305 = por %p303, %p304
      %p306 = scmp.ne.s32.totalorder %s297, %s298
      %p307 = scmp.eq.s32.totalorder %s51, 0
      %p308 = por %p306, %p307
      %p309 = scmp.ne.s32.totalorder %s297, %s298
      %p310 = scmp.eq.s32.totalorder %s52, 1
      %p311 = por %p309, %p310
      %p313 = scmp.ne.s32.totalorder %s298, %s312
      %p314 = scmp.eq.s32.totalorder %s52, 0
      %p315 = por %p313, %p314
      %s317 = sadd.s32 %s316, 1
      %p320 = scmp.eq.s32.totalorder %s46, 1
      %p321 = scmp.ne.s32.totalorder %s316, %s318
      %p322 = scmp.eq.s32.totalorder %s46, 0
      %p323 = por %p321, %p322
      %p324 = scmp.ne.s32.totalorder %s316, %s318
      %p325 = scmp.eq.s32.totalorder %s51, 1
      %p326 = por %p324, %p325
      %p327 = scmp.ne.s32.totalorder %s318, %s319
      %p328 = scmp.eq.s32.totalorder %s51, 0
      %p329 = por %p327, %p328
      %p330 = scmp.ne.s32.totalorder %s318, %s319
      %p331 = scmp.eq.s32.totalorder %s52, 1
      %p332 = por %p330, %p331
      %p334 = scmp.ne.s32.totalorder %s319, %s333
      %p335 = scmp.eq.s32.totalorder %s52, 0
      %p336 = por %p334, %p335
      %s338 = sadd.s32 %s337, 1
      %p341 = scmp.eq.s32.totalorder %s46, 1
      %p342 = scmp.ne.s32.totalorder %s337, %s339
      %p343 = scmp.eq.s32.totalorder %s46, 0
      %p344 = por %p342, %p343
      %p345 = scmp.ne.s32.totalorder %s337, %s339
      %p346 = scmp.eq.s32.totalorder %s51, 1
      %p347 = por %p345, %p346
      %p348 = scmp.ne.s32.totalorder %s339, %s340
      %p349 = scmp.eq.s32.totalorder %s51, 0
      %p350 = por %p348, %p349
      %p351 = scmp.ne.s32.totalorder %s339, %s340
      %p352 = scmp.eq.s32.totalorder %s52, 1
      %p353 = por %p351, %p352
      %p355 = scmp.ne.s32.totalorder %s340, %s354
      %p356 = scmp.eq.s32.totalorder %s52, 0
      %p357 = por %p355, %p356
      %s359 = sadd.s32 %s358, 1
      %p362 = scmp.eq.s32.totalorder %s46, 1
      %p363 = scmp.ne.s32.totalorder %s358, %s360
      %p364 = scmp.eq.s32.totalorder %s46, 0
      %p365 = por %p363, %p364
      %p366 = scmp.ne.s32.totalorder %s358, %s360
      %p367 = scmp.eq.s32.totalorder %s51, 1
      %p368 = por %p366, %p367
      %p369 = scmp.ne.s32.totalorder %s360, %s361
      %p370 = scmp.eq.s32.totalorder %s51, 0
      %p371 = por %p369, %p370
      %p372 = scmp.ne.s32.totalorder %s360, %s361
      %p373 = scmp.eq.s32.totalorder %s52, 1
      %p374 = por %p372, %p373
      %p376 = scmp.ne.s32.totalorder %s361, %s375
      %p377 = scmp.eq.s32.totalorder %s52, 0
      %p378 = por %p376, %p377
      %s380 = sadd.s32 %s379, 1
      %p383 = scmp.eq.s32.totalorder %s46, 1
      %p384 = scmp.ne.s32.totalorder %s379, %s381
      %p385 = scmp.eq.s32.totalorder %s46, 0
      %p386 = por %p384, %p385
      %p387 = scmp.ne.s32.totalorder %s379, %s381
      %p388 = scmp.eq.s32.totalorder %s51, 1
      %p389 = por %p387, %p388
      %p390 = scmp.ne.s32.totalorder %s381, %s382
      %p391 = scmp.eq.s32.totalorder %s51, 0
      %p392 = por %p390, %p391
      %p393 = scmp.ne.s32.totalorder %s381, %s382
      %p394 = scmp.eq.s32.totalorder %s52, 1
      %p395 = por %p393, %p394
      %p397 = scmp.ne.s32.totalorder %s382, %s396
      %p398 = scmp.eq.s32.totalorder %s52, 0
      %p399 = por %p397, %p398
      %s401 = sadd.s32 %s400, 1
      %p404 = scmp.eq.s32.totalorder %s46, 1
      %p405 = scmp.ne.s32.totalorder %s400, %s402
      %p406 = scmp.eq.s32.totalorder %s46, 0
      %p407 = por %p405, %p406
      %p408 = scmp.ne.s32.totalorder %s400, %s402
      %p409 = scmp.eq.s32.totalorder %s51, 1
      %p410 = por %p408, %p409
      %p411 = scmp.ne.s32.totalorder %s402, %s403
      %p412 = scmp.eq.s32.totalorder %s51, 0
      %p413 = por %p411, %p412
      %p414 = scmp.ne.s32.totalorder %s402, %s403
      %p415 = scmp.eq.s32.totalorder %s52, 1
      %p416 = por %p414, %p415
      %p418 = scmp.ne.s32.totalorder %s403, %s417
      %p419 = scmp.eq.s32.totalorder %s52, 0
      %p420 = por %p418, %p419
      %s422 = sadd.s32 %s421, 1
      %p425 = scmp.eq.s32.totalorder %s46, 1
      %p426 = scmp.ne.s32.totalorder %s421, %s423
      %p427 = scmp.eq.s32.totalorder %s46, 0
      %p428 = por %p426, %p427
      %p429 = scmp.ne.s32.totalorder %s421, %s423
      %p430 = scmp.eq.s32.totalorder %s51, 1
      %p431 = por %p429, %p430
      %p432 = scmp.ne.s32.totalorder %s423, %s424
      %p433 = scmp.eq.s32.totalorder %s51, 0
      %p434 = por %p432, %p433
      %p435 = scmp.ne.s32.totalorder %s423, %s424
      %p436 = scmp.eq.s32.totalorder %s52, 1
      %p437 = por %p435, %p436
      %p439 = scmp.ne.s32.totalorder %s424, %s438
      %p440 = scmp.eq.s32.totalorder %s52, 0
      %p441 = por %p439, %p440
      %s443 = sadd.s32 %s442, 1
      %p446 = scmp.eq.s32.totalorder %s46, 1
      %p447 = scmp.ne.s32.totalorder %s442, %s444
      %p448 = scmp.eq.s32.totalorder %s46, 0
      %p449 = por %p447, %p448
      %p450 = scmp.ne.s32.totalorder %s442, %s444
      %p451 = scmp.eq.s32.totalorder %s51, 1
      %p452 = por %p450, %p451
      %p453 = scmp.ne.s32.totalorder %s444, %s445
      %p454 = scmp.eq.s32.totalorder %s51, 0
      %p455 = por %p453, %p454
      %p456 = scmp.ne.s32.totalorder %s444, %s445
      %p457 = scmp.eq.s32.totalorder %s52, 1
      %p458 = por %p456, %p457
      %p460 = scmp.ne.s32.totalorder %s445, %s459
      %p461 = scmp.eq.s32.totalorder %s52, 0
      %p462 = por %p460, %p461
      %s464 = sadd.s32 %s463, 1
      %p467 = scmp.eq.s32.totalorder %s46, 1
      %p468 = scmp.ne.s32.totalorder %s463, %s465
      %p469 = scmp.eq.s32.totalorder %s46, 0
      %p470 = por %p468, %p469
      %p471 = scmp.ne.s32.totalorder %s463, %s465
      %p472 = scmp.eq.s32.totalorder %s51, 1
      %p473 = por %p471, %p472
      %p474 = scmp.ne.s32.totalorder %s465, %s466
      %p475 = scmp.eq.s32.totalorder %s51, 0
      %p476 = por %p474, %p475
      %p477 = scmp.ne.s32.totalorder %s465, %s466
      %p478 = scmp.eq.s32.totalorder %s52, 1
      %p479 = por %p477, %p478
      %p481 = scmp.ne.s32.totalorder %s466, %s480
      %p482 = scmp.eq.s32.totalorder %s52, 0
      %p483 = por %p481, %p482
      %p484 = scmp.le.s32.totalorder 1, %s46
      %p485 = scmp.lt.s32.totalorder %s46, 3
      %p486 = pnand %p484, %p485
      %p487 = pneg %p486
      // Predicated region
      $region9: #{network_forward.1} parent=5 // pred_check
        _
      $region10: #{network_forward.1} parent=5 // pred_check_branch
        %489 = sbr.rel (%p486) target = $region12
      $region11: #{network_forward.1} parent=5 // pred_region
        %s490 = ssub.s32 %s46, 1
        // Predicated region
        $region13: #{network_forward.1} parent=11 // pred_check
          %p491 = pneg %p119
        $region14: #{network_forward.1} parent=11 // pred_check_branch
          %493 = sbr.rel (%p491) target = $region16
        $region15: #{network_forward.1} parent=11 // pred_region
          %s495 = ssub.s32 64, 64
          %496 = vsyncadd [#allocation13], %s495
          %s498 = sshll.u32 [#allocation12], 4
          %s499 = int_to_ptr.vmem [resolvable:$true] %s498
          %501 = dma.hbm_to_vmem [thread:$0]  %s2, 64, %s499, [#allocation13]
        $region16: #{network_forward.1} parent=11 // pred_fallthru
          _
        // Predicated region
        $region17: #{network_forward.1} parent=11 // pred_check
          %p502 = pneg %p140
        $region18: #{network_forward.1} parent=11 // pred_check_branch
          %504 = sbr.rel (%p502) target = $region20
        $region19: #{network_forward.1} parent=11 // pred_region
          _
        $region20: #{network_forward.1} parent=11 // pred_fallthru
          _
        // Predicated region
        $region21: #{network_forward.1} parent=11 // pred_check
          %p505 = pneg %p161
        $region22: #{network_forward.1} parent=11 // pred_check_branch
          %507 = sbr.rel (%p505) target = $region24
        $region23: #{network_forward.1} parent=11 // pred_region
          _
        $region24: #{network_forward.1} parent=11 // pred_fallthru
          _
        // Predicated region
        $region25: #{network_forward.1} parent=11 // pred_check
          %p508 = pneg %p182
        $region26: #{network_forward.1} parent=11 // pred_check_branch
          %510 = sbr.rel (%p508) target = $region28
        $region27: #{network_forward.1} parent=11 // pred_region
          %s512 = ssub.s32 8192, 8192
          %513 = vsyncadd [#allocation13], %s512
          %s514 = sshll.u32 [#allocation14], 4
          %s515 = int_to_ptr.vmem [resolvable:$true] %s514
          %520 = dma.hbm_to_vmem [thread:$0]  %s5, 8192, %s515, [#allocation13], 128, 128, 8
        $region28: #{network_forward.1} parent=11 // pred_fallthru
          _
        // Predicated region
        $region29: #{network_forward.1} parent=11 // pred_check
          %p521 = pneg %p203
        $region30: #{network_forward.1} parent=11 // pred_check_branch
          %523 = sbr.rel (%p521) target = $region32
        $region31: #{network_forward.1} parent=11 // pred_region
          %s525 = ssub.s32 16, 16
          %526 = vsyncadd [#allocation16], %s525
          %s528 = sshll.u32 [#allocation15], 4
          %s529 = int_to_ptr.vmem [resolvable:$true] %s528
          %531 = dma.hbm_to_vmem [thread:$0]  %s6, 16, %s529, [#allocation16]
        $region32: #{network_forward.1} parent=11 // pred_fallthru
          _
        // Predicated region
        $region33: #{network_forward.1} parent=11 // pred_check
          %p532 = pneg %p224
        $region34: #{network_forward.1} parent=11 // pred_check_branch
          %534 = sbr.rel (%p532) target = $region36
        $region35: #{network_forward.1} parent=11 // pred_region
          _
        $region36: #{network_forward.1} parent=11 // pred_fallthru
          _
        // Predicated region
        $region37: #{network_forward.1} parent=11 // pred_check
          %p535 = pneg %p245
        $region38: #{network_forward.1} parent=11 // pred_check_branch
          %537 = sbr.rel (%p535) target = $region40
        $region39: #{network_forward.1} parent=11 // pred_region
          _
        $region40: #{network_forward.1} parent=11 // pred_fallthru
          _
        // Predicated region
        $region41: #{network_forward.1} parent=11 // pred_check
          %p538 = pneg %p266
        $region42: #{network_forward.1} parent=11 // pred_check_branch
          %540 = sbr.rel (%p538) target = $region44
        $region43: #{network_forward.1} parent=11 // pred_region
          _
        $region44: #{network_forward.1} parent=11 // pred_fallthru
          _
        // Predicated region
        $region45: #{network_forward.1} parent=11 // pred_check
          %p541 = pneg %p287
        $region46: #{network_forward.1} parent=11 // pred_check_branch
          %543 = sbr.rel (%p541) target = $region48
        $region47: #{network_forward.1} parent=11 // pred_region
          %s545 = ssub.s32 16, 16
          %546 = vsyncadd [#allocation16], %s545
          %s548 = sshll.u32 [#allocation17], 4
          %s549 = int_to_ptr.vmem [resolvable:$true] %s548
          %551 = dma.hbm_to_vmem [thread:$0]  %s10, 16, %s549, [#allocation16]
        $region48: #{network_forward.1} parent=11 // pred_fallthru
          _
        // Predicated region
        $region49: #{network_forward.1} parent=11 // pred_check
          %p552 = pneg %p308
        $region50: #{network_forward.1} parent=11 // pred_check_branch
          %554 = sbr.rel (%p552) target = $region52
        $region51: #{network_forward.1} parent=11 // pred_region
          _
        $region52: #{network_forward.1} parent=11 // pred_fallthru
          _
        // Predicated region
        $region53: #{network_forward.1} parent=11 // pred_check
          %p555 = pneg %p329
        $region54: #{network_forward.1} parent=11 // pred_check_branch
          %557 = sbr.rel (%p555) target = $region56
        $region55: #{network_forward.1} parent=11 // pred_region
          _
        $region56: #{network_forward.1} parent=11 // pred_fallthru
          _
        // Predicated region
        $region57: #{network_forward.1} parent=11 // pred_check
          %p558 = pneg %p350
        $region58: #{network_forward.1} parent=11 // pred_check_branch
          %560 = sbr.rel (%p558) target = $region60
        $region59: #{network_forward.1} parent=11 // pred_region
          _
        $region60: #{network_forward.1} parent=11 // pred_fallthru
          _
        // Predicated region
        $region61: #{network_forward.1} parent=11 // pred_check
          %p561 = pneg %p371
        $region62: #{network_forward.1} parent=11 // pred_check_branch
          %563 = sbr.rel (%p561) target = $region64
        $region63: #{network_forward.1} parent=11 // pred_region
          %s565 = ssub.s32 16, 16
          %566 = vsyncadd [#allocation19], %s565
          %s568 = sshll.u32 [#allocation18], 4
          %s569 = int_to_ptr.vmem [resolvable:$true] %s568
          %571 = dma.hbm_to_vmem [thread:$0]  %s14, 16, %s569, [#allocation19]
        $region64: #{network_forward.1} parent=11 // pred_fallthru
          _
        // Predicated region
        $region65: #{network_forward.1} parent=11 // pred_check
          %p572 = pneg %p392
        $region66: #{network_forward.1} parent=11 // pred_check_branch
          %574 = sbr.rel (%p572) target = $region68
        $region67: #{network_forward.1} parent=11 // pred_region
          %s576 = ssub.s32 128, 128
          %577 = vsyncadd [#allocation19], %s576
          %s579 = sshll.u32 [#allocation20], 4
          %s580 = int_to_ptr.vmem [resolvable:$true] %s579
          %582 = dma.hbm_to_vmem [thread:$0]  %s15, 128, %s580, [#allocation19]
        $region68: #{network_forward.1} parent=11 // pred_fallthru
          _
        // Predicated region
        $region69: #{network_forward.1} parent=11 // pred_check
          %p583 = pneg %p413
        $region70: #{network_forward.1} parent=11 // pred_check_branch
          %585 = sbr.rel (%p583) target = $region72
        $region71: #{network_forward.1} parent=11 // pred_region
          %s587 = ssub.s32 16, 16
          %588 = vsyncadd [#allocation22], %s587
          %s590 = sshll.u32 [#allocation21], 4
          %s591 = int_to_ptr.vmem [resolvable:$true] %s590
          %593 = dma.hbm_to_vmem [thread:$0]  %s16, 16, %s591, [#allocation22]
        $region72: #{network_forward.1} parent=11 // pred_fallthru
          _
        // Predicated region
        $region73: #{network_forward.1} parent=11 // pred_check
          %p594 = pneg %p434
        $region74: #{network_forward.1} parent=11 // pred_check_branch
          %596 = sbr.rel (%p594) target = $region76
        $region75: #{network_forward.1} parent=11 // pred_region
          %s598 = ssub.s32 128, 128
          %599 = vsyncadd [#allocation22], %s598
          %s601 = sshll.u32 [#allocation23], 4
          %s602 = int_to_ptr.vmem [resolvable:$true] %s601
          %604 = dma.hbm_to_vmem [thread:$0]  %s17, 128, %s602, [#allocation22]
        $region76: #{network_forward.1} parent=11 // pred_fallthru
          _
        // Predicated region
        $region77: #{network_forward.1} parent=11 // pred_check
          %p605 = pneg %p455
        $region78: #{network_forward.1} parent=11 // pred_check_branch
          %607 = sbr.rel (%p605) target = $region80
        $region79: #{network_forward.1} parent=11 // pred_region
          %s609 = ssub.s32 16, 16
          %610 = vsyncadd [#allocation25], %s609
          %s612 = sshll.u32 [#allocation24], 4
          %s613 = int_to_ptr.vmem [resolvable:$true] %s612
          %615 = dma.hbm_to_vmem [thread:$0]  %s18, 16, %s613, [#allocation25]
        $region80: #{network_forward.1} parent=11 // pred_fallthru
          _
      $region12: #{network_forward.1} parent=5 // pred_fallthru
        _
      %p616 = scmp.lt.s32.totalorder %s46, 2
      // Predicated region
      $region81: #{network_forward.1} parent=5 // pred_check
        %p617 = pneg %p616
      $region82: #{network_forward.1} parent=5 // pred_check_branch
        %619 = sbr.rel (%p617) target = $region84
      $region83: #{network_forward.1} parent=5 // pred_region
        // Predicated region
        $region85: #{network_forward.1} parent=83 // pred_check
          %p620 = pneg %p66
        $region86: #{network_forward.1} parent=83 // pred_check_branch
          %622 = sbr.rel (%p620) target = $region88
        $region87: #{network_forward.1} parent=83 // pred_region
          %s623 = smul.u32 19, %s46
          %p624 = scmp.lt.s32.totalorder %s623, 37
          %s625 = scalar_select %p624, %s623, 37
          %s626 = scalar_lea.vmem %s0, %s625
          %s627 = smul.u32 19, %s46
        $region88: #{network_forward.1} parent=83 // pred_fallthru
          _
        // Predicated region
        $region89: #{network_forward.1} parent=83 // pred_check
          %p628 = pneg %p92
        $region90: #{network_forward.1} parent=83 // pred_check_branch
          %630 = sbr.rel (%p628) target = $region92
        $region91: #{network_forward.1} parent=83 // pred_region
          %s631 = sand.u32 %s82, 1
          %s632 = scalar_lea.sflag [#allocation10], %s631
          %s633 = sand.u32 %s82, 1
          %s634 = smul.addr %s633, 9728
          %s635 = scalar_lea.vmem [#allocation9], %s634
          %s636 = smul.u32 304, %s46
          %s638 = ssub.s32 155648, 155648
          %639 = vsyncadd %s632, %s638
          %s640 = smul.addr %s636, 4
          %s641 = smul.addr %s640, 128
          %s642 = scalar_lea.hbm %s1, %s641
          %s643 = sshll.u32 %s635, 4
          %s644 = int_to_ptr.vmem [resolvable:$true] %s643
          %649 = dma.hbm_to_vmem [thread:$0]  %s642, 155648, %s644, %s632, 512, 512, 32
        $region92: #{network_forward.1} parent=83 // pred_fallthru
          _
      $region84: #{network_forward.1} parent=5 // pred_fallthru
        _
      %p650 = scmp.le.s32.totalorder 1, %s46
      %p651 = scmp.lt.s32.totalorder %s46, 3
      %p652 = pnand %p650, %p651
      %p653 = pneg %p652
      // Predicated region
      $region93: #{network_forward.1} parent=5 // pred_check
        _
      $region94: #{network_forward.1} parent=5 // pred_check_branch
        %655 = sbr.rel (%p652) target = $region96
      $region95: #{network_forward.1} parent=5 // pred_region
        %s656 = ssub.s32 %s46, 1
        %s657 = sand.u32 %s85, 1
        %s658 = scalar_lea.sflag [#allocation10], %s657
        %s659 = sand.u32 %s85, 1
        %s660 = smul.addr %s659, 9728
        %s661 = scalar_lea.vmem [#allocation9], %s660
        // Predicated region
        $region97: #{network_forward.1} parent=95 // pred_check
          %p662 = pneg %p98
        $region98: #{network_forward.1} parent=95 // pred_check_branch
          %664 = sbr.rel (%p662) target = $region100
        $region99: #{network_forward.1} parent=95 // pred_region
          %665 = dma.done %s658, 155648
        $region100: #{network_forward.1} parent=95 // pred_fallthru
          _
        // Predicated region
        $region101: #{network_forward.1} parent=95 // pred_check
          %p666 = pneg %p119
        $region102: #{network_forward.1} parent=95 // pred_check_branch
          %668 = sbr.rel (%p666) target = $region104
        $region103: #{network_forward.1} parent=95 // pred_region
          %669 = dma.done [#allocation13], 64
        $region104: #{network_forward.1} parent=95 // pred_fallthru
          _
        // Predicated region
        $region105: #{network_forward.1} parent=95 // pred_check
          %p670 = pneg %p182
        $region106: #{network_forward.1} parent=95 // pred_check_branch
          %672 = sbr.rel (%p670) target = $region108
        $region107: #{network_forward.1} parent=95 // pred_region
          %673 = dma.done [#allocation13], 8192
        $region108: #{network_forward.1} parent=95 // pred_fallthru
          _
        // Predicated region
        $region109: #{network_forward.1} parent=95 // pred_check
          %p674 = pneg %p203
        $region110: #{network_forward.1} parent=95 // pred_check_branch
          %676 = sbr.rel (%p674) target = $region112
        $region111: #{network_forward.1} parent=95 // pred_region
          %677 = dma.done [#allocation16], 16
        $region112: #{network_forward.1} parent=95 // pred_fallthru
          _
        // Predicated region
        $region113: #{network_forward.1} parent=95 // pred_check
          %p678 = pneg %p287
        $region114: #{network_forward.1} parent=95 // pred_check_branch
          %680 = sbr.rel (%p678) target = $region116
        $region115: #{network_forward.1} parent=95 // pred_region
          %681 = dma.done [#allocation16], 16
        $region116: #{network_forward.1} parent=95 // pred_fallthru
          _
        // Predicated region
        $region117: #{network_forward.1} parent=95 // pred_check
          %p682 = pneg %p371
        $region118: #{network_forward.1} parent=95 // pred_check_branch
          %684 = sbr.rel (%p682) target = $region120
        $region119: #{network_forward.1} parent=95 // pred_region
          %685 = dma.done [#allocation19], 16
        $region120: #{network_forward.1} parent=95 // pred_fallthru
          _
        // Predicated region
        $region121: #{network_forward.1} parent=95 // pred_check
          %p686 = pneg %p392
        $region122: #{network_forward.1} parent=95 // pred_check_branch
          %688 = sbr.rel (%p686) target = $region124
        $region123: #{network_forward.1} parent=95 // pred_region
          %689 = dma.done [#allocation19], 128
        $region124: #{network_forward.1} parent=95 // pred_fallthru
          _
        // Predicated region
        $region125: #{network_forward.1} parent=95 // pred_check
          %p690 = pneg %p413
        $region126: #{network_forward.1} parent=95 // pred_check_branch
          %692 = sbr.rel (%p690) target = $region128
        $region127: #{network_forward.1} parent=95 // pred_region
          %693 = dma.done [#allocation22], 16
        $region128: #{network_forward.1} parent=95 // pred_fallthru
          _
        // Predicated region
        $region129: #{network_forward.1} parent=95 // pred_check
          %p694 = pneg %p434
        $region130: #{network_forward.1} parent=95 // pred_check_branch
          %696 = sbr.rel (%p694) target = $region132
        $region131: #{network_forward.1} parent=95 // pred_region
          %697 = dma.done [#allocation22], 128
        $region132: #{network_forward.1} parent=95 // pred_fallthru
          _
        // Predicated region
        $region133: #{network_forward.1} parent=95 // pred_check
          %p698 = pneg %p455
        $region134: #{network_forward.1} parent=95 // pred_check_branch
          %700 = sbr.rel (%p698) target = $region136
        $region135: #{network_forward.1} parent=95 // pred_region
          %701 = dma.done [#allocation25], 16
        $region136: #{network_forward.1} parent=95 // pred_fallthru
          _
        %s702 = smul.u32 19, %s51
        %p703 = scmp.lt.s32.totalorder %s702, 37
        %s704 = scalar_select %p703, %s702, 37
        %s705 = scalar_lea.vmem %s0, %s704
        %p706 = pneg %p72
        %p707 = pneg %p69
        %s708 = sand.u32 %s85, 1
        %s709 = scalar_lea.sflag [#allocation10], %s708
        %s710 = sand.u32 %s85, 1
        %s711 = smul.addr %s710, 9728
        %s712 = scalar_lea.vmem [#allocation9], %s711
        %p713 = pneg %p98
        %p714 = pneg %p95
        %p715 = pneg %p119
        %p716 = pneg %p116
        %p717 = pneg %p140
        %p718 = pneg %p137
        %p719 = pneg %p161
        %p720 = pneg %p158
        %p721 = pneg %p182
        %p722 = pneg %p179
        %p723 = pneg %p203
        %p724 = pneg %p200
        %p725 = pneg %p224
        %p726 = pneg %p221
        %p727 = pneg %p245
        %p728 = pneg %p242
        %p729 = pneg %p266
        %p730 = pneg %p263
        %p731 = pneg %p287
        %p732 = pneg %p284
        %p733 = pneg %p308
        %p734 = pneg %p305
        %p735 = pneg %p329
        %p736 = pneg %p326
        %p737 = pneg %p350
        %p738 = pneg %p347
        %p739 = pneg %p371
        %p740 = pneg %p368
        %p741 = pneg %p392
        %p742 = pneg %p389
        %p743 = pneg %p413
        %p744 = pneg %p410
        %p745 = pneg %p434
        %p746 = pneg %p431
        %p747 = pneg %p455
        %p748 = pneg %p452
        %p749 = pneg %p476
        %p750 = pneg %p473
        %s751 = smul.u32 19, %s51
        %p752 = scmp.lt.s32.totalorder %s751, 37
        %s753 = scalar_select %p752, %s751, 37
        %s754 = scalar_lea.vmem %s0, %s753
        %s755 = smul.u32 19, %s51
        %s756 = smul.u32 304, %s51
        %p757 = scmp.eq.s32.totalorder %s51, 0
        // Predicated region
        $region137: #{network_forward.1} parent=95 // pred_check
          %p758 = pneg %p757
        $region138: #{network_forward.1} parent=95 // pred_check_branch
          %760 = sbr.rel (%p758) target = $region140
        $region139: #{network_forward.1} parent=95 // pred_region
          %v761 = vlaneseq
          %vm762 = vcmp.ge.s32.totalorder %v761, 0
          %vm763 = vcmp.lt.s32.totalorder %v761, 512
          %vm764 = vmand %vm762, %vm763
          %765 = vst.msk [vmem:[#allocation2] sm:$0xf] %vm764, 0.0
        $region140: #{network_forward.1} parent=95 // pred_fallthru
          _
        %v766 = vld [vmem:[#allocation2] sm:$0xf]
        %v767 = vld [vmem:[%s754] sm:$0xff]
        %v768 = vld [vmem:[%s754 + $0x8] sm:$0xff]
        %v769 = vld [vmem:[%s754 + $0x10] sm:$0x7]
        %v770 = vld [vmem:[%s661] sm:$0xff]
        %v771 = vld [vmem:[%s661 + $0x8] sm:$0xff]
        %v772 = vld [vmem:[%s661 + $0x10] sm:$0xff]
        %v773 = vld [vmem:[%s661 + $0x18] sm:$0xff]
        %v774 = vld [vmem:[%s661 + $0x20] sm:$0xff]
        %v775 = vld [vmem:[%s661 + $0x28] sm:$0xff]
        %v776 = vld [vmem:[%s661 + $0x30] sm:$0xff]
        %v777 = vld [vmem:[%s661 + $0x38] sm:$0xff]
        %v778 = vld [vmem:[%s661 + $0x40] sm:$0xff]
        %v779 = vld [vmem:[%s661 + $0x48] sm:$0xff]
        %v780 = vld [vmem:[%s661 + $0x50] sm:$0xff]
        %v781 = vld [vmem:[%s661 + $0x58] sm:$0xff]
        %v782 = vld [vmem:[%s661 + $0x60] sm:$0xff]
        %v783 = vld [vmem:[%s661 + $0x68] sm:$0xff]
        %v784 = vld [vmem:[%s661 + $0x70] sm:$0xff]
        %v785 = vld [vmem:[%s661 + $0x78] sm:$0xff]
        %v786 = vld [vmem:[%s661 + $0x80] sm:$0xff]
        %v787 = vld [vmem:[%s661 + $0x88] sm:$0xff]
        %v788 = vld [vmem:[%s661 + $0x90] sm:$0xff]
        %v789 = vld [vmem:[%s661 + $0x98] sm:$0xff]
        %v790 = vld [vmem:[%s661 + $0xa0] sm:$0xff]
        %v791 = vld [vmem:[%s661 + $0xa8] sm:$0xff]
        %v792 = vld [vmem:[%s661 + $0xb0] sm:$0xff]
        %v793 = vld [vmem:[%s661 + $0xb8] sm:$0xff]
        %v794 = vld [vmem:[%s661 + $0xc0] sm:$0xff]
        %v795 = vld [vmem:[%s661 + $0xc8] sm:$0xff]
        %v796 = vld [vmem:[%s661 + $0xd0] sm:$0xff]
        %v797 = vld [vmem:[%s661 + $0xd8] sm:$0xff]
        %v798 = vld [vmem:[%s661 + $0xe0] sm:$0xff]
        %v799 = vld [vmem:[%s661 + $0xe8] sm:$0xff]
        %v800 = vld [vmem:[%s661 + $0xf0] sm:$0xff]
        %v801 = vld [vmem:[%s661 + $0xf8] sm:$0xff]
        %v802 = vld [vmem:[%s661 + $0x100] sm:$0xff]
        %v803 = vld [vmem:[%s661 + $0x108] sm:$0xff]
        %v804 = vld [vmem:[%s661 + $0x110] sm:$0xff]
        %v805 = vld [vmem:[%s661 + $0x118] sm:$0xff]
        %v806 = vld [vmem:[%s661 + $0x120] sm:$0xff]
        %v807 = vld [vmem:[%s661 + $0x128] sm:$0xff]
        %v808 = vld [vmem:[%s661 + $0x130] sm:$0xff]
        %v809 = vld [vmem:[%s661 + $0x138] sm:$0xff]
        %v810 = vld [vmem:[%s661 + $0x140] sm:$0xff]
        %v811 = vld [vmem:[%s661 + $0x148] sm:$0xff]
        %v812 = vld [vmem:[%s661 + $0x150] sm:$0xff]
        %v813 = vld [vmem:[%s661 + $0x158] sm:$0xff]
        %v814 = vld [vmem:[%s661 + $0x160] sm:$0xff]
        %v815 = vld [vmem:[%s661 + $0x168] sm:$0xff]
        %v816 = vld [vmem:[%s661 + $0x170] sm:$0xff]
        %v817 = vld [vmem:[%s661 + $0x178] sm:$0xff]
        %v818 = vld [vmem:[%s661 + $0x180] sm:$0xff]
        %v819 = vld [vmem:[%s661 + $0x188] sm:$0xff]
        %v820 = vld [vmem:[%s661 + $0x190] sm:$0xff]
        %v821 = vld [vmem:[%s661 + $0x198] sm:$0xff]
        %v822 = vld [vmem:[%s661 + $0x1a0] sm:$0xff]
        %v823 = vld [vmem:[%s661 + $0x1a8] sm:$0xff]
        %v824 = vld [vmem:[%s661 + $0x1b0] sm:$0xff]
        %v825 = vld [vmem:[%s661 + $0x1b8] sm:$0xff]
        %v826 = vld [vmem:[%s661 + $0x1c0] sm:$0xff]
        %v827 = vld [vmem:[%s661 + $0x1c8] sm:$0xff]
        %v828 = vld [vmem:[%s661 + $0x1d0] sm:$0xff]
        %v829 = vld [vmem:[%s661 + $0x1d8] sm:$0xff]
        %v830 = vld [vmem:[%s661 + $0x1e0] sm:$0xff]
        %v831 = vld [vmem:[%s661 + $0x1e8] sm:$0xff]
        %v832 = vld [vmem:[%s661 + $0x1f0] sm:$0xff]
        %v833 = vld [vmem:[%s661 + $0x1f8] sm:$0xff]
        %v834 = vld [vmem:[%s661 + $0x200] sm:$0xff]
        %v835 = vld [vmem:[%s661 + $0x208] sm:$0xff]
        %v836 = vld [vmem:[%s661 + $0x210] sm:$0xff]
        %v837 = vld [vmem:[%s661 + $0x218] sm:$0xff]
        %v838 = vld [vmem:[%s661 + $0x220] sm:$0xff]
        %v839 = vld [vmem:[%s661 + $0x228] sm:$0xff]
        %v840 = vld [vmem:[%s661 + $0x230] sm:$0xff]
        %v841 = vld [vmem:[%s661 + $0x238] sm:$0xff]
        %v842 = vld [vmem:[%s661 + $0x240] sm:$0xff]
        %v843 = vld [vmem:[%s661 + $0x248] sm:$0xff]
        %v844 = vld [vmem:[%s661 + $0x250] sm:$0xff]
        %v845 = vld [vmem:[%s661 + $0x258] sm:$0xff]
        %v846 = vld [vmem:[%s661 + $0x260] sm:$0xff]
        %v847 = vld [vmem:[%s661 + $0x268] sm:$0xff]
        %v848 = vld [vmem:[%s661 + $0x270] sm:$0xff]
        %v849 = vld [vmem:[%s661 + $0x278] sm:$0xff]
        %v850 = vld [vmem:[%s661 + $0x280] sm:$0xff]
        %v851 = vld [vmem:[%s661 + $0x288] sm:$0xff]
        %v852 = vld [vmem:[%s661 + $0x290] sm:$0xff]
        %v853 = vld [vmem:[%s661 + $0x298] sm:$0xff]
        %v854 = vld [vmem:[%s661 + $0x2a0] sm:$0xff]
        %v855 = vld [vmem:[%s661 + $0x2a8] sm:$0xff]
        %v856 = vld [vmem:[%s661 + $0x2b0] sm:$0xff]
        %v857 = vld [vmem:[%s661 + $0x2b8] sm:$0xff]
        %v858 = vld [vmem:[%s661 + $0x2c0] sm:$0xff]
        %v859 = vld [vmem:[%s661 + $0x2c8] sm:$0xff]
        %v860 = vld [vmem:[%s661 + $0x2d0] sm:$0xff]
        %v861 = vld [vmem:[%s661 + $0x2d8] sm:$0xff]
        %v862 = vld [vmem:[%s661 + $0x2e0] sm:$0xff]
        %v863 = vld [vmem:[%s661 + $0x2e8] sm:$0xff]
        %v864 = vld [vmem:[%s661 + $0x2f0] sm:$0xff]
        %v865 = vld [vmem:[%s661 + $0x2f8] sm:$0xff]
        %v866 = vld [vmem:[%s661 + $0x300] sm:$0xff]
        %v867 = vld [vmem:[%s661 + $0x308] sm:$0xff]
        %v868 = vld [vmem:[%s661 + $0x310] sm:$0xff]
        %v869 = vld [vmem:[%s661 + $0x318] sm:$0xff]
        %v870 = vld [vmem:[%s661 + $0x320] sm:$0xff]
        %v871 = vld [vmem:[%s661 + $0x328] sm:$0xff]
        %v872 = vld [vmem:[%s661 + $0x330] sm:$0xff]
        %v873 = vld [vmem:[%s661 + $0x338] sm:$0xff]
        %v874 = vld [vmem:[%s661 + $0x340] sm:$0xff]
        %v875 = vld [vmem:[%s661 + $0x348] sm:$0xff]
        %v876 = vld [vmem:[%s661 + $0x350] sm:$0xff]
        %v877 = vld [vmem:[%s661 + $0x358] sm:$0xff]
        %v878 = vld [vmem:[%s661 + $0x360] sm:$0xff]
        %v879 = vld [vmem:[%s661 + $0x368] sm:$0xff]
        %v880 = vld [vmem:[%s661 + $0x370] sm:$0xff]
        %v881 = vld [vmem:[%s661 + $0x378] sm:$0xff]
        %v882 = vld [vmem:[%s661 + $0x380] sm:$0xff]
        %v883 = vld [vmem:[%s661 + $0x388] sm:$0xff]
        %v884 = vld [vmem:[%s661 + $0x390] sm:$0xff]
        %v885 = vld [vmem:[%s661 + $0x398] sm:$0xff]
        %v886 = vld [vmem:[%s661 + $0x3a0] sm:$0xff]
        %v887 = vld [vmem:[%s661 + $0x3a8] sm:$0xff]
        %v888 = vld [vmem:[%s661 + $0x3b0] sm:$0xff]
        %v889 = vld [vmem:[%s661 + $0x3b8] sm:$0xff]
        %v890 = vld [vmem:[%s661 + $0x3c0] sm:$0xff]
        %v891 = vld [vmem:[%s661 + $0x3c8] sm:$0xff]
        %v892 = vld [vmem:[%s661 + $0x3d0] sm:$0xff]
        %v893 = vld [vmem:[%s661 + $0x3d8] sm:$0xff]
        %v894 = vld [vmem:[%s661 + $0x3e0] sm:$0xff]
        %v895 = vld [vmem:[%s661 + $0x3e8] sm:$0xff]
        %v896 = vld [vmem:[%s661 + $0x3f0] sm:$0xff]
        %v897 = vld [vmem:[%s661 + $0x3f8] sm:$0xff]
        %v898 = vld [vmem:[%s661 + $0x400] sm:$0xff]
        %v899 = vld [vmem:[%s661 + $0x408] sm:$0xff]
        %v900 = vld [vmem:[%s661 + $0x410] sm:$0xff]
        %v901 = vld [vmem:[%s661 + $0x418] sm:$0xff]
        %v902 = vld [vmem:[%s661 + $0x420] sm:$0xff]
        %v903 = vld [vmem:[%s661 + $0x428] sm:$0xff]
        %v904 = vld [vmem:[%s661 + $0x430] sm:$0xff]
        %v905 = vld [vmem:[%s661 + $0x438] sm:$0xff]
        %v906 = vld [vmem:[%s661 + $0x440] sm:$0xff]
        %v907 = vld [vmem:[%s661 + $0x448] sm:$0xff]
        %v908 = vld [vmem:[%s661 + $0x450] sm:$0xff]
        %v909 = vld [vmem:[%s661 + $0x458] sm:$0xff]
        %v910 = vld [vmem:[%s661 + $0x460] sm:$0xff]
        %v911 = vld [vmem:[%s661 + $0x468] sm:$0xff]
        %v912 = vld [vmem:[%s661 + $0x470] sm:$0xff]
        %v913 = vld [vmem:[%s661 + $0x478] sm:$0xff]
        %v914 = vld [vmem:[%s661 + $0x480] sm:$0xff]
        %v915 = vld [vmem:[%s661 + $0x488] sm:$0xff]
        %v916 = vld [vmem:[%s661 + $0x490] sm:$0xff]
        %v917 = vld [vmem:[%s661 + $0x498] sm:$0xff]
        %v918 = vld [vmem:[%s661 + $0x4a0] sm:$0xff]
        %v919 = vld [vmem:[%s661 + $0x4a8] sm:$0xff]
        %v920 = vld [vmem:[%s661 + $0x4b0] sm:$0xff]
        %v921 = vld [vmem:[%s661 + $0x4b8] sm:$0xff]
        %v922 = vld [vmem:[%s661 + $0x4c0] sm:$0xff]
        %v923 = vld [vmem:[%s661 + $0x4c8] sm:$0xff]
        %v924 = vld [vmem:[%s661 + $0x4d0] sm:$0xff]
        %v925 = vld [vmem:[%s661 + $0x4d8] sm:$0xff]
        %v926 = vld [vmem:[%s661 + $0x4e0] sm:$0xff]
        %v927 = vld [vmem:[%s661 + $0x4e8] sm:$0xff]
        %v928 = vld [vmem:[%s661 + $0x4f0] sm:$0xff]
        %v929 = vld [vmem:[%s661 + $0x4f8] sm:$0xff]
        %v930 = vld [vmem:[%s661 + $0x500] sm:$0xff]
        %v931 = vld [vmem:[%s661 + $0x508] sm:$0xff]
        %v932 = vld [vmem:[%s661 + $0x510] sm:$0xff]
        %v933 = vld [vmem:[%s661 + $0x518] sm:$0xff]
        %v934 = vld [vmem:[%s661 + $0x520] sm:$0xff]
        %v935 = vld [vmem:[%s661 + $0x528] sm:$0xff]
        %v936 = vld [vmem:[%s661 + $0x530] sm:$0xff]
        %v937 = vld [vmem:[%s661 + $0x538] sm:$0xff]
        %v938 = vld [vmem:[%s661 + $0x540] sm:$0xff]
        %v939 = vld [vmem:[%s661 + $0x548] sm:$0xff]
        %v940 = vld [vmem:[%s661 + $0x550] sm:$0xff]
        %v941 = vld [vmem:[%s661 + $0x558] sm:$0xff]
        %v942 = vld [vmem:[%s661 + $0x560] sm:$0xff]
        %v943 = vld [vmem:[%s661 + $0x568] sm:$0xff]
        %v944 = vld [vmem:[%s661 + $0x570] sm:$0xff]
        %v945 = vld [vmem:[%s661 + $0x578] sm:$0xff]
        %v946 = vld [vmem:[%s661 + $0x580] sm:$0xff]
        %v947 = vld [vmem:[%s661 + $0x588] sm:$0xff]
        %v948 = vld [vmem:[%s661 + $0x590] sm:$0xff]
        %v949 = vld [vmem:[%s661 + $0x598] sm:$0xff]
        %v950 = vld [vmem:[%s661 + $0x5a0] sm:$0xff]
        %v951 = vld [vmem:[%s661 + $0x5a8] sm:$0xff]
        %v952 = vld [vmem:[%s661 + $0x5b0] sm:$0xff]
        %v953 = vld [vmem:[%s661 + $0x5b8] sm:$0xff]
        %v954 = vld [vmem:[%s661 + $0x5c0] sm:$0xff]
        %v955 = vld [vmem:[%s661 + $0x5c8] sm:$0xff]
        %v956 = vld [vmem:[%s661 + $0x5d0] sm:$0xff]
        %v957 = vld [vmem:[%s661 + $0x5d8] sm:$0xff]
        %v958 = vld [vmem:[%s661 + $0x5e0] sm:$0xff]
        %v959 = vld [vmem:[%s661 + $0x5e8] sm:$0xff]
        %v960 = vld [vmem:[%s661 + $0x5f0] sm:$0xff]
        %v961 = vld [vmem:[%s661 + $0x5f8] sm:$0xff]
        %v962 = vld [vmem:[%s661 + $0x600] sm:$0xff]
        %v963 = vld [vmem:[%s661 + $0x608] sm:$0xff]
        %v964 = vld [vmem:[%s661 + $0x610] sm:$0xff]
        %v965 = vld [vmem:[%s661 + $0x618] sm:$0xff]
        %v966 = vld [vmem:[%s661 + $0x620] sm:$0xff]
        %v967 = vld [vmem:[%s661 + $0x628] sm:$0xff]
        %v968 = vld [vmem:[%s661 + $0x630] sm:$0xff]
        %v969 = vld [vmem:[%s661 + $0x638] sm:$0xff]
        %v970 = vld [vmem:[%s661 + $0x640] sm:$0xff]
        %v971 = vld [vmem:[%s661 + $0x648] sm:$0xff]
        %v972 = vld [vmem:[%s661 + $0x650] sm:$0xff]
        %v973 = vld [vmem:[%s661 + $0x658] sm:$0xff]
        %v974 = vld [vmem:[%s661 + $0x660] sm:$0xff]
        %v975 = vld [vmem:[%s661 + $0x668] sm:$0xff]
        %v976 = vld [vmem:[%s661 + $0x670] sm:$0xff]
        %v977 = vld [vmem:[%s661 + $0x678] sm:$0xff]
        %v978 = vld [vmem:[%s661 + $0x680] sm:$0xff]
        %v979 = vld [vmem:[%s661 + $0x688] sm:$0xff]
        %v980 = vld [vmem:[%s661 + $0x690] sm:$0xff]
        %v981 = vld [vmem:[%s661 + $0x698] sm:$0xff]
        %v982 = vld [vmem:[%s661 + $0x6a0] sm:$0xff]
        %v983 = vld [vmem:[%s661 + $0x6a8] sm:$0xff]
        %v984 = vld [vmem:[%s661 + $0x6b0] sm:$0xff]
        %v985 = vld [vmem:[%s661 + $0x6b8] sm:$0xff]
        %v986 = vld [vmem:[%s661 + $0x6c0] sm:$0xff]
        %v987 = vld [vmem:[%s661 + $0x6c8] sm:$0xff]
        %v988 = vld [vmem:[%s661 + $0x6d0] sm:$0xff]
        %v989 = vld [vmem:[%s661 + $0x6d8] sm:$0xff]
        %v990 = vld [vmem:[%s661 + $0x6e0] sm:$0xff]
        %v991 = vld [vmem:[%s661 + $0x6e8] sm:$0xff]
        %v992 = vld [vmem:[%s661 + $0x6f0] sm:$0xff]
        %v993 = vld [vmem:[%s661 + $0x6f8] sm:$0xff]
        %v994 = vld [vmem:[%s661 + $0x700] sm:$0xff]
        %v995 = vld [vmem:[%s661 + $0x708] sm:$0xff]
        %v996 = vld [vmem:[%s661 + $0x710] sm:$0xff]
        %v997 = vld [vmem:[%s661 + $0x718] sm:$0xff]
        %v998 = vld [vmem:[%s661 + $0x720] sm:$0xff]
        %v999 = vld [vmem:[%s661 + $0x728] sm:$0xff]
        %v1000 = vld [vmem:[%s661 + $0x730] sm:$0xff]
        %v1001 = vld [vmem:[%s661 + $0x738] sm:$0xff]
        %v1002 = vld [vmem:[%s661 + $0x740] sm:$0xff]
        %v1003 = vld [vmem:[%s661 + $0x748] sm:$0xff]
        %v1004 = vld [vmem:[%s661 + $0x750] sm:$0xff]
        %v1005 = vld [vmem:[%s661 + $0x758] sm:$0xff]
        %v1006 = vld [vmem:[%s661 + $0x760] sm:$0xff]
        %v1007 = vld [vmem:[%s661 + $0x768] sm:$0xff]
        %v1008 = vld [vmem:[%s661 + $0x770] sm:$0xff]
        %v1009 = vld [vmem:[%s661 + $0x778] sm:$0xff]
        %v1010 = vld [vmem:[%s661 + $0x780] sm:$0xff]
        %v1011 = vld [vmem:[%s661 + $0x788] sm:$0xff]
        %v1012 = vld [vmem:[%s661 + $0x790] sm:$0xff]
        %v1013 = vld [vmem:[%s661 + $0x798] sm:$0xff]
        %v1014 = vld [vmem:[%s661 + $0x7a0] sm:$0xff]
        %v1015 = vld [vmem:[%s661 + $0x7a8] sm:$0xff]
        %v1016 = vld [vmem:[%s661 + $0x7b0] sm:$0xff]
        %v1017 = vld [vmem:[%s661 + $0x7b8] sm:$0xff]
        %v1018 = vld [vmem:[%s661 + $0x7c0] sm:$0xff]
        %v1019 = vld [vmem:[%s661 + $0x7c8] sm:$0xff]
        %v1020 = vld [vmem:[%s661 + $0x7d0] sm:$0xff]
        %v1021 = vld [vmem:[%s661 + $0x7d8] sm:$0xff]
        %v1022 = vld [vmem:[%s661 + $0x7e0] sm:$0xff]
        %v1023 = vld [vmem:[%s661 + $0x7e8] sm:$0xff]
        %v1024 = vld [vmem:[%s661 + $0x7f0] sm:$0xff]
        %v1025 = vld [vmem:[%s661 + $0x7f8] sm:$0xff]
        %v1026 = vld [vmem:[%s661 + $0x800] sm:$0xff]
        %v1027 = vld [vmem:[%s661 + $0x808] sm:$0xff]
        %v1028 = vld [vmem:[%s661 + $0x810] sm:$0xff]
        %v1029 = vld [vmem:[%s661 + $0x818] sm:$0xff]
        %v1030 = vld [vmem:[%s661 + $0x820] sm:$0xff]
        %v1031 = vld [vmem:[%s661 + $0x828] sm:$0xff]
        %v1032 = vld [vmem:[%s661 + $0x830] sm:$0xff]
        %v1033 = vld [vmem:[%s661 + $0x838] sm:$0xff]
        %v1034 = vld [vmem:[%s661 + $0x840] sm:$0xff]
        %v1035 = vld [vmem:[%s661 + $0x848] sm:$0xff]
        %v1036 = vld [vmem:[%s661 + $0x850] sm:$0xff]
        %v1037 = vld [vmem:[%s661 + $0x858] sm:$0xff]
        %v1038 = vld [vmem:[%s661 + $0x860] sm:$0xff]
        %v1039 = vld [vmem:[%s661 + $0x868] sm:$0xff]
        %v1040 = vld [vmem:[%s661 + $0x870] sm:$0xff]
        %v1041 = vld [vmem:[%s661 + $0x878] sm:$0xff]
        %v1042 = vld [vmem:[%s661 + $0x880] sm:$0xff]
        %v1043 = vld [vmem:[%s661 + $0x888] sm:$0xff]
        %v1044 = vld [vmem:[%s661 + $0x890] sm:$0xff]
        %v1045 = vld [vmem:[%s661 + $0x898] sm:$0xff]
        %v1046 = vld [vmem:[%s661 + $0x8a0] sm:$0xff]
        %v1047 = vld [vmem:[%s661 + $0x8a8] sm:$0xff]
        %v1048 = vld [vmem:[%s661 + $0x8b0] sm:$0xff]
        %v1049 = vld [vmem:[%s661 + $0x8b8] sm:$0xff]
        %v1050 = vld [vmem:[%s661 + $0x8c0] sm:$0xff]
        %v1051 = vld [vmem:[%s661 + $0x8c8] sm:$0xff]
        %v1052 = vld [vmem:[%s661 + $0x8d0] sm:$0xff]
        %v1053 = vld [vmem:[%s661 + $0x8d8] sm:$0xff]
        %v1054 = vld [vmem:[%s661 + $0x8e0] sm:$0xff]
        %v1055 = vld [vmem:[%s661 + $0x8e8] sm:$0xff]
        %v1056 = vld [vmem:[%s661 + $0x8f0] sm:$0xff]
        %v1057 = vld [vmem:[%s661 + $0x8f8] sm:$0xff]
        %v1058 = vld [vmem:[%s661 + $0x900] sm:$0xff]
        %v1059 = vld [vmem:[%s661 + $0x908] sm:$0xff]
        %v1060 = vld [vmem:[%s661 + $0x910] sm:$0xff]
        %v1061 = vld [vmem:[%s661 + $0x918] sm:$0xff]
        %v1062 = vld [vmem:[%s661 + $0x920] sm:$0xff]
        %v1063 = vld [vmem:[%s661 + $0x928] sm:$0xff]
        %v1064 = vld [vmem:[%s661 + $0x930] sm:$0xff]
        %v1065 = vld [vmem:[%s661 + $0x938] sm:$0xff]
        %v1066 = vld [vmem:[%s661 + $0x940] sm:$0xff]
        %v1067 = vld [vmem:[%s661 + $0x948] sm:$0xff]
        %v1068 = vld [vmem:[%s661 + $0x950] sm:$0xff]
        %v1069 = vld [vmem:[%s661 + $0x958] sm:$0xff]
        %v1070 = vld [vmem:[%s661 + $0x960] sm:$0xff]
        %v1071 = vld [vmem:[%s661 + $0x968] sm:$0xff]
        %v1072 = vld [vmem:[%s661 + $0x970] sm:$0xff]
        %v1073 = vld [vmem:[%s661 + $0x978] sm:$0xff]
        %v1074 = vld [vmem:[%s661 + $0x980] sm:$0xff]
        %v1075 = vld [vmem:[%s661 + $0x988] sm:$0xff]
        %v1076 = vld [vmem:[%s661 + $0x990] sm:$0xff]
        %v1077 = vld [vmem:[%s661 + $0x998] sm:$0xff]
        %v1078 = vld [vmem:[%s661 + $0x9a0] sm:$0xff]
        %v1079 = vld [vmem:[%s661 + $0x9a8] sm:$0xff]
        %v1080 = vld [vmem:[%s661 + $0x9b0] sm:$0xff]
        %v1081 = vld [vmem:[%s661 + $0x9b8] sm:$0xff]
        %v1082 = vld [vmem:[%s661 + $0x9c0] sm:$0xff]
        %v1083 = vld [vmem:[%s661 + $0x9c8] sm:$0xff]
        %v1084 = vld [vmem:[%s661 + $0x9d0] sm:$0xff]
        %v1085 = vld [vmem:[%s661 + $0x9d8] sm:$0xff]
        %v1086 = vld [vmem:[%s661 + $0x9e0] sm:$0xff]
        %v1087 = vld [vmem:[%s661 + $0x9e8] sm:$0xff]
        %v1088 = vld [vmem:[%s661 + $0x9f0] sm:$0xff]
        %v1089 = vld [vmem:[%s661 + $0x9f8] sm:$0xff]
        %v1090 = vld [vmem:[%s661 + $0xa00] sm:$0xff]
        %v1091 = vld [vmem:[%s661 + $0xa08] sm:$0xff]
        %v1092 = vld [vmem:[%s661 + $0xa10] sm:$0xff]
        %v1093 = vld [vmem:[%s661 + $0xa18] sm:$0xff]
        %v1094 = vld [vmem:[%s661 + $0xa20] sm:$0xff]
        %v1095 = vld [vmem:[%s661 + $0xa28] sm:$0xff]
        %v1096 = vld [vmem:[%s661 + $0xa30] sm:$0xff]
        %v1097 = vld [vmem:[%s661 + $0xa38] sm:$0xff]
        %v1098 = vld [vmem:[%s661 + $0xa40] sm:$0xff]
        %v1099 = vld [vmem:[%s661 + $0xa48] sm:$0xff]
        %v1100 = vld [vmem:[%s661 + $0xa50] sm:$0xff]
        %v1101 = vld [vmem:[%s661 + $0xa58] sm:$0xff]
        %v1102 = vld [vmem:[%s661 + $0xa60] sm:$0xff]
        %v1103 = vld [vmem:[%s661 + $0xa68] sm:$0xff]
        %v1104 = vld [vmem:[%s661 + $0xa70] sm:$0xff]
        %v1105 = vld [vmem:[%s661 + $0xa78] sm:$0xff]
        %v1106 = vld [vmem:[%s661 + $0xa80] sm:$0xff]
        %v1107 = vld [vmem:[%s661 + $0xa88] sm:$0xff]
        %v1108 = vld [vmem:[%s661 + $0xa90] sm:$0xff]
        %v1109 = vld [vmem:[%s661 + $0xa98] sm:$0xff]
        %v1110 = vld [vmem:[%s661 + $0xaa0] sm:$0xff]
        %v1111 = vld [vmem:[%s661 + $0xaa8] sm:$0xff]
        %v1112 = vld [vmem:[%s661 + $0xab0] sm:$0xff]
        %v1113 = vld [vmem:[%s661 + $0xab8] sm:$0xff]
        %v1114 = vld [vmem:[%s661 + $0xac0] sm:$0xff]
        %v1115 = vld [vmem:[%s661 + $0xac8] sm:$0xff]
        %v1116 = vld [vmem:[%s661 + $0xad0] sm:$0xff]
        %v1117 = vld [vmem:[%s661 + $0xad8] sm:$0xff]
        %v1118 = vld [vmem:[%s661 + $0xae0] sm:$0xff]
        %v1119 = vld [vmem:[%s661 + $0xae8] sm:$0xff]
        %v1120 = vld [vmem:[%s661 + $0xaf0] sm:$0xff]
        %v1121 = vld [vmem:[%s661 + $0xaf8] sm:$0xff]
        %v1122 = vld [vmem:[%s661 + $0xb00] sm:$0xff]
        %v1123 = vld [vmem:[%s661 + $0xb08] sm:$0xff]
        %v1124 = vld [vmem:[%s661 + $0xb10] sm:$0xff]
        %v1125 = vld [vmem:[%s661 + $0xb18] sm:$0xff]
        %v1126 = vld [vmem:[%s661 + $0xb20] sm:$0xff]
        %v1127 = vld [vmem:[%s661 + $0xb28] sm:$0xff]
        %v1128 = vld [vmem:[%s661 + $0xb30] sm:$0xff]
        %v1129 = vld [vmem:[%s661 + $0xb38] sm:$0xff]
        %v1130 = vld [vmem:[%s661 + $0xb40] sm:$0xff]
        %v1131 = vld [vmem:[%s661 + $0xb48] sm:$0xff]
        %v1132 = vld [vmem:[%s661 + $0xb50] sm:$0xff]
        %v1133 = vld [vmem:[%s661 + $0xb58] sm:$0xff]
        %v1134 = vld [vmem:[%s661 + $0xb60] sm:$0xff]
        %v1135 = vld [vmem:[%s661 + $0xb68] sm:$0xff]
        %v1136 = vld [vmem:[%s661 + $0xb70] sm:$0xff]
        %v1137 = vld [vmem:[%s661 + $0xb78] sm:$0xff]
        %v1138 = vld [vmem:[%s661 + $0xb80] sm:$0xff]
        %v1139 = vld [vmem:[%s661 + $0xb88] sm:$0xff]
        %v1140 = vld [vmem:[%s661 + $0xb90] sm:$0xff]
        %v1141 = vld [vmem:[%s661 + $0xb98] sm:$0xff]
        %v1142 = vld [vmem:[%s661 + $0xba0] sm:$0xff]
        %v1143 = vld [vmem:[%s661 + $0xba8] sm:$0xff]
        %v1144 = vld [vmem:[%s661 + $0xbb0] sm:$0xff]
        %v1145 = vld [vmem:[%s661 + $0xbb8] sm:$0xff]
        %v1146 = vld [vmem:[%s661 + $0xbc0] sm:$0xff]
        %v1147 = vld [vmem:[%s661 + $0xbc8] sm:$0xff]
        %v1148 = vld [vmem:[%s661 + $0xbd0] sm:$0xff]
        %v1149 = vld [vmem:[%s661 + $0xbd8] sm:$0xff]
        %v1150 = vld [vmem:[%s661 + $0xbe0] sm:$0xff]
        %v1151 = vld [vmem:[%s661 + $0xbe8] sm:$0xff]
        %v1152 = vld [vmem:[%s661 + $0xbf0] sm:$0xff]
        %v1153 = vld [vmem:[%s661 + $0xbf8] sm:$0xff]
        %v1154 = vld [vmem:[%s661 + $0xc00] sm:$0xff]
        %v1155 = vld [vmem:[%s661 + $0xc08] sm:$0xff]
        %v1156 = vld [vmem:[%s661 + $0xc10] sm:$0xff]
        %v1157 = vld [vmem:[%s661 + $0xc18] sm:$0xff]
        %v1158 = vld [vmem:[%s661 + $0xc20] sm:$0xff]
        %v1159 = vld [vmem:[%s661 + $0xc28] sm:$0xff]
        %v1160 = vld [vmem:[%s661 + $0xc30] sm:$0xff]
        %v1161 = vld [vmem:[%s661 + $0xc38] sm:$0xff]
        %v1162 = vld [vmem:[%s661 + $0xc40] sm:$0xff]
        %v1163 = vld [vmem:[%s661 + $0xc48] sm:$0xff]
        %v1164 = vld [vmem:[%s661 + $0xc50] sm:$0xff]
        %v1165 = vld [vmem:[%s661 + $0xc58] sm:$0xff]
        %v1166 = vld [vmem:[%s661 + $0xc60] sm:$0xff]
        %v1167 = vld [vmem:[%s661 + $0xc68] sm:$0xff]
        %v1168 = vld [vmem:[%s661 + $0xc70] sm:$0xff]
        %v1169 = vld [vmem:[%s661 + $0xc78] sm:$0xff]
        %v1170 = vld [vmem:[%s661 + $0xc80] sm:$0xff]
        %v1171 = vld [vmem:[%s661 + $0xc88] sm:$0xff]
        %v1172 = vld [vmem:[%s661 + $0xc90] sm:$0xff]
        %v1173 = vld [vmem:[%s661 + $0xc98] sm:$0xff]
        %v1174 = vld [vmem:[%s661 + $0xca0] sm:$0xff]
        %v1175 = vld [vmem:[%s661 + $0xca8] sm:$0xff]
        %v1176 = vld [vmem:[%s661 + $0xcb0] sm:$0xff]
        %v1177 = vld [vmem:[%s661 + $0xcb8] sm:$0xff]
        %v1178 = vld [vmem:[%s661 + $0xcc0] sm:$0xff]
        %v1179 = vld [vmem:[%s661 + $0xcc8] sm:$0xff]
        %v1180 = vld [vmem:[%s661 + $0xcd0] sm:$0xff]
        %v1181 = vld [vmem:[%s661 + $0xcd8] sm:$0xff]
        %v1182 = vld [vmem:[%s661 + $0xce0] sm:$0xff]
        %v1183 = vld [vmem:[%s661 + $0xce8] sm:$0xff]
        %v1184 = vld [vmem:[%s661 + $0xcf0] sm:$0xff]
        %v1185 = vld [vmem:[%s661 + $0xcf8] sm:$0xff]
        %v1186 = vld [vmem:[%s661 + $0xd00] sm:$0xff]
        %v1187 = vld [vmem:[%s661 + $0xd08] sm:$0xff]
        %v1188 = vld [vmem:[%s661 + $0xd10] sm:$0xff]
        %v1189 = vld [vmem:[%s661 + $0xd18] sm:$0xff]
        %v1190 = vld [vmem:[%s661 + $0xd20] sm:$0xff]
        %v1191 = vld [vmem:[%s661 + $0xd28] sm:$0xff]
        %v1192 = vld [vmem:[%s661 + $0xd30] sm:$0xff]
        %v1193 = vld [vmem:[%s661 + $0xd38] sm:$0xff]
        %v1194 = vld [vmem:[%s661 + $0xd40] sm:$0xff]
        %v1195 = vld [vmem:[%s661 + $0xd48] sm:$0xff]
        %v1196 = vld [vmem:[%s661 + $0xd50] sm:$0xff]
        %v1197 = vld [vmem:[%s661 + $0xd58] sm:$0xff]
        %v1198 = vld [vmem:[%s661 + $0xd60] sm:$0xff]
        %v1199 = vld [vmem:[%s661 + $0xd68] sm:$0xff]
        %v1200 = vld [vmem:[%s661 + $0xd70] sm:$0xff]
        %v1201 = vld [vmem:[%s661 + $0xd78] sm:$0xff]
        %v1202 = vld [vmem:[%s661 + $0xd80] sm:$0xff]
        %v1203 = vld [vmem:[%s661 + $0xd88] sm:$0xff]
        %v1204 = vld [vmem:[%s661 + $0xd90] sm:$0xff]
        %v1205 = vld [vmem:[%s661 + $0xd98] sm:$0xff]
        %v1206 = vld [vmem:[%s661 + $0xda0] sm:$0xff]
        %v1207 = vld [vmem:[%s661 + $0xda8] sm:$0xff]
        %v1208 = vld [vmem:[%s661 + $0xdb0] sm:$0xff]
        %v1209 = vld [vmem:[%s661 + $0xdb8] sm:$0xff]
        %v1210 = vld [vmem:[%s661 + $0xdc0] sm:$0xff]
        %v1211 = vld [vmem:[%s661 + $0xdc8] sm:$0xff]
        %v1212 = vld [vmem:[%s661 + $0xdd0] sm:$0xff]
        %v1213 = vld [vmem:[%s661 + $0xdd8] sm:$0xff]
        %v1214 = vld [vmem:[%s661 + $0xde0] sm:$0xff]
        %v1215 = vld [vmem:[%s661 + $0xde8] sm:$0xff]
        %v1216 = vld [vmem:[%s661 + $0xdf0] sm:$0xff]
        %v1217 = vld [vmem:[%s661 + $0xdf8] sm:$0xff]
        %v1218 = vld [vmem:[%s661 + $0xe00] sm:$0xff]
        %v1219 = vld [vmem:[%s661 + $0xe08] sm:$0xff]
        %v1220 = vld [vmem:[%s661 + $0xe10] sm:$0xff]
        %v1221 = vld [vmem:[%s661 + $0xe18] sm:$0xff]
        %v1222 = vld [vmem:[%s661 + $0xe20] sm:$0xff]
        %v1223 = vld [vmem:[%s661 + $0xe28] sm:$0xff]
        %v1224 = vld [vmem:[%s661 + $0xe30] sm:$0xff]
        %v1225 = vld [vmem:[%s661 + $0xe38] sm:$0xff]
        %v1226 = vld [vmem:[%s661 + $0xe40] sm:$0xff]
        %v1227 = vld [vmem:[%s661 + $0xe48] sm:$0xff]
        %v1228 = vld [vmem:[%s661 + $0xe50] sm:$0xff]
        %v1229 = vld [vmem:[%s661 + $0xe58] sm:$0xff]
        %v1230 = vld [vmem:[%s661 + $0xe60] sm:$0xff]
        %v1231 = vld [vmem:[%s661 + $0xe68] sm:$0xff]
        %v1232 = vld [vmem:[%s661 + $0xe70] sm:$0xff]
        %v1233 = vld [vmem:[%s661 + $0xe78] sm:$0xff]
        %v1234 = vld [vmem:[%s661 + $0xe80] sm:$0xff]
        %v1235 = vld [vmem:[%s661 + $0xe88] sm:$0xff]
        %v1236 = vld [vmem:[%s661 + $0xe90] sm:$0xff]
        %v1237 = vld [vmem:[%s661 + $0xe98] sm:$0xff]
        %v1238 = vld [vmem:[%s661 + $0xea0] sm:$0xff]
        %v1239 = vld [vmem:[%s661 + $0xea8] sm:$0xff]
        %v1240 = vld [vmem:[%s661 + $0xeb0] sm:$0xff]
        %v1241 = vld [vmem:[%s661 + $0xeb8] sm:$0xff]
        %v1242 = vld [vmem:[%s661 + $0xec0] sm:$0xff]
        %v1243 = vld [vmem:[%s661 + $0xec8] sm:$0xff]
        %v1244 = vld [vmem:[%s661 + $0xed0] sm:$0xff]
        %v1245 = vld [vmem:[%s661 + $0xed8] sm:$0xff]
        %v1246 = vld [vmem:[%s661 + $0xee0] sm:$0xff]
        %v1247 = vld [vmem:[%s661 + $0xee8] sm:$0xff]
        %v1248 = vld [vmem:[%s661 + $0xef0] sm:$0xff]
        %v1249 = vld [vmem:[%s661 + $0xef8] sm:$0xff]
        %v1250 = vld [vmem:[%s661 + $0xf00] sm:$0xff]
        %v1251 = vld [vmem:[%s661 + $0xf08] sm:$0xff]
        %v1252 = vld [vmem:[%s661 + $0xf10] sm:$0xff]
        %v1253 = vld [vmem:[%s661 + $0xf18] sm:$0xff]
        %v1254 = vld [vmem:[%s661 + $0xf20] sm:$0xff]
        %v1255 = vld [vmem:[%s661 + $0xf28] sm:$0xff]
        %v1256 = vld [vmem:[%s661 + $0xf30] sm:$0xff]
        %v1257 = vld [vmem:[%s661 + $0xf38] sm:$0xff]
        %v1258 = vld [vmem:[%s661 + $0xf40] sm:$0xff]
        %v1259 = vld [vmem:[%s661 + $0xf48] sm:$0xff]
        %v1260 = vld [vmem:[%s661 + $0xf50] sm:$0xff]
        %v1261 = vld [vmem:[%s661 + $0xf58] sm:$0xff]
        %v1262 = vld [vmem:[%s661 + $0xf60] sm:$0xff]
        %v1263 = vld [vmem:[%s661 + $0xf68] sm:$0xff]
        %v1264 = vld [vmem:[%s661 + $0xf70] sm:$0xff]
        %v1265 = vld [vmem:[%s661 + $0xf78] sm:$0xff]
        %v1266 = vld [vmem:[%s661 + $0xf80] sm:$0xff]
        %v1267 = vld [vmem:[%s661 + $0xf88] sm:$0xff]
        %v1268 = vld [vmem:[%s661 + $0xf90] sm:$0xff]
        %v1269 = vld [vmem:[%s661 + $0xf98] sm:$0xff]
        %v1270 = vld [vmem:[%s661 + $0xfa0] sm:$0xff]
        %v1271 = vld [vmem:[%s661 + $0xfa8] sm:$0xff]
        %v1272 = vld [vmem:[%s661 + $0xfb0] sm:$0xff]
        %v1273 = vld [vmem:[%s661 + $0xfb8] sm:$0xff]
        %v1274 = vld [vmem:[%s661 + $0xfc0] sm:$0xff]
        %v1275 = vld [vmem:[%s661 + $0xfc8] sm:$0xff]
        %v1276 = vld [vmem:[%s661 + $0xfd0] sm:$0xff]
        %v1277 = vld [vmem:[%s661 + $0xfd8] sm:$0xff]
        %v1278 = vld [vmem:[%s661 + $0xfe0] sm:$0xff]
        %v1279 = vld [vmem:[%s661 + $0xfe8] sm:$0xff]
        %v1280 = vld [vmem:[%s661 + $0xff0] sm:$0xff]
        %v1281 = vld [vmem:[%s661 + $0xff8] sm:$0xff]
        %v1282 = vld [vmem:[%s661 + $0x1000] sm:$0xff]
        %v1283 = vld [vmem:[%s661 + $0x1008] sm:$0xff]
        %v1284 = vld [vmem:[%s661 + $0x1010] sm:$0xff]
        %v1285 = vld [vmem:[%s661 + $0x1018] sm:$0xff]
        %v1286 = vld [vmem:[%s661 + $0x1020] sm:$0xff]
        %v1287 = vld [vmem:[%s661 + $0x1028] sm:$0xff]
        %v1288 = vld [vmem:[%s661 + $0x1030] sm:$0xff]
        %v1289 = vld [vmem:[%s661 + $0x1038] sm:$0xff]
        %v1290 = vld [vmem:[%s661 + $0x1040] sm:$0xff]
        %v1291 = vld [vmem:[%s661 + $0x1048] sm:$0xff]
        %v1292 = vld [vmem:[%s661 + $0x1050] sm:$0xff]
        %v1293 = vld [vmem:[%s661 + $0x1058] sm:$0xff]
        %v1294 = vld [vmem:[%s661 + $0x1060] sm:$0xff]
        %v1295 = vld [vmem:[%s661 + $0x1068] sm:$0xff]
        %v1296 = vld [vmem:[%s661 + $0x1070] sm:$0xff]
        %v1297 = vld [vmem:[%s661 + $0x1078] sm:$0xff]
        %v1298 = vld [vmem:[%s661 + $0x1080] sm:$0xff]
        %v1299 = vld [vmem:[%s661 + $0x1088] sm:$0xff]
        %v1300 = vld [vmem:[%s661 + $0x1090] sm:$0xff]
        %v1301 = vld [vmem:[%s661 + $0x1098] sm:$0xff]
        %v1302 = vld [vmem:[%s661 + $0x10a0] sm:$0xff]
        %v1303 = vld [vmem:[%s661 + $0x10a8] sm:$0xff]
        %v1304 = vld [vmem:[%s661 + $0x10b0] sm:$0xff]
        %v1305 = vld [vmem:[%s661 + $0x10b8] sm:$0xff]
        %v1306 = vld [vmem:[%s661 + $0x10c0] sm:$0xff]
        %v1307 = vld [vmem:[%s661 + $0x10c8] sm:$0xff]
        %v1308 = vld [vmem:[%s661 + $0x10d0] sm:$0xff]
        %v1309 = vld [vmem:[%s661 + $0x10d8] sm:$0xff]
        %v1310 = vld [vmem:[%s661 + $0x10e0] sm:$0xff]
        %v1311 = vld [vmem:[%s661 + $0x10e8] sm:$0xff]
        %v1312 = vld [vmem:[%s661 + $0x10f0] sm:$0xff]
        %v1313 = vld [vmem:[%s661 + $0x10f8] sm:$0xff]
        %v1314 = vld [vmem:[%s661 + $0x1100] sm:$0xff]
        %v1315 = vld [vmem:[%s661 + $0x1108] sm:$0xff]
        %v1316 = vld [vmem:[%s661 + $0x1110] sm:$0xff]
        %v1317 = vld [vmem:[%s661 + $0x1118] sm:$0xff]
        %v1318 = vld [vmem:[%s661 + $0x1120] sm:$0xff]
        %v1319 = vld [vmem:[%s661 + $0x1128] sm:$0xff]
        %v1320 = vld [vmem:[%s661 + $0x1130] sm:$0xff]
        %v1321 = vld [vmem:[%s661 + $0x1138] sm:$0xff]
        %v1322 = vld [vmem:[%s661 + $0x1140] sm:$0xff]
        %v1323 = vld [vmem:[%s661 + $0x1148] sm:$0xff]
        %v1324 = vld [vmem:[%s661 + $0x1150] sm:$0xff]
        %v1325 = vld [vmem:[%s661 + $0x1158] sm:$0xff]
        %v1326 = vld [vmem:[%s661 + $0x1160] sm:$0xff]
        %v1327 = vld [vmem:[%s661 + $0x1168] sm:$0xff]
        %v1328 = vld [vmem:[%s661 + $0x1170] sm:$0xff]
        %v1329 = vld [vmem:[%s661 + $0x1178] sm:$0xff]
        %v1330 = vld [vmem:[%s661 + $0x1180] sm:$0xff]
        %v1331 = vld [vmem:[%s661 + $0x1188] sm:$0xff]
        %v1332 = vld [vmem:[%s661 + $0x1190] sm:$0xff]
        %v1333 = vld [vmem:[%s661 + $0x1198] sm:$0xff]
        %v1334 = vld [vmem:[%s661 + $0x11a0] sm:$0xff]
        %v1335 = vld [vmem:[%s661 + $0x11a8] sm:$0xff]
        %v1336 = vld [vmem:[%s661 + $0x11b0] sm:$0xff]
        %v1337 = vld [vmem:[%s661 + $0x11b8] sm:$0xff]
        %v1338 = vld [vmem:[%s661 + $0x11c0] sm:$0xff]
        %v1339 = vld [vmem:[%s661 + $0x11c8] sm:$0xff]
        %v1340 = vld [vmem:[%s661 + $0x11d0] sm:$0xff]
        %v1341 = vld [vmem:[%s661 + $0x11d8] sm:$0xff]
        %v1342 = vld [vmem:[%s661 + $0x11e0] sm:$0xff]
        %v1343 = vld [vmem:[%s661 + $0x11e8] sm:$0xff]
        %v1344 = vld [vmem:[%s661 + $0x11f0] sm:$0xff]
        %v1345 = vld [vmem:[%s661 + $0x11f8] sm:$0xff]
        %v1346 = vld [vmem:[%s661 + $0x1200] sm:$0xff]
        %v1347 = vld [vmem:[%s661 + $0x1208] sm:$0xff]
        %v1348 = vld [vmem:[%s661 + $0x1210] sm:$0xff]
        %v1349 = vld [vmem:[%s661 + $0x1218] sm:$0xff]
        %v1350 = vld [vmem:[%s661 + $0x1220] sm:$0xff]
        %v1351 = vld [vmem:[%s661 + $0x1228] sm:$0xff]
        %v1352 = vld [vmem:[%s661 + $0x1230] sm:$0xff]
        %v1353 = vld [vmem:[%s661 + $0x1238] sm:$0xff]
        %v1354 = vld [vmem:[%s661 + $0x1240] sm:$0xff]
        %v1355 = vld [vmem:[%s661 + $0x1248] sm:$0xff]
        %v1356 = vld [vmem:[%s661 + $0x1250] sm:$0xff]
        %v1357 = vld [vmem:[%s661 + $0x1258] sm:$0xff]
        %v1358 = vld [vmem:[%s661 + $0x1260] sm:$0xff]
        %v1359 = vld [vmem:[%s661 + $0x1268] sm:$0xff]
        %v1360 = vld [vmem:[%s661 + $0x1270] sm:$0xff]
        %v1361 = vld [vmem:[%s661 + $0x1278] sm:$0xff]
        %v1362 = vld [vmem:[%s661 + $0x1280] sm:$0xff]
        %v1363 = vld [vmem:[%s661 + $0x1288] sm:$0xff]
        %v1364 = vld [vmem:[%s661 + $0x1290] sm:$0xff]
        %v1365 = vld [vmem:[%s661 + $0x1298] sm:$0xff]
        %v1366 = vld [vmem:[%s661 + $0x12a0] sm:$0xff]
        %v1367 = vld [vmem:[%s661 + $0x12a8] sm:$0xff]
        %v1368 = vld [vmem:[%s661 + $0x12b0] sm:$0xff]
        %v1369 = vld [vmem:[%s661 + $0x12b8] sm:$0xff]
        %v1370 = vld [vmem:[%s661 + $0x12c0] sm:$0xff]
        %v1371 = vld [vmem:[%s661 + $0x12c8] sm:$0xff]
        %v1372 = vld [vmem:[%s661 + $0x12d0] sm:$0xff]
        %v1373 = vld [vmem:[%s661 + $0x12d8] sm:$0xff]
        %v1374 = vld [vmem:[%s661 + $0x12e0] sm:$0xff]
        %v1375 = vld [vmem:[%s661 + $0x12e8] sm:$0xff]
        %v1376 = vld [vmem:[%s661 + $0x12f0] sm:$0xff]
        %v1377 = vld [vmem:[%s661 + $0x12f8] sm:$0xff]
        %v1378 = vld [vmem:[%s661 + $0x1300] sm:$0xff]
        %v1379 = vld [vmem:[%s661 + $0x1308] sm:$0xff]
        %v1380 = vld [vmem:[%s661 + $0x1310] sm:$0xff]
        %v1381 = vld [vmem:[%s661 + $0x1318] sm:$0xff]
        %v1382 = vld [vmem:[%s661 + $0x1320] sm:$0xff]
        %v1383 = vld [vmem:[%s661 + $0x1328] sm:$0xff]
        %v1384 = vld [vmem:[%s661 + $0x1330] sm:$0xff]
        %v1385 = vld [vmem:[%s661 + $0x1338] sm:$0xff]
        %v1386 = vld [vmem:[%s661 + $0x1340] sm:$0xff]
        %v1387 = vld [vmem:[%s661 + $0x1348] sm:$0xff]
        %v1388 = vld [vmem:[%s661 + $0x1350] sm:$0xff]
        %v1389 = vld [vmem:[%s661 + $0x1358] sm:$0xff]
        %v1390 = vld [vmem:[%s661 + $0x1360] sm:$0xff]
        %v1391 = vld [vmem:[%s661 + $0x1368] sm:$0xff]
        %v1392 = vld [vmem:[%s661 + $0x1370] sm:$0xff]
        %v1393 = vld [vmem:[%s661 + $0x1378] sm:$0xff]
        %v1394 = vld [vmem:[%s661 + $0x1380] sm:$0xff]
        %v1395 = vld [vmem:[%s661 + $0x1388] sm:$0xff]
        %v1396 = vld [vmem:[%s661 + $0x1390] sm:$0xff]
        %v1397 = vld [vmem:[%s661 + $0x1398] sm:$0xff]
        %v1398 = vld [vmem:[%s661 + $0x13a0] sm:$0xff]
        %v1399 = vld [vmem:[%s661 + $0x13a8] sm:$0xff]
        %v1400 = vld [vmem:[%s661 + $0x13b0] sm:$0xff]
        %v1401 = vld [vmem:[%s661 + $0x13b8] sm:$0xff]
        %v1402 = vld [vmem:[%s661 + $0x13c0] sm:$0xff]
        %v1403 = vld [vmem:[%s661 + $0x13c8] sm:$0xff]
        %v1404 = vld [vmem:[%s661 + $0x13d0] sm:$0xff]
        %v1405 = vld [vmem:[%s661 + $0x13d8] sm:$0xff]
        %v1406 = vld [vmem:[%s661 + $0x13e0] sm:$0xff]
        %v1407 = vld [vmem:[%s661 + $0x13e8] sm:$0xff]
        %v1408 = vld [vmem:[%s661 + $0x13f0] sm:$0xff]
        %v1409 = vld [vmem:[%s661 + $0x13f8] sm:$0xff]
        %v1410 = vld [vmem:[%s661 + $0x1400] sm:$0xff]
        %v1411 = vld [vmem:[%s661 + $0x1408] sm:$0xff]
        %v1412 = vld [vmem:[%s661 + $0x1410] sm:$0xff]
        %v1413 = vld [vmem:[%s661 + $0x1418] sm:$0xff]
        %v1414 = vld [vmem:[%s661 + $0x1420] sm:$0xff]
        %v1415 = vld [vmem:[%s661 + $0x1428] sm:$0xff]
        %v1416 = vld [vmem:[%s661 + $0x1430] sm:$0xff]
        %v1417 = vld [vmem:[%s661 + $0x1438] sm:$0xff]
        %v1418 = vld [vmem:[%s661 + $0x1440] sm:$0xff]
        %v1419 = vld [vmem:[%s661 + $0x1448] sm:$0xff]
        %v1420 = vld [vmem:[%s661 + $0x1450] sm:$0xff]
        %v1421 = vld [vmem:[%s661 + $0x1458] sm:$0xff]
        %v1422 = vld [vmem:[%s661 + $0x1460] sm:$0xff]
        %v1423 = vld [vmem:[%s661 + $0x1468] sm:$0xff]
        %v1424 = vld [vmem:[%s661 + $0x1470] sm:$0xff]
        %v1425 = vld [vmem:[%s661 + $0x1478] sm:$0xff]
        %v1426 = vld [vmem:[%s661 + $0x1480] sm:$0xff]
        %v1427 = vld [vmem:[%s661 + $0x1488] sm:$0xff]
        %v1428 = vld [vmem:[%s661 + $0x1490] sm:$0xff]
        %v1429 = vld [vmem:[%s661 + $0x1498] sm:$0xff]
        %v1430 = vld [vmem:[%s661 + $0x14a0] sm:$0xff]
        %v1431 = vld [vmem:[%s661 + $0x14a8] sm:$0xff]
        %v1432 = vld [vmem:[%s661 + $0x14b0] sm:$0xff]
        %v1433 = vld [vmem:[%s661 + $0x14b8] sm:$0xff]
        %v1434 = vld [vmem:[%s661 + $0x14c0] sm:$0xff]
        %v1435 = vld [vmem:[%s661 + $0x14c8] sm:$0xff]
        %v1436 = vld [vmem:[%s661 + $0x14d0] sm:$0xff]
        %v1437 = vld [vmem:[%s661 + $0x14d8] sm:$0xff]
        %v1438 = vld [vmem:[%s661 + $0x14e0] sm:$0xff]
        %v1439 = vld [vmem:[%s661 + $0x14e8] sm:$0xff]
        %v1440 = vld [vmem:[%s661 + $0x14f0] sm:$0xff]
        %v1441 = vld [vmem:[%s661 + $0x14f8] sm:$0xff]
        %v1442 = vld [vmem:[%s661 + $0x1500] sm:$0xff]
        %v1443 = vld [vmem:[%s661 + $0x1508] sm:$0xff]
        %v1444 = vld [vmem:[%s661 + $0x1510] sm:$0xff]
        %v1445 = vld [vmem:[%s661 + $0x1518] sm:$0xff]
        %v1446 = vld [vmem:[%s661 + $0x1520] sm:$0xff]
        %v1447 = vld [vmem:[%s661 + $0x1528] sm:$0xff]
        %v1448 = vld [vmem:[%s661 + $0x1530] sm:$0xff]
        %v1449 = vld [vmem:[%s661 + $0x1538] sm:$0xff]
        %v1450 = vld [vmem:[%s661 + $0x1540] sm:$0xff]
        %v1451 = vld [vmem:[%s661 + $0x1548] sm:$0xff]
        %v1452 = vld [vmem:[%s661 + $0x1550] sm:$0xff]
        %v1453 = vld [vmem:[%s661 + $0x1558] sm:$0xff]
        %v1454 = vld [vmem:[%s661 + $0x1560] sm:$0xff]
        %v1455 = vld [vmem:[%s661 + $0x1568] sm:$0xff]
        %v1456 = vld [vmem:[%s661 + $0x1570] sm:$0xff]
        %v1457 = vld [vmem:[%s661 + $0x1578] sm:$0xff]
        %v1458 = vld [vmem:[%s661 + $0x1580] sm:$0xff]
        %v1459 = vld [vmem:[%s661 + $0x1588] sm:$0xff]
        %v1460 = vld [vmem:[%s661 + $0x1590] sm:$0xff]
        %v1461 = vld [vmem:[%s661 + $0x1598] sm:$0xff]
        %v1462 = vld [vmem:[%s661 + $0x15a0] sm:$0xff]
        %v1463 = vld [vmem:[%s661 + $0x15a8] sm:$0xff]
        %v1464 = vld [vmem:[%s661 + $0x15b0] sm:$0xff]
        %v1465 = vld [vmem:[%s661 + $0x15b8] sm:$0xff]
        %v1466 = vld [vmem:[%s661 + $0x15c0] sm:$0xff]
        %v1467 = vld [vmem:[%s661 + $0x15c8] sm:$0xff]
        %v1468 = vld [vmem:[%s661 + $0x15d0] sm:$0xff]
        %v1469 = vld [vmem:[%s661 + $0x15d8] sm:$0xff]
        %v1470 = vld [vmem:[%s661 + $0x15e0] sm:$0xff]
        %v1471 = vld [vmem:[%s661 + $0x15e8] sm:$0xff]
        %v1472 = vld [vmem:[%s661 + $0x15f0] sm:$0xff]
        %v1473 = vld [vmem:[%s661 + $0x15f8] sm:$0xff]
        %v1474 = vld [vmem:[%s661 + $0x1600] sm:$0xff]
        %v1475 = vld [vmem:[%s661 + $0x1608] sm:$0xff]
        %v1476 = vld [vmem:[%s661 + $0x1610] sm:$0xff]
        %v1477 = vld [vmem:[%s661 + $0x1618] sm:$0xff]
        %v1478 = vld [vmem:[%s661 + $0x1620] sm:$0xff]
        %v1479 = vld [vmem:[%s661 + $0x1628] sm:$0xff]
        %v1480 = vld [vmem:[%s661 + $0x1630] sm:$0xff]
        %v1481 = vld [vmem:[%s661 + $0x1638] sm:$0xff]
        %v1482 = vld [vmem:[%s661 + $0x1640] sm:$0xff]
        %v1483 = vld [vmem:[%s661 + $0x1648] sm:$0xff]
        %v1484 = vld [vmem:[%s661 + $0x1650] sm:$0xff]
        %v1485 = vld [vmem:[%s661 + $0x1658] sm:$0xff]
        %v1486 = vld [vmem:[%s661 + $0x1660] sm:$0xff]
        %v1487 = vld [vmem:[%s661 + $0x1668] sm:$0xff]
        %v1488 = vld [vmem:[%s661 + $0x1670] sm:$0xff]
        %v1489 = vld [vmem:[%s661 + $0x1678] sm:$0xff]
        %v1490 = vld [vmem:[%s661 + $0x1680] sm:$0xff]
        %v1491 = vld [vmem:[%s661 + $0x1688] sm:$0xff]
        %v1492 = vld [vmem:[%s661 + $0x1690] sm:$0xff]
        %v1493 = vld [vmem:[%s661 + $0x1698] sm:$0xff]
        %v1494 = vld [vmem:[%s661 + $0x16a0] sm:$0xff]
        %v1495 = vld [vmem:[%s661 + $0x16a8] sm:$0xff]
        %v1496 = vld [vmem:[%s661 + $0x16b0] sm:$0xff]
        %v1497 = vld [vmem:[%s661 + $0x16b8] sm:$0xff]
        %v1498 = vld [vmem:[%s661 + $0x16c0] sm:$0xff]
        %v1499 = vld [vmem:[%s661 + $0x16c8] sm:$0xff]
        %v1500 = vld [vmem:[%s661 + $0x16d0] sm:$0xff]
        %v1501 = vld [vmem:[%s661 + $0x16d8] sm:$0xff]
        %v1502 = vld [vmem:[%s661 + $0x16e0] sm:$0xff]
        %v1503 = vld [vmem:[%s661 + $0x16e8] sm:$0xff]
        %v1504 = vld [vmem:[%s661 + $0x16f0] sm:$0xff]
        %v1505 = vld [vmem:[%s661 + $0x16f8] sm:$0xff]
        %v1506 = vld [vmem:[%s661 + $0x1700] sm:$0xff]
        %v1507 = vld [vmem:[%s661 + $0x1708] sm:$0xff]
        %v1508 = vld [vmem:[%s661 + $0x1710] sm:$0xff]
        %v1509 = vld [vmem:[%s661 + $0x1718] sm:$0xff]
        %v1510 = vld [vmem:[%s661 + $0x1720] sm:$0xff]
        %v1511 = vld [vmem:[%s661 + $0x1728] sm:$0xff]
        %v1512 = vld [vmem:[%s661 + $0x1730] sm:$0xff]
        %v1513 = vld [vmem:[%s661 + $0x1738] sm:$0xff]
        %v1514 = vld [vmem:[%s661 + $0x1740] sm:$0xff]
        %v1515 = vld [vmem:[%s661 + $0x1748] sm:$0xff]
        %v1516 = vld [vmem:[%s661 + $0x1750] sm:$0xff]
        %v1517 = vld [vmem:[%s661 + $0x1758] sm:$0xff]
        %v1518 = vld [vmem:[%s661 + $0x1760] sm:$0xff]
        %v1519 = vld [vmem:[%s661 + $0x1768] sm:$0xff]
        %v1520 = vld [vmem:[%s661 + $0x1770] sm:$0xff]
        %v1521 = vld [vmem:[%s661 + $0x1778] sm:$0xff]
        %v1522 = vld [vmem:[%s661 + $0x1780] sm:$0xff]
        %v1523 = vld [vmem:[%s661 + $0x1788] sm:$0xff]
        %v1524 = vld [vmem:[%s661 + $0x1790] sm:$0xff]
        %v1525 = vld [vmem:[%s661 + $0x1798] sm:$0xff]
        %v1526 = vld [vmem:[%s661 + $0x17a0] sm:$0xff]
        %v1527 = vld [vmem:[%s661 + $0x17a8] sm:$0xff]
        %v1528 = vld [vmem:[%s661 + $0x17b0] sm:$0xff]
        %v1529 = vld [vmem:[%s661 + $0x17b8] sm:$0xff]
        %v1530 = vld [vmem:[%s661 + $0x17c0] sm:$0xff]
        %v1531 = vld [vmem:[%s661 + $0x17c8] sm:$0xff]
        %v1532 = vld [vmem:[%s661 + $0x17d0] sm:$0xff]
        %v1533 = vld [vmem:[%s661 + $0x17d8] sm:$0xff]
        %v1534 = vld [vmem:[%s661 + $0x17e0] sm:$0xff]
        %v1535 = vld [vmem:[%s661 + $0x17e8] sm:$0xff]
        %v1536 = vld [vmem:[%s661 + $0x17f0] sm:$0xff]
        %v1537 = vld [vmem:[%s661 + $0x17f8] sm:$0xff]
        %v1538 = vld [vmem:[%s661 + $0x1800] sm:$0xff]
        %v1539 = vld [vmem:[%s661 + $0x1808] sm:$0xff]
        %v1540 = vld [vmem:[%s661 + $0x1810] sm:$0xff]
        %v1541 = vld [vmem:[%s661 + $0x1818] sm:$0xff]
        %v1542 = vld [vmem:[%s661 + $0x1820] sm:$0xff]
        %v1543 = vld [vmem:[%s661 + $0x1828] sm:$0xff]
        %v1544 = vld [vmem:[%s661 + $0x1830] sm:$0xff]
        %v1545 = vld [vmem:[%s661 + $0x1838] sm:$0xff]
        %v1546 = vld [vmem:[%s661 + $0x1840] sm:$0xff]
        %v1547 = vld [vmem:[%s661 + $0x1848] sm:$0xff]
        %v1548 = vld [vmem:[%s661 + $0x1850] sm:$0xff]
        %v1549 = vld [vmem:[%s661 + $0x1858] sm:$0xff]
        %v1550 = vld [vmem:[%s661 + $0x1860] sm:$0xff]
        %v1551 = vld [vmem:[%s661 + $0x1868] sm:$0xff]
        %v1552 = vld [vmem:[%s661 + $0x1870] sm:$0xff]
        %v1553 = vld [vmem:[%s661 + $0x1878] sm:$0xff]
        %v1554 = vld [vmem:[%s661 + $0x1880] sm:$0xff]
        %v1555 = vld [vmem:[%s661 + $0x1888] sm:$0xff]
        %v1556 = vld [vmem:[%s661 + $0x1890] sm:$0xff]
        %v1557 = vld [vmem:[%s661 + $0x1898] sm:$0xff]
        %v1558 = vld [vmem:[%s661 + $0x18a0] sm:$0xff]
        %v1559 = vld [vmem:[%s661 + $0x18a8] sm:$0xff]
        %v1560 = vld [vmem:[%s661 + $0x18b0] sm:$0xff]
        %v1561 = vld [vmem:[%s661 + $0x18b8] sm:$0xff]
        %v1562 = vld [vmem:[%s661 + $0x18c0] sm:$0xff]
        %v1563 = vld [vmem:[%s661 + $0x18c8] sm:$0xff]
        %v1564 = vld [vmem:[%s661 + $0x18d0] sm:$0xff]
        %v1565 = vld [vmem:[%s661 + $0x18d8] sm:$0xff]
        %v1566 = vld [vmem:[%s661 + $0x18e0] sm:$0xff]
        %v1567 = vld [vmem:[%s661 + $0x18e8] sm:$0xff]
        %v1568 = vld [vmem:[%s661 + $0x18f0] sm:$0xff]
        %v1569 = vld [vmem:[%s661 + $0x18f8] sm:$0xff]
        %v1570 = vld [vmem:[%s661 + $0x1900] sm:$0xff]
        %v1571 = vld [vmem:[%s661 + $0x1908] sm:$0xff]
        %v1572 = vld [vmem:[%s661 + $0x1910] sm:$0xff]
        %v1573 = vld [vmem:[%s661 + $0x1918] sm:$0xff]
        %v1574 = vld [vmem:[%s661 + $0x1920] sm:$0xff]
        %v1575 = vld [vmem:[%s661 + $0x1928] sm:$0xff]
        %v1576 = vld [vmem:[%s661 + $0x1930] sm:$0xff]
        %v1577 = vld [vmem:[%s661 + $0x1938] sm:$0xff]
        %v1578 = vld [vmem:[%s661 + $0x1940] sm:$0xff]
        %v1579 = vld [vmem:[%s661 + $0x1948] sm:$0xff]
        %v1580 = vld [vmem:[%s661 + $0x1950] sm:$0xff]
        %v1581 = vld [vmem:[%s661 + $0x1958] sm:$0xff]
        %v1582 = vld [vmem:[%s661 + $0x1960] sm:$0xff]
        %v1583 = vld [vmem:[%s661 + $0x1968] sm:$0xff]
        %v1584 = vld [vmem:[%s661 + $0x1970] sm:$0xff]
        %v1585 = vld [vmem:[%s661 + $0x1978] sm:$0xff]
        %v1586 = vld [vmem:[%s661 + $0x1980] sm:$0xff]
        %v1587 = vld [vmem:[%s661 + $0x1988] sm:$0xff]
        %v1588 = vld [vmem:[%s661 + $0x1990] sm:$0xff]
        %v1589 = vld [vmem:[%s661 + $0x1998] sm:$0xff]
        %v1590 = vld [vmem:[%s661 + $0x19a0] sm:$0xff]
        %v1591 = vld [vmem:[%s661 + $0x19a8] sm:$0xff]
        %v1592 = vld [vmem:[%s661 + $0x19b0] sm:$0xff]
        %v1593 = vld [vmem:[%s661 + $0x19b8] sm:$0xff]
        %v1594 = vld [vmem:[%s661 + $0x19c0] sm:$0xff]
        %v1595 = vld [vmem:[%s661 + $0x19c8] sm:$0xff]
        %v1596 = vld [vmem:[%s661 + $0x19d0] sm:$0xff]
        %v1597 = vld [vmem:[%s661 + $0x19d8] sm:$0xff]
        %v1598 = vld [vmem:[%s661 + $0x19e0] sm:$0xff]
        %v1599 = vld [vmem:[%s661 + $0x19e8] sm:$0xff]
        %v1600 = vld [vmem:[%s661 + $0x19f0] sm:$0xff]
        %v1601 = vld [vmem:[%s661 + $0x19f8] sm:$0xff]
        %v1602 = vld [vmem:[%s661 + $0x1a00] sm:$0xff]
        %v1603 = vld [vmem:[%s661 + $0x1a08] sm:$0xff]
        %v1604 = vld [vmem:[%s661 + $0x1a10] sm:$0xff]
        %v1605 = vld [vmem:[%s661 + $0x1a18] sm:$0xff]
        %v1606 = vld [vmem:[%s661 + $0x1a20] sm:$0xff]
        %v1607 = vld [vmem:[%s661 + $0x1a28] sm:$0xff]
        %v1608 = vld [vmem:[%s661 + $0x1a30] sm:$0xff]
        %v1609 = vld [vmem:[%s661 + $0x1a38] sm:$0xff]
        %v1610 = vld [vmem:[%s661 + $0x1a40] sm:$0xff]
        %v1611 = vld [vmem:[%s661 + $0x1a48] sm:$0xff]
        %v1612 = vld [vmem:[%s661 + $0x1a50] sm:$0xff]
        %v1613 = vld [vmem:[%s661 + $0x1a58] sm:$0xff]
        %v1614 = vld [vmem:[%s661 + $0x1a60] sm:$0xff]
        %v1615 = vld [vmem:[%s661 + $0x1a68] sm:$0xff]
        %v1616 = vld [vmem:[%s661 + $0x1a70] sm:$0xff]
        %v1617 = vld [vmem:[%s661 + $0x1a78] sm:$0xff]
        %v1618 = vld [vmem:[%s661 + $0x1a80] sm:$0xff]
        %v1619 = vld [vmem:[%s661 + $0x1a88] sm:$0xff]
        %v1620 = vld [vmem:[%s661 + $0x1a90] sm:$0xff]
        %v1621 = vld [vmem:[%s661 + $0x1a98] sm:$0xff]
        %v1622 = vld [vmem:[%s661 + $0x1aa0] sm:$0xff]
        %v1623 = vld [vmem:[%s661 + $0x1aa8] sm:$0xff]
        %v1624 = vld [vmem:[%s661 + $0x1ab0] sm:$0xff]
        %v1625 = vld [vmem:[%s661 + $0x1ab8] sm:$0xff]
        %v1626 = vld [vmem:[%s661 + $0x1ac0] sm:$0xff]
        %v1627 = vld [vmem:[%s661 + $0x1ac8] sm:$0xff]
        %v1628 = vld [vmem:[%s661 + $0x1ad0] sm:$0xff]
        %v1629 = vld [vmem:[%s661 + $0x1ad8] sm:$0xff]
        %v1630 = vld [vmem:[%s661 + $0x1ae0] sm:$0xff]
        %v1631 = vld [vmem:[%s661 + $0x1ae8] sm:$0xff]
        %v1632 = vld [vmem:[%s661 + $0x1af0] sm:$0xff]
        %v1633 = vld [vmem:[%s661 + $0x1af8] sm:$0xff]
        %v1634 = vld [vmem:[%s661 + $0x1b00] sm:$0xff]
        %v1635 = vld [vmem:[%s661 + $0x1b08] sm:$0xff]
        %v1636 = vld [vmem:[%s661 + $0x1b10] sm:$0xff]
        %v1637 = vld [vmem:[%s661 + $0x1b18] sm:$0xff]
        %v1638 = vld [vmem:[%s661 + $0x1b20] sm:$0xff]
        %v1639 = vld [vmem:[%s661 + $0x1b28] sm:$0xff]
        %v1640 = vld [vmem:[%s661 + $0x1b30] sm:$0xff]
        %v1641 = vld [vmem:[%s661 + $0x1b38] sm:$0xff]
        %v1642 = vld [vmem:[%s661 + $0x1b40] sm:$0xff]
        %v1643 = vld [vmem:[%s661 + $0x1b48] sm:$0xff]
        %v1644 = vld [vmem:[%s661 + $0x1b50] sm:$0xff]
        %v1645 = vld [vmem:[%s661 + $0x1b58] sm:$0xff]
        %v1646 = vld [vmem:[%s661 + $0x1b60] sm:$0xff]
        %v1647 = vld [vmem:[%s661 + $0x1b68] sm:$0xff]
        %v1648 = vld [vmem:[%s661 + $0x1b70] sm:$0xff]
        %v1649 = vld [vmem:[%s661 + $0x1b78] sm:$0xff]
        %v1650 = vld [vmem:[%s661 + $0x1b80] sm:$0xff]
        %v1651 = vld [vmem:[%s661 + $0x1b88] sm:$0xff]
        %v1652 = vld [vmem:[%s661 + $0x1b90] sm:$0xff]
        %v1653 = vld [vmem:[%s661 + $0x1b98] sm:$0xff]
        %v1654 = vld [vmem:[%s661 + $0x1ba0] sm:$0xff]
        %v1655 = vld [vmem:[%s661 + $0x1ba8] sm:$0xff]
        %v1656 = vld [vmem:[%s661 + $0x1bb0] sm:$0xff]
        %v1657 = vld [vmem:[%s661 + $0x1bb8] sm:$0xff]
        %v1658 = vld [vmem:[%s661 + $0x1bc0] sm:$0xff]
        %v1659 = vld [vmem:[%s661 + $0x1bc8] sm:$0xff]
        %v1660 = vld [vmem:[%s661 + $0x1bd0] sm:$0xff]
        %v1661 = vld [vmem:[%s661 + $0x1bd8] sm:$0xff]
        %v1662 = vld [vmem:[%s661 + $0x1be0] sm:$0xff]
        %v1663 = vld [vmem:[%s661 + $0x1be8] sm:$0xff]
        %v1664 = vld [vmem:[%s661 + $0x1bf0] sm:$0xff]
        %v1665 = vld [vmem:[%s661 + $0x1bf8] sm:$0xff]
        %v1666 = vld [vmem:[%s661 + $0x1c00] sm:$0xff]
        %v1667 = vld [vmem:[%s661 + $0x1c08] sm:$0xff]
        %v1668 = vld [vmem:[%s661 + $0x1c10] sm:$0xff]
        %v1669 = vld [vmem:[%s661 + $0x1c18] sm:$0xff]
        %v1670 = vld [vmem:[%s661 + $0x1c20] sm:$0xff]
        %v1671 = vld [vmem:[%s661 + $0x1c28] sm:$0xff]
        %v1672 = vld [vmem:[%s661 + $0x1c30] sm:$0xff]
        %v1673 = vld [vmem:[%s661 + $0x1c38] sm:$0xff]
        %v1674 = vld [vmem:[%s661 + $0x1c40] sm:$0xff]
        %v1675 = vld [vmem:[%s661 + $0x1c48] sm:$0xff]
        %v1676 = vld [vmem:[%s661 + $0x1c50] sm:$0xff]
        %v1677 = vld [vmem:[%s661 + $0x1c58] sm:$0xff]
        %v1678 = vld [vmem:[%s661 + $0x1c60] sm:$0xff]
        %v1679 = vld [vmem:[%s661 + $0x1c68] sm:$0xff]
        %v1680 = vld [vmem:[%s661 + $0x1c70] sm:$0xff]
        %v1681 = vld [vmem:[%s661 + $0x1c78] sm:$0xff]
        %v1682 = vld [vmem:[%s661 + $0x1c80] sm:$0xff]
        %v1683 = vld [vmem:[%s661 + $0x1c88] sm:$0xff]
        %v1684 = vld [vmem:[%s661 + $0x1c90] sm:$0xff]
        %v1685 = vld [vmem:[%s661 + $0x1c98] sm:$0xff]
        %v1686 = vld [vmem:[%s661 + $0x1ca0] sm:$0xff]
        %v1687 = vld [vmem:[%s661 + $0x1ca8] sm:$0xff]
        %v1688 = vld [vmem:[%s661 + $0x1cb0] sm:$0xff]
        %v1689 = vld [vmem:[%s661 + $0x1cb8] sm:$0xff]
        %v1690 = vld [vmem:[%s661 + $0x1cc0] sm:$0xff]
        %v1691 = vld [vmem:[%s661 + $0x1cc8] sm:$0xff]
        %v1692 = vld [vmem:[%s661 + $0x1cd0] sm:$0xff]
        %v1693 = vld [vmem:[%s661 + $0x1cd8] sm:$0xff]
        %v1694 = vld [vmem:[%s661 + $0x1ce0] sm:$0xff]
        %v1695 = vld [vmem:[%s661 + $0x1ce8] sm:$0xff]
        %v1696 = vld [vmem:[%s661 + $0x1cf0] sm:$0xff]
        %v1697 = vld [vmem:[%s661 + $0x1cf8] sm:$0xff]
        %v1698 = vld [vmem:[%s661 + $0x1d00] sm:$0xff]
        %v1699 = vld [vmem:[%s661 + $0x1d08] sm:$0xff]
        %v1700 = vld [vmem:[%s661 + $0x1d10] sm:$0xff]
        %v1701 = vld [vmem:[%s661 + $0x1d18] sm:$0xff]
        %v1702 = vld [vmem:[%s661 + $0x1d20] sm:$0xff]
        %v1703 = vld [vmem:[%s661 + $0x1d28] sm:$0xff]
        %v1704 = vld [vmem:[%s661 + $0x1d30] sm:$0xff]
        %v1705 = vld [vmem:[%s661 + $0x1d38] sm:$0xff]
        %v1706 = vld [vmem:[%s661 + $0x1d40] sm:$0xff]
        %v1707 = vld [vmem:[%s661 + $0x1d48] sm:$0xff]
        %v1708 = vld [vmem:[%s661 + $0x1d50] sm:$0xff]
        %v1709 = vld [vmem:[%s661 + $0x1d58] sm:$0xff]
        %v1710 = vld [vmem:[%s661 + $0x1d60] sm:$0xff]
        %v1711 = vld [vmem:[%s661 + $0x1d68] sm:$0xff]
        %v1712 = vld [vmem:[%s661 + $0x1d70] sm:$0xff]
        %v1713 = vld [vmem:[%s661 + $0x1d78] sm:$0xff]
        %v1714 = vld [vmem:[%s661 + $0x1d80] sm:$0xff]
        %v1715 = vld [vmem:[%s661 + $0x1d88] sm:$0xff]
        %v1716 = vld [vmem:[%s661 + $0x1d90] sm:$0xff]
        %v1717 = vld [vmem:[%s661 + $0x1d98] sm:$0xff]
        %v1718 = vld [vmem:[%s661 + $0x1da0] sm:$0xff]
        %v1719 = vld [vmem:[%s661 + $0x1da8] sm:$0xff]
        %v1720 = vld [vmem:[%s661 + $0x1db0] sm:$0xff]
        %v1721 = vld [vmem:[%s661 + $0x1db8] sm:$0xff]
        %v1722 = vld [vmem:[%s661 + $0x1dc0] sm:$0xff]
        %v1723 = vld [vmem:[%s661 + $0x1dc8] sm:$0xff]
        %v1724 = vld [vmem:[%s661 + $0x1dd0] sm:$0xff]
        %v1725 = vld [vmem:[%s661 + $0x1dd8] sm:$0xff]
        %v1726 = vld [vmem:[%s661 + $0x1de0] sm:$0xff]
        %v1727 = vld [vmem:[%s661 + $0x1de8] sm:$0xff]
        %v1728 = vld [vmem:[%s661 + $0x1df0] sm:$0xff]
        %v1729 = vld [vmem:[%s661 + $0x1df8] sm:$0xff]
        %v1730 = vld [vmem:[%s661 + $0x1e00] sm:$0xff]
        %v1731 = vld [vmem:[%s661 + $0x1e08] sm:$0xff]
        %v1732 = vld [vmem:[%s661 + $0x1e10] sm:$0xff]
        %v1733 = vld [vmem:[%s661 + $0x1e18] sm:$0xff]
        %v1734 = vld [vmem:[%s661 + $0x1e20] sm:$0xff]
        %v1735 = vld [vmem:[%s661 + $0x1e28] sm:$0xff]
        %v1736 = vld [vmem:[%s661 + $0x1e30] sm:$0xff]
        %v1737 = vld [vmem:[%s661 + $0x1e38] sm:$0xff]
        %v1738 = vld [vmem:[%s661 + $0x1e40] sm:$0xff]
        %v1739 = vld [vmem:[%s661 + $0x1e48] sm:$0xff]
        %v1740 = vld [vmem:[%s661 + $0x1e50] sm:$0xff]
        %v1741 = vld [vmem:[%s661 + $0x1e58] sm:$0xff]
        %v1742 = vld [vmem:[%s661 + $0x1e60] sm:$0xff]
        %v1743 = vld [vmem:[%s661 + $0x1e68] sm:$0xff]
        %v1744 = vld [vmem:[%s661 + $0x1e70] sm:$0xff]
        %v1745 = vld [vmem:[%s661 + $0x1e78] sm:$0xff]
        %v1746 = vld [vmem:[%s661 + $0x1e80] sm:$0xff]
        %v1747 = vld [vmem:[%s661 + $0x1e88] sm:$0xff]
        %v1748 = vld [vmem:[%s661 + $0x1e90] sm:$0xff]
        %v1749 = vld [vmem:[%s661 + $0x1e98] sm:$0xff]
        %v1750 = vld [vmem:[%s661 + $0x1ea0] sm:$0xff]
        %v1751 = vld [vmem:[%s661 + $0x1ea8] sm:$0xff]
        %v1752 = vld [vmem:[%s661 + $0x1eb0] sm:$0xff]
        %v1753 = vld [vmem:[%s661 + $0x1eb8] sm:$0xff]
        %v1754 = vld [vmem:[%s661 + $0x1ec0] sm:$0xff]
        %v1755 = vld [vmem:[%s661 + $0x1ec8] sm:$0xff]
        %v1756 = vld [vmem:[%s661 + $0x1ed0] sm:$0xff]
        %v1757 = vld [vmem:[%s661 + $0x1ed8] sm:$0xff]
        %v1758 = vld [vmem:[%s661 + $0x1ee0] sm:$0xff]
        %v1759 = vld [vmem:[%s661 + $0x1ee8] sm:$0xff]
        %v1760 = vld [vmem:[%s661 + $0x1ef0] sm:$0xff]
        %v1761 = vld [vmem:[%s661 + $0x1ef8] sm:$0xff]
        %v1762 = vld [vmem:[%s661 + $0x1f00] sm:$0xff]
        %v1763 = vld [vmem:[%s661 + $0x1f08] sm:$0xff]
        %v1764 = vld [vmem:[%s661 + $0x1f10] sm:$0xff]
        %v1765 = vld [vmem:[%s661 + $0x1f18] sm:$0xff]
        %v1766 = vld [vmem:[%s661 + $0x1f20] sm:$0xff]
        %v1767 = vld [vmem:[%s661 + $0x1f28] sm:$0xff]
        %v1768 = vld [vmem:[%s661 + $0x1f30] sm:$0xff]
        %v1769 = vld [vmem:[%s661 + $0x1f38] sm:$0xff]
        %v1770 = vld [vmem:[%s661 + $0x1f40] sm:$0xff]
        %v1771 = vld [vmem:[%s661 + $0x1f48] sm:$0xff]
        %v1772 = vld [vmem:[%s661 + $0x1f50] sm:$0xff]
        %v1773 = vld [vmem:[%s661 + $0x1f58] sm:$0xff]
        %v1774 = vld [vmem:[%s661 + $0x1f60] sm:$0xff]
        %v1775 = vld [vmem:[%s661 + $0x1f68] sm:$0xff]
        %v1776 = vld [vmem:[%s661 + $0x1f70] sm:$0xff]
        %v1777 = vld [vmem:[%s661 + $0x1f78] sm:$0xff]
        %v1778 = vld [vmem:[%s661 + $0x1f80] sm:$0xff]
        %v1779 = vld [vmem:[%s661 + $0x1f88] sm:$0xff]
        %v1780 = vld [vmem:[%s661 + $0x1f90] sm:$0xff]
        %v1781 = vld [vmem:[%s661 + $0x1f98] sm:$0xff]
        %v1782 = vld [vmem:[%s661 + $0x1fa0] sm:$0xff]
        %v1783 = vld [vmem:[%s661 + $0x1fa8] sm:$0xff]
        %v1784 = vld [vmem:[%s661 + $0x1fb0] sm:$0xff]
        %v1785 = vld [vmem:[%s661 + $0x1fb8] sm:$0xff]
        %v1786 = vld [vmem:[%s661 + $0x1fc0] sm:$0xff]
        %v1787 = vld [vmem:[%s661 + $0x1fc8] sm:$0xff]
        %v1788 = vld [vmem:[%s661 + $0x1fd0] sm:$0xff]
        %v1789 = vld [vmem:[%s661 + $0x1fd8] sm:$0xff]
        %v1790 = vld [vmem:[%s661 + $0x1fe0] sm:$0xff]
        %v1791 = vld [vmem:[%s661 + $0x1fe8] sm:$0xff]
        %v1792 = vld [vmem:[%s661 + $0x1ff0] sm:$0xff]
        %v1793 = vld [vmem:[%s661 + $0x1ff8] sm:$0xff]
        %v1794 = vld [vmem:[%s661 + $0x2000] sm:$0xff]
        %v1795 = vld [vmem:[%s661 + $0x2008] sm:$0xff]
        %v1796 = vld [vmem:[%s661 + $0x2010] sm:$0xff]
        %v1797 = vld [vmem:[%s661 + $0x2018] sm:$0xff]
        %v1798 = vld [vmem:[%s661 + $0x2020] sm:$0xff]
        %v1799 = vld [vmem:[%s661 + $0x2028] sm:$0xff]
        %v1800 = vld [vmem:[%s661 + $0x2030] sm:$0xff]
        %v1801 = vld [vmem:[%s661 + $0x2038] sm:$0xff]
        %v1802 = vld [vmem:[%s661 + $0x2040] sm:$0xff]
        %v1803 = vld [vmem:[%s661 + $0x2048] sm:$0xff]
        %v1804 = vld [vmem:[%s661 + $0x2050] sm:$0xff]
        %v1805 = vld [vmem:[%s661 + $0x2058] sm:$0xff]
        %v1806 = vld [vmem:[%s661 + $0x2060] sm:$0xff]
        %v1807 = vld [vmem:[%s661 + $0x2068] sm:$0xff]
        %v1808 = vld [vmem:[%s661 + $0x2070] sm:$0xff]
        %v1809 = vld [vmem:[%s661 + $0x2078] sm:$0xff]
        %v1810 = vld [vmem:[%s661 + $0x2080] sm:$0xff]
        %v1811 = vld [vmem:[%s661 + $0x2088] sm:$0xff]
        %v1812 = vld [vmem:[%s661 + $0x2090] sm:$0xff]
        %v1813 = vld [vmem:[%s661 + $0x2098] sm:$0xff]
        %v1814 = vld [vmem:[%s661 + $0x20a0] sm:$0xff]
        %v1815 = vld [vmem:[%s661 + $0x20a8] sm:$0xff]
        %v1816 = vld [vmem:[%s661 + $0x20b0] sm:$0xff]
        %v1817 = vld [vmem:[%s661 + $0x20b8] sm:$0xff]
        %v1818 = vld [vmem:[%s661 + $0x20c0] sm:$0xff]
        %v1819 = vld [vmem:[%s661 + $0x20c8] sm:$0xff]
        %v1820 = vld [vmem:[%s661 + $0x20d0] sm:$0xff]
        %v1821 = vld [vmem:[%s661 + $0x20d8] sm:$0xff]
        %v1822 = vld [vmem:[%s661 + $0x20e0] sm:$0xff]
        %v1823 = vld [vmem:[%s661 + $0x20e8] sm:$0xff]
        %v1824 = vld [vmem:[%s661 + $0x20f0] sm:$0xff]
        %v1825 = vld [vmem:[%s661 + $0x20f8] sm:$0xff]
        %v1826 = vld [vmem:[%s661 + $0x2100] sm:$0xff]
        %v1827 = vld [vmem:[%s661 + $0x2108] sm:$0xff]
        %v1828 = vld [vmem:[%s661 + $0x2110] sm:$0xff]
        %v1829 = vld [vmem:[%s661 + $0x2118] sm:$0xff]
        %v1830 = vld [vmem:[%s661 + $0x2120] sm:$0xff]
        %v1831 = vld [vmem:[%s661 + $0x2128] sm:$0xff]
        %v1832 = vld [vmem:[%s661 + $0x2130] sm:$0xff]
        %v1833 = vld [vmem:[%s661 + $0x2138] sm:$0xff]
        %v1834 = vld [vmem:[%s661 + $0x2140] sm:$0xff]
        %v1835 = vld [vmem:[%s661 + $0x2148] sm:$0xff]
        %v1836 = vld [vmem:[%s661 + $0x2150] sm:$0xff]
        %v1837 = vld [vmem:[%s661 + $0x2158] sm:$0xff]
        %v1838 = vld [vmem:[%s661 + $0x2160] sm:$0xff]
        %v1839 = vld [vmem:[%s661 + $0x2168] sm:$0xff]
        %v1840 = vld [vmem:[%s661 + $0x2170] sm:$0xff]
        %v1841 = vld [vmem:[%s661 + $0x2178] sm:$0xff]
        %v1842 = vld [vmem:[%s661 + $0x2180] sm:$0xff]
        %v1843 = vld [vmem:[%s661 + $0x2188] sm:$0xff]
        %v1844 = vld [vmem:[%s661 + $0x2190] sm:$0xff]
        %v1845 = vld [vmem:[%s661 + $0x2198] sm:$0xff]
        %v1846 = vld [vmem:[%s661 + $0x21a0] sm:$0xff]
        %v1847 = vld [vmem:[%s661 + $0x21a8] sm:$0xff]
        %v1848 = vld [vmem:[%s661 + $0x21b0] sm:$0xff]
        %v1849 = vld [vmem:[%s661 + $0x21b8] sm:$0xff]
        %v1850 = vld [vmem:[%s661 + $0x21c0] sm:$0xff]
        %v1851 = vld [vmem:[%s661 + $0x21c8] sm:$0xff]
        %v1852 = vld [vmem:[%s661 + $0x21d0] sm:$0xff]
        %v1853 = vld [vmem:[%s661 + $0x21d8] sm:$0xff]
        %v1854 = vld [vmem:[%s661 + $0x21e0] sm:$0xff]
        %v1855 = vld [vmem:[%s661 + $0x21e8] sm:$0xff]
        %v1856 = vld [vmem:[%s661 + $0x21f0] sm:$0xff]
        %v1857 = vld [vmem:[%s661 + $0x21f8] sm:$0xff]
        %v1858 = vld [vmem:[%s661 + $0x2200] sm:$0xff]
        %v1859 = vld [vmem:[%s661 + $0x2208] sm:$0xff]
        %v1860 = vld [vmem:[%s661 + $0x2210] sm:$0xff]
        %v1861 = vld [vmem:[%s661 + $0x2218] sm:$0xff]
        %v1862 = vld [vmem:[%s661 + $0x2220] sm:$0xff]
        %v1863 = vld [vmem:[%s661 + $0x2228] sm:$0xff]
        %v1864 = vld [vmem:[%s661 + $0x2230] sm:$0xff]
        %v1865 = vld [vmem:[%s661 + $0x2238] sm:$0xff]
        %v1866 = vld [vmem:[%s661 + $0x2240] sm:$0xff]
        %v1867 = vld [vmem:[%s661 + $0x2248] sm:$0xff]
        %v1868 = vld [vmem:[%s661 + $0x2250] sm:$0xff]
        %v1869 = vld [vmem:[%s661 + $0x2258] sm:$0xff]
        %v1870 = vld [vmem:[%s661 + $0x2260] sm:$0xff]
        %v1871 = vld [vmem:[%s661 + $0x2268] sm:$0xff]
        %v1872 = vld [vmem:[%s661 + $0x2270] sm:$0xff]
        %v1873 = vld [vmem:[%s661 + $0x2278] sm:$0xff]
        %v1874 = vld [vmem:[%s661 + $0x2280] sm:$0xff]
        %v1875 = vld [vmem:[%s661 + $0x2288] sm:$0xff]
        %v1876 = vld [vmem:[%s661 + $0x2290] sm:$0xff]
        %v1877 = vld [vmem:[%s661 + $0x2298] sm:$0xff]
        %v1878 = vld [vmem:[%s661 + $0x22a0] sm:$0xff]
        %v1879 = vld [vmem:[%s661 + $0x22a8] sm:$0xff]
        %v1880 = vld [vmem:[%s661 + $0x22b0] sm:$0xff]
        %v1881 = vld [vmem:[%s661 + $0x22b8] sm:$0xff]
        %v1882 = vld [vmem:[%s661 + $0x22c0] sm:$0xff]
        %v1883 = vld [vmem:[%s661 + $0x22c8] sm:$0xff]
        %v1884 = vld [vmem:[%s661 + $0x22d0] sm:$0xff]
        %v1885 = vld [vmem:[%s661 + $0x22d8] sm:$0xff]
        %v1886 = vld [vmem:[%s661 + $0x22e0] sm:$0xff]
        %v1887 = vld [vmem:[%s661 + $0x22e8] sm:$0xff]
        %v1888 = vld [vmem:[%s661 + $0x22f0] sm:$0xff]
        %v1889 = vld [vmem:[%s661 + $0x22f8] sm:$0xff]
        %v1890 = vld [vmem:[%s661 + $0x2300] sm:$0xff]
        %v1891 = vld [vmem:[%s661 + $0x2308] sm:$0xff]
        %v1892 = vld [vmem:[%s661 + $0x2310] sm:$0xff]
        %v1893 = vld [vmem:[%s661 + $0x2318] sm:$0xff]
        %v1894 = vld [vmem:[%s661 + $0x2320] sm:$0xff]
        %v1895 = vld [vmem:[%s661 + $0x2328] sm:$0xff]
        %v1896 = vld [vmem:[%s661 + $0x2330] sm:$0xff]
        %v1897 = vld [vmem:[%s661 + $0x2338] sm:$0xff]
        %v1898 = vld [vmem:[%s661 + $0x2340] sm:$0xff]
        %v1899 = vld [vmem:[%s661 + $0x2348] sm:$0xff]
        %v1900 = vld [vmem:[%s661 + $0x2350] sm:$0xff]
        %v1901 = vld [vmem:[%s661 + $0x2358] sm:$0xff]
        %v1902 = vld [vmem:[%s661 + $0x2360] sm:$0xff]
        %v1903 = vld [vmem:[%s661 + $0x2368] sm:$0xff]
        %v1904 = vld [vmem:[%s661 + $0x2370] sm:$0xff]
        %v1905 = vld [vmem:[%s661 + $0x2378] sm:$0xff]
        %v1906 = vld [vmem:[%s661 + $0x2380] sm:$0xff]
        %v1907 = vld [vmem:[%s661 + $0x2388] sm:$0xff]
        %v1908 = vld [vmem:[%s661 + $0x2390] sm:$0xff]
        %v1909 = vld [vmem:[%s661 + $0x2398] sm:$0xff]
        %v1910 = vld [vmem:[%s661 + $0x23a0] sm:$0xff]
        %v1911 = vld [vmem:[%s661 + $0x23a8] sm:$0xff]
        %v1912 = vld [vmem:[%s661 + $0x23b0] sm:$0xff]
        %v1913 = vld [vmem:[%s661 + $0x23b8] sm:$0xff]
        %v1914 = vld [vmem:[%s661 + $0x23c0] sm:$0xff]
        %v1915 = vld [vmem:[%s661 + $0x23c8] sm:$0xff]
        %v1916 = vld [vmem:[%s661 + $0x23d0] sm:$0xff]
        %v1917 = vld [vmem:[%s661 + $0x23d8] sm:$0xff]
        %v1918 = vld [vmem:[%s661 + $0x23e0] sm:$0xff]
        %v1919 = vld [vmem:[%s661 + $0x23e8] sm:$0xff]
        %v1920 = vld [vmem:[%s661 + $0x23f0] sm:$0xff]
        %v1921 = vld [vmem:[%s661 + $0x23f8] sm:$0xff]
        %v1922 = vld [vmem:[%s661 + $0x2400] sm:$0xff]
        %v1923 = vld [vmem:[%s661 + $0x2408] sm:$0xff]
        %v1924 = vld [vmem:[%s661 + $0x2410] sm:$0xff]
        %v1925 = vld [vmem:[%s661 + $0x2418] sm:$0xff]
        %v1926 = vld [vmem:[%s661 + $0x2420] sm:$0xff]
        %v1927 = vld [vmem:[%s661 + $0x2428] sm:$0xff]
        %v1928 = vld [vmem:[%s661 + $0x2430] sm:$0xff]
        %v1929 = vld [vmem:[%s661 + $0x2438] sm:$0xff]
        %v1930 = vld [vmem:[%s661 + $0x2440] sm:$0xff]
        %v1931 = vld [vmem:[%s661 + $0x2448] sm:$0xff]
        %v1932 = vld [vmem:[%s661 + $0x2450] sm:$0xff]
        %v1933 = vld [vmem:[%s661 + $0x2458] sm:$0xff]
        %v1934 = vld [vmem:[%s661 + $0x2460] sm:$0xff]
        %v1935 = vld [vmem:[%s661 + $0x2468] sm:$0xff]
        %v1936 = vld [vmem:[%s661 + $0x2470] sm:$0xff]
        %v1937 = vld [vmem:[%s661 + $0x2478] sm:$0xff]
        %v1938 = vld [vmem:[%s661 + $0x2480] sm:$0xff]
        %v1939 = vld [vmem:[%s661 + $0x2488] sm:$0xff]
        %v1940 = vld [vmem:[%s661 + $0x2490] sm:$0xff]
        %v1941 = vld [vmem:[%s661 + $0x2498] sm:$0xff]
        %v1942 = vld [vmem:[%s661 + $0x24a0] sm:$0xff]
        %v1943 = vld [vmem:[%s661 + $0x24a8] sm:$0xff]
        %v1944 = vld [vmem:[%s661 + $0x24b0] sm:$0xff]
        %v1945 = vld [vmem:[%s661 + $0x24b8] sm:$0xff]
        %v1946 = vld [vmem:[%s661 + $0x24c0] sm:$0xff]
        %v1947 = vld [vmem:[%s661 + $0x24c8] sm:$0xff]
        %v1948 = vld [vmem:[%s661 + $0x24d0] sm:$0xff]
        %v1949 = vld [vmem:[%s661 + $0x24d8] sm:$0xff]
        %v1950 = vld [vmem:[%s661 + $0x24e0] sm:$0xff]
        %v1951 = vld [vmem:[%s661 + $0x24e8] sm:$0xff]
        %v1952 = vld [vmem:[%s661 + $0x24f0] sm:$0xff]
        %v1953 = vld [vmem:[%s661 + $0x24f8] sm:$0xff]
        %v1954 = vld [vmem:[%s661 + $0x2500] sm:$0xff]
        %v1955 = vld [vmem:[%s661 + $0x2508] sm:$0xff]
        %v1956 = vld [vmem:[%s661 + $0x2510] sm:$0xff]
        %v1957 = vld [vmem:[%s661 + $0x2518] sm:$0xff]
        %v1958 = vld [vmem:[%s661 + $0x2520] sm:$0xff]
        %v1959 = vld [vmem:[%s661 + $0x2528] sm:$0xff]
        %v1960 = vld [vmem:[%s661 + $0x2530] sm:$0xff]
        %v1961 = vld [vmem:[%s661 + $0x2538] sm:$0xff]
        %v1962 = vld [vmem:[%s661 + $0x2540] sm:$0xff]
        %v1963 = vld [vmem:[%s661 + $0x2548] sm:$0xff]
        %v1964 = vld [vmem:[%s661 + $0x2550] sm:$0xff]
        %v1965 = vld [vmem:[%s661 + $0x2558] sm:$0xff]
        %v1966 = vld [vmem:[%s661 + $0x2560] sm:$0xff]
        %v1967 = vld [vmem:[%s661 + $0x2568] sm:$0xff]
        %v1968 = vld [vmem:[%s661 + $0x2570] sm:$0xff]
        %v1969 = vld [vmem:[%s661 + $0x2578] sm:$0xff]
        %v1970 = vld [vmem:[%s661 + $0x2580] sm:$0xff]
        %v1971 = vld [vmem:[%s661 + $0x2588] sm:$0xff]
        %v1972 = vld [vmem:[%s661 + $0x2590] sm:$0xff]
        %v1973 = vld [vmem:[%s661 + $0x2598] sm:$0xff]
        %v1974 = vld [vmem:[%s661 + $0x25a0] sm:$0xff]
        %v1975 = vld [vmem:[%s661 + $0x25a8] sm:$0xff]
        %v1976 = vld [vmem:[%s661 + $0x25b0] sm:$0xff]
        %v1977 = vld [vmem:[%s661 + $0x25b8] sm:$0xff]
        %v1978 = vld [vmem:[%s661 + $0x25c0] sm:$0xff]
        %v1979 = vld [vmem:[%s661 + $0x25c8] sm:$0xff]
        %v1980 = vld [vmem:[%s661 + $0x25d0] sm:$0xff]
        %v1981 = vld [vmem:[%s661 + $0x25d8] sm:$0xff]
        %v1982 = vld [vmem:[%s661 + $0x25e0] sm:$0xff]
        %v1983 = vld [vmem:[%s661 + $0x25e8] sm:$0xff]
        %v1984 = vld [vmem:[%s661 + $0x25f0] sm:$0xff]
        %v1985 = vld [vmem:[%s661 + $0x25f8] sm:$0xff]
        %v1989 = vlaneseq
        %v1990 = vshrl.u32 %v1989, 7
        %v1991 = vsub.s32 0, %v1990
        %v1992 = vrot.slane %v767, %v1991
        %v1993 = vlaneseq
        %v1994 = vshrl.u32 %v1993, 7
        %v1995 = vsub.s32 1, %v1994
        %v1996 = vrot.slane %v767, %v1995
        %v1997 = vlaneseq
        %v1998 = vshrl.u32 %v1997, 7
        %v1999 = vsub.s32 2, %v1998
        %v2000 = vrot.slane %v767, %v1999
        %v2001 = vlaneseq
        %v2002 = vshrl.u32 %v2001, 7
        %v2003 = vsub.s32 3, %v2002
        %v2004 = vrot.slane %v767, %v2003
        %v2005 = vlaneseq
        %v2006 = vshrl.u32 %v2005, 7
        %v2007 = vsub.s32 4, %v2006
        %v2008 = vrot.slane %v767, %v2007
        %v2009 = vlaneseq
        %v2010 = vshrl.u32 %v2009, 7
        %v2011 = vsub.s32 5, %v2010
        %v2012 = vrot.slane %v767, %v2011
        %v2013 = vlaneseq
        %v2014 = vshrl.u32 %v2013, 7
        %v2015 = vsub.s32 6, %v2014
        %v2016 = vrot.slane %v767, %v2015
        %v2017 = vlaneseq
        %v2018 = vshrl.u32 %v2017, 7
        %v2019 = vsub.s32 7, %v2018
        %v2020 = vrot.slane %v767, %v2019
        %v2021 = vlaneseq
        %v2022 = vshrl.u32 %v2021, 7
        %v2023 = vsub.s32 0, %v2022
        %v2024 = vrot.slane %v768, %v2023
        %v2025 = vlaneseq
        %v2026 = vshrl.u32 %v2025, 7
        %v2027 = vsub.s32 1, %v2026
        %v2028 = vrot.slane %v768, %v2027
        %v2029 = vlaneseq
        %v2030 = vshrl.u32 %v2029, 7
        %v2031 = vsub.s32 2, %v2030
        %v2032 = vrot.slane %v768, %v2031
        %v2033 = vlaneseq
        %v2034 = vshrl.u32 %v2033, 7
        %v2035 = vsub.s32 3, %v2034
        %v2036 = vrot.slane %v768, %v2035
        %v2037 = vlaneseq
        %v2038 = vshrl.u32 %v2037, 7
        %v2039 = vsub.s32 4, %v2038
        %v2040 = vrot.slane %v768, %v2039
        %v2041 = vlaneseq
        %v2042 = vshrl.u32 %v2041, 7
        %v2043 = vsub.s32 5, %v2042
        %v2044 = vrot.slane %v768, %v2043
        %v2045 = vlaneseq
        %v2046 = vshrl.u32 %v2045, 7
        %v2047 = vsub.s32 6, %v2046
        %v2048 = vrot.slane %v768, %v2047
        %v2049 = vlaneseq
        %v2050 = vshrl.u32 %v2049, 7
        %v2051 = vsub.s32 7, %v2050
        %v2052 = vrot.slane %v768, %v2051
        %v2053 = vlaneseq
        %v2054 = vshrl.u32 %v2053, 7
        %v2055 = vsub.s32 0, %v2054
        %v2056 = vrot.slane %v769, %v2055
        %v2057 = vlaneseq
        %v2058 = vshrl.u32 %v2057, 7
        %v2059 = vsub.s32 1, %v2058
        %v2060 = vrot.slane %v769, %v2059
        %v2061 = vlaneseq
        %v2062 = vshrl.u32 %v2061, 7
        %v2063 = vsub.s32 2, %v2062
        %v2064 = vrot.slane %v769, %v2063
        %2084 = vmatprep.subr.mxu0 %v771
        %2085 = vmatpush1.msra.mxu0 %v770
        %2086 = vmatprep.subr.mxu0 %v775
        %2087 = vmatpush1.msra.mxu0 %v774
        %2088 = vmatprep.subr.mxu0 %v779
        %2089 = vmatpush1.msra.mxu0 %v778
        %2090 = vmatprep.subr.mxu0 %v783
        %2091 = vmatpush1.msra.mxu0 %v782
        %2092 = vmatprep.subr.mxu0 %v787
        %2093 = vmatpush1.msra.mxu0 %v786
        %2094 = vmatprep.subr.mxu0 %v791
        %2095 = vmatpush1.msra.mxu0 %v790
        %2096 = vmatprep.subr.mxu0 %v795
        %2097 = vmatpush1.msra.mxu0 %v794
        %2098 = vmatprep.subr.mxu0 %v799
        %2099 = vmatpush1.msra.mxu0 %v798
        %2100 = vmatprep.subr.mxu0 %v803
        %2101 = vmatpush1.msra.mxu0 %v802
        %2102 = vmatprep.subr.mxu0 %v807
        %2103 = vmatpush1.msra.mxu0 %v806
        %2104 = vmatprep.subr.mxu0 %v811
        %2105 = vmatpush1.msra.mxu0 %v810
        %2106 = vmatprep.subr.mxu0 %v815
        %2107 = vmatpush1.msra.mxu0 %v814
        %2108 = vmatprep.subr.mxu0 %v819
        %2109 = vmatpush1.msra.mxu0 %v818
        %2110 = vmatprep.subr.mxu0 %v823
        %2111 = vmatpush1.msra.mxu0 %v822
        %2112 = vmatprep.subr.mxu0 %v827
        %2113 = vmatpush1.msra.mxu0 %v826
        %2114 = vmatprep.subr.mxu0 %v831
        %2115 = vmatpush1.msra.mxu0 %v830
        %2116 = vmatprep.subr.mxu0 %v835
        %2117 = vmatpush1.msra.mxu0 %v834
        %2118 = vmatprep.subr.mxu0 %v839
        %2119 = vmatpush1.msra.mxu0 %v838
        %2120 = vmatprep.subr.mxu0 %v843
        %2121 = vmatpush1.msra.mxu0 %v842
        %2122 = vmatprep.subr.mxu0 %v847
        %2123 = vmatpush1.msra.mxu0 %v846
        %2124 = vmatprep.subr.mxu0 %v851
        %2125 = vmatpush1.msra.mxu0 %v850
        %2126 = vmatprep.subr.mxu0 %v855
        %2127 = vmatpush1.msra.mxu0 %v854
        %2128 = vmatprep.subr.mxu0 %v859
        %2129 = vmatpush1.msra.mxu0 %v858
        %2130 = vmatprep.subr.mxu0 %v863
        %2131 = vmatpush1.msra.mxu0 %v862
        %2132 = vmatprep.subr.mxu0 %v867
        %2133 = vmatpush1.msra.mxu0 %v866
        %2134 = vmatprep.subr.mxu0 %v871
        %2135 = vmatpush1.msra.mxu0 %v870
        %2136 = vmatprep.subr.mxu0 %v875
        %2137 = vmatpush1.msra.mxu0 %v874
        %2138 = vmatprep.subr.mxu0 %v879
        %2139 = vmatpush1.msra.mxu0 %v878
        %2140 = vmatprep.subr.mxu0 %v883
        %2141 = vmatpush1.msra.mxu0 %v882
        %2142 = vmatprep.subr.mxu0 %v887
        %2143 = vmatpush1.msra.mxu0 %v886
        %2144 = vmatprep.subr.mxu0 %v891
        %2145 = vmatpush1.msra.mxu0 %v890
        %2146 = vmatprep.subr.mxu0 %v895
        %2147 = vmatpush1.msra.mxu0 %v894
        %2148 = vmatprep.mubr.f32.mxu0 %v1996
        %2149 = vmatmul.mubr.f32.gmra.mrb[0].mxu0 %v1992
        %v2150 = vpop.f32.mrb[0].mxu0
        %v2151 = vadd.f32 0.0, %v2150
        %v2152 = vpop.f32.mrb[0].mxu0
        %v2153 = vadd.f32 0.0, %v2152
        %2154 = vdwg.mxu0
        %2155 = vmatprep.subr.mxu0 %v899
        %2156 = vmatpush1.msra.mxu0 %v898
        %2157 = vmatprep.subr.mxu0 %v903
        %2158 = vmatpush1.msra.mxu0 %v902
        %2159 = vmatprep.subr.mxu0 %v907
        %2160 = vmatpush1.msra.mxu0 %v906
        %2161 = vmatprep.subr.mxu0 %v911
        %2162 = vmatpush1.msra.mxu0 %v910
        %2163 = vmatprep.subr.mxu0 %v915
        %2164 = vmatpush1.msra.mxu0 %v914
        %2165 = vmatprep.subr.mxu0 %v919
        %2166 = vmatpush1.msra.mxu0 %v918
        %2167 = vmatprep.subr.mxu0 %v923
        %2168 = vmatpush1.msra.mxu0 %v922
        %2169 = vmatprep.subr.mxu0 %v927
        %2170 = vmatpush1.msra.mxu0 %v926
        %2171 = vmatprep.subr.mxu0 %v931
        %2172 = vmatpush1.msra.mxu0 %v930
        %2173 = vmatprep.subr.mxu0 %v935
        %2174 = vmatpush1.msra.mxu0 %v934
        %2175 = vmatprep.subr.mxu0 %v939
        %2176 = vmatpush1.msra.mxu0 %v938
        %2177 = vmatprep.subr.mxu0 %v943
        %2178 = vmatpush1.msra.mxu0 %v942
        %2179 = vmatprep.subr.mxu0 %v947
        %2180 = vmatpush1.msra.mxu0 %v946
        %2181 = vmatprep.subr.mxu0 %v951
        %2182 = vmatpush1.msra.mxu0 %v950
        %2183 = vmatprep.subr.mxu0 %v955
        %2184 = vmatpush1.msra.mxu0 %v954
        %2185 = vmatprep.subr.mxu0 %v959
        %2186 = vmatpush1.msra.mxu0 %v958
        %2187 = vmatprep.subr.mxu0 %v963
        %2188 = vmatpush1.msra.mxu0 %v962
        %2189 = vmatprep.subr.mxu0 %v967
        %2190 = vmatpush1.msra.mxu0 %v966
        %2191 = vmatprep.subr.mxu0 %v971
        %2192 = vmatpush1.msra.mxu0 %v970
        %2193 = vmatprep.subr.mxu0 %v975
        %2194 = vmatpush1.msra.mxu0 %v974
        %2195 = vmatprep.subr.mxu0 %v979
        %2196 = vmatpush1.msra.mxu0 %v978
        %2197 = vmatprep.subr.mxu0 %v983
        %2198 = vmatpush1.msra.mxu0 %v982
        %2199 = vmatprep.subr.mxu0 %v987
        %2200 = vmatpush1.msra.mxu0 %v986
        %2201 = vmatprep.subr.mxu0 %v991
        %2202 = vmatpush1.msra.mxu0 %v990
        %2203 = vmatprep.subr.mxu0 %v995
        %2204 = vmatpush1.msra.mxu0 %v994
        %2205 = vmatprep.subr.mxu0 %v999
        %2206 = vmatpush1.msra.mxu0 %v998
        %2207 = vmatprep.subr.mxu0 %v1003
        %2208 = vmatpush1.msra.mxu0 %v1002
        %2209 = vmatprep.subr.mxu0 %v1007
        %2210 = vmatpush1.msra.mxu0 %v1006
        %2211 = vmatprep.subr.mxu0 %v1011
        %2212 = vmatpush1.msra.mxu0 %v1010
        %2213 = vmatprep.subr.mxu0 %v1015
        %2214 = vmatpush1.msra.mxu0 %v1014
        %2215 = vmatprep.subr.mxu0 %v1019
        %2216 = vmatpush1.msra.mxu0 %v1018
        %2217 = vmatprep.subr.mxu0 %v1023
        %2218 = vmatpush1.msra.mxu0 %v1022
        %2219 = vmatprep.mubr.f32.mxu0 %v2004
        %2220 = vmatmul.mubr.f32.gmra.mrb[0].mxu0 %v2000
        %v2221 = vpop.f32.mrb[0].mxu0
        %v2222 = vadd.f32 %v2151, %v2221
        %v2223 = vpop.f32.mrb[0].mxu0
        %v2224 = vadd.f32 %v2153, %v2223
        %2225 = vdwg.mxu0
        %2226 = vmatprep.subr.mxu0 %v1027
        %2227 = vmatpush1.msra.mxu0 %v1026
        %2228 = vmatprep.subr.mxu0 %v1031
        %2229 = vmatpush1.msra.mxu0 %v1030
        %2230 = vmatprep.subr.mxu0 %v1035
        %2231 = vmatpush1.msra.mxu0 %v1034
        %2232 = vmatprep.subr.mxu0 %v1039
        %2233 = vmatpush1.msra.mxu0 %v1038
        %2234 = vmatprep.subr.mxu0 %v1043
        %2235 = vmatpush1.msra.mxu0 %v1042
        %2236 = vmatprep.subr.mxu0 %v1047
        %2237 = vmatpush1.msra.mxu0 %v1046
        %2238 = vmatprep.subr.mxu0 %v1051
        %2239 = vmatpush1.msra.mxu0 %v1050
        %2240 = vmatprep.subr.mxu0 %v1055
        %2241 = vmatpush1.msra.mxu0 %v1054
        %2242 = vmatprep.subr.mxu0 %v1059
        %2243 = vmatpush1.msra.mxu0 %v1058
        %2244 = vmatprep.subr.mxu0 %v1063
        %2245 = vmatpush1.msra.mxu0 %v1062
        %2246 = vmatprep.subr.mxu0 %v1067
        %2247 = vmatpush1.msra.mxu0 %v1066
        %2248 = vmatprep.subr.mxu0 %v1071
        %2249 = vmatpush1.msra.mxu0 %v1070
        %2250 = vmatprep.subr.mxu0 %v1075
        %2251 = vmatpush1.msra.mxu0 %v1074
        %2252 = vmatprep.subr.mxu0 %v1079
        %2253 = vmatpush1.msra.mxu0 %v1078
        %2254 = vmatprep.subr.mxu0 %v1083
        %2255 = vmatpush1.msra.mxu0 %v1082
        %2256 = vmatprep.subr.mxu0 %v1087
        %2257 = vmatpush1.msra.mxu0 %v1086
        %2258 = vmatprep.subr.mxu0 %v1091
        %2259 = vmatpush1.msra.mxu0 %v1090
        %2260 = vmatprep.subr.mxu0 %v1095
        %2261 = vmatpush1.msra.mxu0 %v1094
        %2262 = vmatprep.subr.mxu0 %v1099
        %2263 = vmatpush1.msra.mxu0 %v1098
        %2264 = vmatprep.subr.mxu0 %v1103
        %2265 = vmatpush1.msra.mxu0 %v1102
        %2266 = vmatprep.subr.mxu0 %v1107
        %2267 = vmatpush1.msra.mxu0 %v1106
        %2268 = vmatprep.subr.mxu0 %v1111
        %2269 = vmatpush1.msra.mxu0 %v1110
        %2270 = vmatprep.subr.mxu0 %v1115
        %2271 = vmatpush1.msra.mxu0 %v1114
        %2272 = vmatprep.subr.mxu0 %v1119
        %2273 = vmatpush1.msra.mxu0 %v1118
        %2274 = vmatprep.subr.mxu0 %v1123
        %2275 = vmatpush1.msra.mxu0 %v1122
        %2276 = vmatprep.subr.mxu0 %v1127
        %2277 = vmatpush1.msra.mxu0 %v1126
        %2278 = vmatprep.subr.mxu0 %v1131
        %2279 = vmatpush1.msra.mxu0 %v1130
        %2280 = vmatprep.subr.mxu0 %v1135
        %2281 = vmatpush1.msra.mxu0 %v1134
        %2282 = vmatprep.subr.mxu0 %v1139
        %2283 = vmatpush1.msra.mxu0 %v1138
        %2284 = vmatprep.subr.mxu0 %v1143
        %2285 = vmatpush1.msra.mxu0 %v1142
        %2286 = vmatprep.subr.mxu0 %v1147
        %2287 = vmatpush1.msra.mxu0 %v1146
        %2288 = vmatprep.subr.mxu0 %v1151
        %2289 = vmatpush1.msra.mxu0 %v1150
        %2290 = vmatprep.mubr.f32.mxu0 %v2012
        %2291 = vmatmul.mubr.f32.gmra.mrb[0].mxu0 %v2008
        %v2292 = vpop.f32.mrb[0].mxu0
        %v2293 = vadd.f32 %v2222, %v2292
        %v2294 = vpop.f32.mrb[0].mxu0
        %v2295 = vadd.f32 %v2224, %v2294
        %2296 = vdwg.mxu0
        %2297 = vmatprep.subr.mxu0 %v1155
        %2298 = vmatpush1.msra.mxu0 %v1154
        %2299 = vmatprep.subr.mxu0 %v1159
        %2300 = vmatpush1.msra.mxu0 %v1158
        %2301 = vmatprep.subr.mxu0 %v1163
        %2302 = vmatpush1.msra.mxu0 %v1162
        %2303 = vmatprep.subr.mxu0 %v1167
        %2304 = vmatpush1.msra.mxu0 %v1166
        %2305 = vmatprep.subr.mxu0 %v1171
        %2306 = vmatpush1.msra.mxu0 %v1170
        %2307 = vmatprep.subr.mxu0 %v1175
        %2308 = vmatpush1.msra.mxu0 %v1174
        %2309 = vmatprep.subr.mxu0 %v1179
        %2310 = vmatpush1.msra.mxu0 %v1178
        %2311 = vmatprep.subr.mxu0 %v1183
        %2312 = vmatpush1.msra.mxu0 %v1182
        %2313 = vmatprep.subr.mxu0 %v1187
        %2314 = vmatpush1.msra.mxu0 %v1186
        %2315 = vmatprep.subr.mxu0 %v1191
        %2316 = vmatpush1.msra.mxu0 %v1190
        %2317 = vmatprep.subr.mxu0 %v1195
        %2318 = vmatpush1.msra.mxu0 %v1194
        %2319 = vmatprep.subr.mxu0 %v1199
        %2320 = vmatpush1.msra.mxu0 %v1198
        %2321 = vmatprep.subr.mxu0 %v1203
        %2322 = vmatpush1.msra.mxu0 %v1202
        %2323 = vmatprep.subr.mxu0 %v1207
        %2324 = vmatpush1.msra.mxu0 %v1206
        %2325 = vmatprep.subr.mxu0 %v1211
        %2326 = vmatpush1.msra.mxu0 %v1210
        %2327 = vmatprep.subr.mxu0 %v1215
        %2328 = vmatpush1.msra.mxu0 %v1214
        %2329 = vmatprep.subr.mxu0 %v1219
        %2330 = vmatpush1.msra.mxu0 %v1218
        %2331 = vmatprep.subr.mxu0 %v1223
        %2332 = vmatpush1.msra.mxu0 %v1222
        %2333 = vmatprep.subr.mxu0 %v1227
        %2334 = vmatpush1.msra.mxu0 %v1226
        %2335 = vmatprep.subr.mxu0 %v1231
        %2336 = vmatpush1.msra.mxu0 %v1230
        %2337 = vmatprep.subr.mxu0 %v1235
        %2338 = vmatpush1.msra.mxu0 %v1234
        %2339 = vmatprep.subr.mxu0 %v1239
        %2340 = vmatpush1.msra.mxu0 %v1238
        %2341 = vmatprep.subr.mxu0 %v1243
        %2342 = vmatpush1.msra.mxu0 %v1242
        %2343 = vmatprep.subr.mxu0 %v1247
        %2344 = vmatpush1.msra.mxu0 %v1246
        %2345 = vmatprep.subr.mxu0 %v1251
        %2346 = vmatpush1.msra.mxu0 %v1250
        %2347 = vmatprep.subr.mxu0 %v1255
        %2348 = vmatpush1.msra.mxu0 %v1254
        %2349 = vmatprep.subr.mxu0 %v1259
        %2350 = vmatpush1.msra.mxu0 %v1258
        %2351 = vmatprep.subr.mxu0 %v1263
        %2352 = vmatpush1.msra.mxu0 %v1262
        %2353 = vmatprep.subr.mxu0 %v1267
        %2354 = vmatpush1.msra.mxu0 %v1266
        %2355 = vmatprep.subr.mxu0 %v1271
        %2356 = vmatpush1.msra.mxu0 %v1270
        %2357 = vmatprep.subr.mxu0 %v1275
        %2358 = vmatpush1.msra.mxu0 %v1274
        %2359 = vmatprep.subr.mxu0 %v1279
        %2360 = vmatpush1.msra.mxu0 %v1278
        %2361 = vmatprep.mubr.f32.mxu0 %v2020
        %2362 = vmatmul.mubr.f32.gmra.mrb[0].mxu0 %v2016
        %v2363 = vpop.f32.mrb[0].mxu0
        %v2364 = vadd.f32 %v2293, %v2363
        %v2365 = vpop.f32.mrb[0].mxu0
        %v2366 = vadd.f32 %v2295, %v2365
        %2367 = vdwg.mxu0
        %2368 = vmatprep.subr.mxu0 %v1283
        %2369 = vmatpush1.msra.mxu0 %v1282
        %2370 = vmatprep.subr.mxu0 %v1287
        %2371 = vmatpush1.msra.mxu0 %v1286
        %2372 = vmatprep.subr.mxu0 %v1291
        %2373 = vmatpush1.msra.mxu0 %v1290
        %2374 = vmatprep.subr.mxu0 %v1295
        %2375 = vmatpush1.msra.mxu0 %v1294
        %2376 = vmatprep.subr.mxu0 %v1299
        %2377 = vmatpush1.msra.mxu0 %v1298
        %2378 = vmatprep.subr.mxu0 %v1303
        %2379 = vmatpush1.msra.mxu0 %v1302
        %2380 = vmatprep.subr.mxu0 %v1307
        %2381 = vmatpush1.msra.mxu0 %v1306
        %2382 = vmatprep.subr.mxu0 %v1311
        %2383 = vmatpush1.msra.mxu0 %v1310
        %2384 = vmatprep.subr.mxu0 %v1315
        %2385 = vmatpush1.msra.mxu0 %v1314
        %2386 = vmatprep.subr.mxu0 %v1319
        %2387 = vmatpush1.msra.mxu0 %v1318
        %2388 = vmatprep.subr.mxu0 %v1323
        %2389 = vmatpush1.msra.mxu0 %v1322
        %2390 = vmatprep.subr.mxu0 %v1327
        %2391 = vmatpush1.msra.mxu0 %v1326
        %2392 = vmatprep.subr.mxu0 %v1331
        %2393 = vmatpush1.msra.mxu0 %v1330
        %2394 = vmatprep.subr.mxu0 %v1335
        %2395 = vmatpush1.msra.mxu0 %v1334
        %2396 = vmatprep.subr.mxu0 %v1339
        %2397 = vmatpush1.msra.mxu0 %v1338
        %2398 = vmatprep.subr.mxu0 %v1343
        %2399 = vmatpush1.msra.mxu0 %v1342
        %2400 = vmatprep.subr.mxu0 %v1347
        %2401 = vmatpush1.msra.mxu0 %v1346
        %2402 = vmatprep.subr.mxu0 %v1351
        %2403 = vmatpush1.msra.mxu0 %v1350
        %2404 = vmatprep.subr.mxu0 %v1355
        %2405 = vmatpush1.msra.mxu0 %v1354
        %2406 = vmatprep.subr.mxu0 %v1359
        %2407 = vmatpush1.msra.mxu0 %v1358
        %2408 = vmatprep.subr.mxu0 %v1363
        %2409 = vmatpush1.msra.mxu0 %v1362
        %2410 = vmatprep.subr.mxu0 %v1367
        %2411 = vmatpush1.msra.mxu0 %v1366
        %2412 = vmatprep.subr.mxu0 %v1371
        %2413 = vmatpush1.msra.mxu0 %v1370
        %2414 = vmatprep.subr.mxu0 %v1375
        %2415 = vmatpush1.msra.mxu0 %v1374
        %2416 = vmatprep.subr.mxu0 %v1379
        %2417 = vmatpush1.msra.mxu0 %v1378
        %2418 = vmatprep.subr.mxu0 %v1383
        %2419 = vmatpush1.msra.mxu0 %v1382
        %2420 = vmatprep.subr.mxu0 %v1387
        %2421 = vmatpush1.msra.mxu0 %v1386
        %2422 = vmatprep.subr.mxu0 %v1391
        %2423 = vmatpush1.msra.mxu0 %v1390
        %2424 = vmatprep.subr.mxu0 %v1395
        %2425 = vmatpush1.msra.mxu0 %v1394
        %2426 = vmatprep.subr.mxu0 %v1399
        %2427 = vmatpush1.msra.mxu0 %v1398
        %2428 = vmatprep.subr.mxu0 %v1403
        %2429 = vmatpush1.msra.mxu0 %v1402
        %2430 = vmatprep.subr.mxu0 %v1407
        %2431 = vmatpush1.msra.mxu0 %v1406
        %2432 = vmatprep.mubr.f32.mxu0 %v2028
        %2433 = vmatmul.mubr.f32.gmra.mrb[0].mxu0 %v2024
        %v2434 = vpop.f32.mrb[0].mxu0
        %v2435 = vadd.f32 %v2364, %v2434
        %v2436 = vpop.f32.mrb[0].mxu0
        %v2437 = vadd.f32 %v2366, %v2436
        %2438 = vdwg.mxu0
        %2439 = vmatprep.subr.mxu0 %v1411
        %2440 = vmatpush1.msra.mxu0 %v1410
        %2441 = vmatprep.subr.mxu0 %v1415
        %2442 = vmatpush1.msra.mxu0 %v1414
        %2443 = vmatprep.subr.mxu0 %v1419
        %2444 = vmatpush1.msra.mxu0 %v1418
        %2445 = vmatprep.subr.mxu0 %v1423
        %2446 = vmatpush1.msra.mxu0 %v1422
        %2447 = vmatprep.subr.mxu0 %v1427
        %2448 = vmatpush1.msra.mxu0 %v1426
        %2449 = vmatprep.subr.mxu0 %v1431
        %2450 = vmatpush1.msra.mxu0 %v1430
        %2451 = vmatprep.subr.mxu0 %v1435
        %2452 = vmatpush1.msra.mxu0 %v1434
        %2453 = vmatprep.subr.mxu0 %v1439
        %2454 = vmatpush1.msra.mxu0 %v1438
        %2455 = vmatprep.subr.mxu0 %v1443
        %2456 = vmatpush1.msra.mxu0 %v1442
        %2457 = vmatprep.subr.mxu0 %v1447
        %2458 = vmatpush1.msra.mxu0 %v1446
        %2459 = vmatprep.subr.mxu0 %v1451
        %2460 = vmatpush1.msra.mxu0 %v1450
        %2461 = vmatprep.subr.mxu0 %v1455
        %2462 = vmatpush1.msra.mxu0 %v1454
        %2463 = vmatprep.subr.mxu0 %v1459
        %2464 = vmatpush1.msra.mxu0 %v1458
        %2465 = vmatprep.subr.mxu0 %v1463
        %2466 = vmatpush1.msra.mxu0 %v1462
        %2467 = vmatprep.subr.mxu0 %v1467
        %2468 = vmatpush1.msra.mxu0 %v1466
        %2469 = vmatprep.subr.mxu0 %v1471
        %2470 = vmatpush1.msra.mxu0 %v1470
        %2471 = vmatprep.subr.mxu0 %v1475
        %2472 = vmatpush1.msra.mxu0 %v1474
        %2473 = vmatprep.subr.mxu0 %v1479
        %2474 = vmatpush1.msra.mxu0 %v1478
        %2475 = vmatprep.subr.mxu0 %v1483
        %2476 = vmatpush1.msra.mxu0 %v1482
        %2477 = vmatprep.subr.mxu0 %v1487
        %2478 = vmatpush1.msra.mxu0 %v1486
        %2479 = vmatprep.subr.mxu0 %v1491
        %2480 = vmatpush1.msra.mxu0 %v1490
        %2481 = vmatprep.subr.mxu0 %v1495
        %2482 = vmatpush1.msra.mxu0 %v1494
        %2483 = vmatprep.subr.mxu0 %v1499
        %2484 = vmatpush1.msra.mxu0 %v1498
        %2485 = vmatprep.subr.mxu0 %v1503
        %2486 = vmatpush1.msra.mxu0 %v1502
        %2487 = vmatprep.subr.mxu0 %v1507
        %2488 = vmatpush1.msra.mxu0 %v1506
        %2489 = vmatprep.subr.mxu0 %v1511
        %2490 = vmatpush1.msra.mxu0 %v1510
        %2491 = vmatprep.subr.mxu0 %v1515
        %2492 = vmatpush1.msra.mxu0 %v1514
        %2493 = vmatprep.subr.mxu0 %v1519
        %2494 = vmatpush1.msra.mxu0 %v1518
        %2495 = vmatprep.subr.mxu0 %v1523
        %2496 = vmatpush1.msra.mxu0 %v1522
        %2497 = vmatprep.subr.mxu0 %v1527
        %2498 = vmatpush1.msra.mxu0 %v1526
        %2499 = vmatprep.subr.mxu0 %v1531
        %2500 = vmatpush1.msra.mxu0 %v1530
        %2501 = vmatprep.subr.mxu0 %v1535
        %2502 = vmatpush1.msra.mxu0 %v1534
        %2503 = vmatprep.mubr.f32.mxu0 %v2036
        %2504 = vmatmul.mubr.f32.gmra.mrb[0].mxu0 %v2032
        %v2505 = vpop.f32.mrb[0].mxu0
        %v2506 = vadd.f32 %v2435, %v2505
        %v2507 = vpop.f32.mrb[0].mxu0
        %v2508 = vadd.f32 %v2437, %v2507
        %2509 = vdwg.mxu0
        %2510 = vmatprep.subr.mxu0 %v1539
        %2511 = vmatpush1.msra.mxu0 %v1538
        %2512 = vmatprep.subr.mxu0 %v1543
        %2513 = vmatpush1.msra.mxu0 %v1542
        %2514 = vmatprep.subr.mxu0 %v1547
        %2515 = vmatpush1.msra.mxu0 %v1546
        %2516 = vmatprep.subr.mxu0 %v1551
        %2517 = vmatpush1.msra.mxu0 %v1550
        %2518 = vmatprep.subr.mxu0 %v1555
        %2519 = vmatpush1.msra.mxu0 %v1554
        %2520 = vmatprep.subr.mxu0 %v1559
        %2521 = vmatpush1.msra.mxu0 %v1558
        %2522 = vmatprep.subr.mxu0 %v1563
        %2523 = vmatpush1.msra.mxu0 %v1562
        %2524 = vmatprep.subr.mxu0 %v1567
        %2525 = vmatpush1.msra.mxu0 %v1566
        %2526 = vmatprep.subr.mxu0 %v1571
        %2527 = vmatpush1.msra.mxu0 %v1570
        %2528 = vmatprep.subr.mxu0 %v1575
        %2529 = vmatpush1.msra.mxu0 %v1574
        %2530 = vmatprep.subr.mxu0 %v1579
        %2531 = vmatpush1.msra.mxu0 %v1578
        %2532 = vmatprep.subr.mxu0 %v1583
        %2533 = vmatpush1.msra.mxu0 %v1582
        %2534 = vmatprep.subr.mxu0 %v1587
        %2535 = vmatpush1.msra.mxu0 %v1586
        %2536 = vmatprep.subr.mxu0 %v1591
        %2537 = vmatpush1.msra.mxu0 %v1590
        %2538 = vmatprep.subr.mxu0 %v1595
        %2539 = vmatpush1.msra.mxu0 %v1594
        %2540 = vmatprep.subr.mxu0 %v1599
        %2541 = vmatpush1.msra.mxu0 %v1598
        %2542 = vmatprep.subr.mxu0 %v1603
        %2543 = vmatpush1.msra.mxu0 %v1602
        %2544 = vmatprep.subr.mxu0 %v1607
        %2545 = vmatpush1.msra.mxu0 %v1606
        %2546 = vmatprep.subr.mxu0 %v1611
        %2547 = vmatpush1.msra.mxu0 %v1610
        %2548 = vmatprep.subr.mxu0 %v1615
        %2549 = vmatpush1.msra.mxu0 %v1614
        %2550 = vmatprep.subr.mxu0 %v1619
        %2551 = vmatpush1.msra.mxu0 %v1618
        %2552 = vmatprep.subr.mxu0 %v1623
        %2553 = vmatpush1.msra.mxu0 %v1622
        %2554 = vmatprep.subr.mxu0 %v1627
        %2555 = vmatpush1.msra.mxu0 %v1626
        %2556 = vmatprep.subr.mxu0 %v1631
        %2557 = vmatpush1.msra.mxu0 %v1630
        %2558 = vmatprep.subr.mxu0 %v1635
        %2559 = vmatpush1.msra.mxu0 %v1634
        %2560 = vmatprep.subr.mxu0 %v1639
        %2561 = vmatpush1.msra.mxu0 %v1638
        %2562 = vmatprep.subr.mxu0 %v1643
        %2563 = vmatpush1.msra.mxu0 %v1642
        %2564 = vmatprep.subr.mxu0 %v1647
        %2565 = vmatpush1.msra.mxu0 %v1646
        %2566 = vmatprep.subr.mxu0 %v1651
        %2567 = vmatpush1.msra.mxu0 %v1650
        %2568 = vmatprep.subr.mxu0 %v1655
        %2569 = vmatpush1.msra.mxu0 %v1654
        %2570 = vmatprep.subr.mxu0 %v1659
        %2571 = vmatpush1.msra.mxu0 %v1658
        %2572 = vmatprep.subr.mxu0 %v1663
        %2573 = vmatpush1.msra.mxu0 %v1662
        %2574 = vmatprep.mubr.f32.mxu0 %v2044
        %2575 = vmatmul.mubr.f32.gmra.mrb[0].mxu0 %v2040
        %v2576 = vpop.f32.mrb[0].mxu0
        %v2577 = vadd.f32 %v2506, %v2576
        %v2578 = vpop.f32.mrb[0].mxu0
        %v2579 = vadd.f32 %v2508, %v2578
        %2580 = vdwg.mxu0
        %2581 = vmatprep.subr.mxu0 %v1667
        %2582 = vmatpush1.msra.mxu0 %v1666
        %2583 = vmatprep.subr.mxu0 %v1671
        %2584 = vmatpush1.msra.mxu0 %v1670
        %2585 = vmatprep.subr.mxu0 %v1675
        %2586 = vmatpush1.msra.mxu0 %v1674
        %2587 = vmatprep.subr.mxu0 %v1679
        %2588 = vmatpush1.msra.mxu0 %v1678
        %2589 = vmatprep.subr.mxu0 %v1683
        %2590 = vmatpush1.msra.mxu0 %v1682
        %2591 = vmatprep.subr.mxu0 %v1687
        %2592 = vmatpush1.msra.mxu0 %v1686
        %2593 = vmatprep.subr.mxu0 %v1691
        %2594 = vmatpush1.msra.mxu0 %v1690
        %2595 = vmatprep.subr.mxu0 %v1695
        %2596 = vmatpush1.msra.mxu0 %v1694
        %2597 = vmatprep.subr.mxu0 %v1699
        %2598 = vmatpush1.msra.mxu0 %v1698
        %2599 = vmatprep.subr.mxu0 %v1703
        %2600 = vmatpush1.msra.mxu0 %v1702
        %2601 = vmatprep.subr.mxu0 %v1707
        %2602 = vmatpush1.msra.mxu0 %v1706
        %2603 = vmatprep.subr.mxu0 %v1711
        %2604 = vmatpush1.msra.mxu0 %v1710
        %2605 = vmatprep.subr.mxu0 %v1715
        %2606 = vmatpush1.msra.mxu0 %v1714
        %2607 = vmatprep.subr.mxu0 %v1719
        %2608 = vmatpush1.msra.mxu0 %v1718
        %2609 = vmatprep.subr.mxu0 %v1723
        %2610 = vmatpush1.msra.mxu0 %v1722
        %2611 = vmatprep.subr.mxu0 %v1727
        %2612 = vmatpush1.msra.mxu0 %v1726
        %2613 = vmatprep.subr.mxu0 %v1731
        %2614 = vmatpush1.msra.mxu0 %v1730
        %2615 = vmatprep.subr.mxu0 %v1735
        %2616 = vmatpush1.msra.mxu0 %v1734
        %2617 = vmatprep.subr.mxu0 %v1739
        %2618 = vmatpush1.msra.mxu0 %v1738
        %2619 = vmatprep.subr.mxu0 %v1743
        %2620 = vmatpush1.msra.mxu0 %v1742
        %2621 = vmatprep.subr.mxu0 %v1747
        %2622 = vmatpush1.msra.mxu0 %v1746
        %2623 = vmatprep.subr.mxu0 %v1751
        %2624 = vmatpush1.msra.mxu0 %v1750
        %2625 = vmatprep.subr.mxu0 %v1755
        %2626 = vmatpush1.msra.mxu0 %v1754
        %2627 = vmatprep.subr.mxu0 %v1759
        %2628 = vmatpush1.msra.mxu0 %v1758
        %2629 = vmatprep.subr.mxu0 %v1763
        %2630 = vmatpush1.msra.mxu0 %v1762
        %2631 = vmatprep.subr.mxu0 %v1767
        %2632 = vmatpush1.msra.mxu0 %v1766
        %2633 = vmatprep.subr.mxu0 %v1771
        %2634 = vmatpush1.msra.mxu0 %v1770
        %2635 = vmatprep.subr.mxu0 %v1775
        %2636 = vmatpush1.msra.mxu0 %v1774
        %2637 = vmatprep.subr.mxu0 %v1779
        %2638 = vmatpush1.msra.mxu0 %v1778
        %2639 = vmatprep.subr.mxu0 %v1783
        %2640 = vmatpush1.msra.mxu0 %v1782
        %2641 = vmatprep.subr.mxu0 %v1787
        %2642 = vmatpush1.msra.mxu0 %v1786
        %2643 = vmatprep.subr.mxu0 %v1791
        %2644 = vmatpush1.msra.mxu0 %v1790
        %2645 = vmatprep.mubr.f32.mxu0 %v2052
        %2646 = vmatmul.mubr.f32.gmra.mrb[0].mxu0 %v2048
        %v2647 = vpop.f32.mrb[0].mxu0
        %v2648 = vadd.f32 %v2577, %v2647
        %v2649 = vpop.f32.mrb[0].mxu0
        %v2650 = vadd.f32 %v2579, %v2649
        %2651 = vdwg.mxu0
        %2652 = vmatprep.subr.mxu0 %v1795
        %2653 = vmatpush1.msra.mxu0 %v1794
        %2654 = vmatprep.subr.mxu0 %v1799
        %2655 = vmatpush1.msra.mxu0 %v1798
        %2656 = vmatprep.subr.mxu0 %v1803
        %2657 = vmatpush1.msra.mxu0 %v1802
        %2658 = vmatprep.subr.mxu0 %v1807
        %2659 = vmatpush1.msra.mxu0 %v1806
        %2660 = vmatprep.subr.mxu0 %v1811
        %2661 = vmatpush1.msra.mxu0 %v1810
        %2662 = vmatprep.subr.mxu0 %v1815
        %2663 = vmatpush1.msra.mxu0 %v1814
        %2664 = vmatprep.subr.mxu0 %v1819
        %2665 = vmatpush1.msra.mxu0 %v1818
        %2666 = vmatprep.subr.mxu0 %v1823
        %2667 = vmatpush1.msra.mxu0 %v1822
        %2668 = vmatprep.subr.mxu0 %v1827
        %2669 = vmatpush1.msra.mxu0 %v1826
        %2670 = vmatprep.subr.mxu0 %v1831
        %2671 = vmatpush1.msra.mxu0 %v1830
        %2672 = vmatprep.subr.mxu0 %v1835
        %2673 = vmatpush1.msra.mxu0 %v1834
        %2674 = vmatprep.subr.mxu0 %v1839
        %2675 = vmatpush1.msra.mxu0 %v1838
        %2676 = vmatprep.subr.mxu0 %v1843
        %2677 = vmatpush1.msra.mxu0 %v1842
        %2678 = vmatprep.subr.mxu0 %v1847
        %2679 = vmatpush1.msra.mxu0 %v1846
        %2680 = vmatprep.subr.mxu0 %v1851
        %2681 = vmatpush1.msra.mxu0 %v1850
        %2682 = vmatprep.subr.mxu0 %v1855
        %2683 = vmatpush1.msra.mxu0 %v1854
        %2684 = vmatprep.subr.mxu0 %v1859
        %2685 = vmatpush1.msra.mxu0 %v1858
        %2686 = vmatprep.subr.mxu0 %v1863
        %2687 = vmatpush1.msra.mxu0 %v1862
        %2688 = vmatprep.subr.mxu0 %v1867
        %2689 = vmatpush1.msra.mxu0 %v1866
        %2690 = vmatprep.subr.mxu0 %v1871
        %2691 = vmatpush1.msra.mxu0 %v1870
        %2692 = vmatprep.subr.mxu0 %v1875
        %2693 = vmatpush1.msra.mxu0 %v1874
        %2694 = vmatprep.subr.mxu0 %v1879
        %2695 = vmatpush1.msra.mxu0 %v1878
        %2696 = vmatprep.subr.mxu0 %v1883
        %2697 = vmatpush1.msra.mxu0 %v1882
        %2698 = vmatprep.subr.mxu0 %v1887
        %2699 = vmatpush1.msra.mxu0 %v1886
        %2700 = vmatprep.subr.mxu0 %v1891
        %2701 = vmatpush1.msra.mxu0 %v1890
        %2702 = vmatprep.subr.mxu0 %v1895
        %2703 = vmatpush1.msra.mxu0 %v1894
        %2704 = vmatprep.subr.mxu0 %v1899
        %2705 = vmatpush1.msra.mxu0 %v1898
        %2706 = vmatprep.subr.mxu0 %v1903
        %2707 = vmatpush1.msra.mxu0 %v1902
        %2708 = vmatprep.subr.mxu0 %v1907
        %2709 = vmatpush1.msra.mxu0 %v1906
        %2710 = vmatprep.subr.mxu0 %v1911
        %2711 = vmatpush1.msra.mxu0 %v1910
        %2712 = vmatprep.subr.mxu0 %v1915
        %2713 = vmatpush1.msra.mxu0 %v1914
        %2714 = vmatprep.subr.mxu0 %v1919
        %2715 = vmatpush1.msra.mxu0 %v1918
        %2716 = vmatprep.mubr.f32.mxu0 %v2060
        %2717 = vmatmul.mubr.f32.gmra.mrb[0].mxu0 %v2056
        %v2718 = vpop.f32.mrb[0].mxu0
        %v2719 = vadd.f32 %v2648, %v2718
        %v2720 = vpop.f32.mrb[0].mxu0
        %v2721 = vadd.f32 %v2650, %v2720
        %2722 = vdwg.mxu0
        %2723 = vmatprep.subr.mxu0 %v1923
        %2724 = vmatpush1.msra.mxu0 %v1922
        %2725 = vmatprep.subr.mxu0 %v1927
        %2726 = vmatpush1.msra.mxu0 %v1926
        %2727 = vmatprep.subr.mxu0 %v1931
        %2728 = vmatpush1.msra.mxu0 %v1930
        %2729 = vmatprep.subr.mxu0 %v1935
        %2730 = vmatpush1.msra.mxu0 %v1934
        %2731 = vmatprep.subr.mxu0 %v1939
        %2732 = vmatpush1.msra.mxu0 %v1938
        %2733 = vmatprep.subr.mxu0 %v1943
        %2734 = vmatpush1.msra.mxu0 %v1942
        %2735 = vmatprep.subr.mxu0 %v1947
        %2736 = vmatpush1.msra.mxu0 %v1946
        %2737 = vmatprep.subr.mxu0 %v1951
        %2738 = vmatpush1.msra.mxu0 %v1950
        %2739 = vmatprep.subr.mxu0 %v1955
        %2740 = vmatpush1.msra.mxu0 %v1954
        %2741 = vmatprep.subr.mxu0 %v1959
        %2742 = vmatpush1.msra.mxu0 %v1958
        %2743 = vmatprep.subr.mxu0 %v1963
        %2744 = vmatpush1.msra.mxu0 %v1962
        %2745 = vmatprep.subr.mxu0 %v1967
        %2746 = vmatpush1.msra.mxu0 %v1966
        %2747 = vmatprep.subr.mxu0 %v1971
        %2748 = vmatpush1.msra.mxu0 %v1970
        %2749 = vmatprep.subr.mxu0 %v1975
        %2750 = vmatpush1.msra.mxu0 %v1974
        %2751 = vmatprep.subr.mxu0 %v1979
        %2752 = vmatpush1.msra.mxu0 %v1978
        %2753 = vmatprep.subr.mxu0 %v1983
        %2754 = vmatpush1.msra.mxu0 %v1982
        %2755 = vmatprep.subr.mxu0 0.0
        %2756 = vmatpush1.msra.mxu0 0.0
        %2757 = vmatprep.subr.mxu0 0.0
        %2758 = vmatpush1.msra.mxu0 0.0
        %2759 = vmatprep.subr.mxu0 0.0
        %2760 = vmatpush1.msra.mxu0 0.0
        %2761 = vmatprep.subr.mxu0 0.0
        %2762 = vmatpush1.msra.mxu0 0.0
        %2763 = vmatprep.subr.mxu0 0.0
        %2764 = vmatpush1.msra.mxu0 0.0
        %2765 = vmatprep.subr.mxu0 0.0
        %2766 = vmatpush1.msra.mxu0 0.0
        %2767 = vmatprep.subr.mxu0 0.0
        %2768 = vmatpush1.msra.mxu0 0.0
        %2769 = vmatprep.subr.mxu0 0.0
        %2770 = vmatpush1.msra.mxu0 0.0
        %2771 = vmatprep.subr.mxu0 0.0
        %2772 = vmatpush1.msra.mxu0 0.0
        %2773 = vmatprep.subr.mxu0 0.0
        %2774 = vmatpush1.msra.mxu0 0.0
        %2775 = vmatprep.subr.mxu0 0.0
        %2776 = vmatpush1.msra.mxu0 0.0
        %2777 = vmatprep.subr.mxu0 0.0
        %2778 = vmatpush1.msra.mxu0 0.0
        %2779 = vmatprep.subr.mxu0 0.0
        %2780 = vmatpush1.msra.mxu0 0.0
        %2781 = vmatprep.subr.mxu0 0.0
        %2782 = vmatpush1.msra.mxu0 0.0
        %2783 = vmatprep.subr.mxu0 0.0
        %2784 = vmatpush1.msra.mxu0 0.0
        %2785 = vmatprep.subr.mxu0 0.0
        %2786 = vmatpush1.msra.mxu0 0.0
        %2787 = vmatprep.mubr.f32.mxu0 0.0
        %2788 = vmatmul.mubr.f32.gmra.mrb[0].mxu0 %v2064
        %v2789 = vpop.f32.mrb[0].mxu0
        %v2790 = vadd.f32 %v2719, %v2789
        %v2791 = vpop.f32.mrb[0].mxu0
        %v2792 = vadd.f32 %v2721, %v2791
        %2793 = vdwg.mxu0
        %2794 = vmatprep.subr.mxu0 %v773
        %2795 = vmatpush1.msra.mxu0 %v772
        %2796 = vmatprep.subr.mxu0 %v777
        %2797 = vmatpush1.msra.mxu0 %v776
        %2798 = vmatprep.subr.mxu0 %v781
        %2799 = vmatpush1.msra.mxu0 %v780
        %2800 = vmatprep.subr.mxu0 %v785
        %2801 = vmatpush1.msra.mxu0 %v784
        %2802 = vmatprep.subr.mxu0 %v789
        %2803 = vmatpush1.msra.mxu0 %v788
        %2804 = vmatprep.subr.mxu0 %v793
        %2805 = vmatpush1.msra.mxu0 %v792
        %2806 = vmatprep.subr.mxu0 %v797
        %2807 = vmatpush1.msra.mxu0 %v796
        %2808 = vmatprep.subr.mxu0 %v801
        %2809 = vmatpush1.msra.mxu0 %v800
        %2810 = vmatprep.subr.mxu0 %v805
        %2811 = vmatpush1.msra.mxu0 %v804
        %2812 = vmatprep.subr.mxu0 %v809
        %2813 = vmatpush1.msra.mxu0 %v808
        %2814 = vmatprep.subr.mxu0 %v813
        %2815 = vmatpush1.msra.mxu0 %v812
        %2816 = vmatprep.subr.mxu0 %v817
        %2817 = vmatpush1.msra.mxu0 %v816
        %2818 = vmatprep.subr.mxu0 %v821
        %2819 = vmatpush1.msra.mxu0 %v820
        %2820 = vmatprep.subr.mxu0 %v825
        %2821 = vmatpush1.msra.mxu0 %v824
        %2822 = vmatprep.subr.mxu0 %v829
        %2823 = vmatpush1.msra.mxu0 %v828
        %2824 = vmatprep.subr.mxu0 %v833
        %2825 = vmatpush1.msra.mxu0 %v832
        %2826 = vmatprep.subr.mxu0 %v837
        %2827 = vmatpush1.msra.mxu0 %v836
        %2828 = vmatprep.subr.mxu0 %v841
        %2829 = vmatpush1.msra.mxu0 %v840
        %2830 = vmatprep.subr.mxu0 %v845
        %2831 = vmatpush1.msra.mxu0 %v844
        %2832 = vmatprep.subr.mxu0 %v849
        %2833 = vmatpush1.msra.mxu0 %v848
        %2834 = vmatprep.subr.mxu0 %v853
        %2835 = vmatpush1.msra.mxu0 %v852
        %2836 = vmatprep.subr.mxu0 %v857
        %2837 = vmatpush1.msra.mxu0 %v856
        %2838 = vmatprep.subr.mxu0 %v861
        %2839 = vmatpush1.msra.mxu0 %v860
        %2840 = vmatprep.subr.mxu0 %v865
        %2841 = vmatpush1.msra.mxu0 %v864
        %2842 = vmatprep.subr.mxu0 %v869
        %2843 = vmatpush1.msra.mxu0 %v868
        %2844 = vmatprep.subr.mxu0 %v873
        %2845 = vmatpush1.msra.mxu0 %v872
        %2846 = vmatprep.subr.mxu0 %v877
        %2847 = vmatpush1.msra.mxu0 %v876
        %2848 = vmatprep.subr.mxu0 %v881
        %2849 = vmatpush1.msra.mxu0 %v880
        %2850 = vmatprep.subr.mxu0 %v885
        %2851 = vmatpush1.msra.mxu0 %v884
        %2852 = vmatprep.subr.mxu0 %v889
        %2853 = vmatpush1.msra.mxu0 %v888
        %2854 = vmatprep.subr.mxu0 %v893
        %2855 = vmatpush1.msra.mxu0 %v892
        %2856 = vmatprep.subr.mxu0 %v897
        %2857 = vmatpush1.msra.mxu0 %v896
        %2858 = vmatprep.mubr.f32.mxu0 %v1996
        %2859 = vmatmul.mubr.f32.gmra.mrb[0].mxu0 %v1992
        %v2860 = vpop.f32.mrb[0].mxu0
        %v2861 = vadd.f32 0.0, %v2860
        %v2862 = vpop.f32.mrb[0].mxu0
        %v2863 = vadd.f32 0.0, %v2862
        %2864 = vdwg.mxu0
        %2865 = vmatprep.subr.mxu0 %v901
        %2866 = vmatpush1.msra.mxu0 %v900
        %2867 = vmatprep.subr.mxu0 %v905
        %2868 = vmatpush1.msra.mxu0 %v904
        %2869 = vmatprep.subr.mxu0 %v909
        %2870 = vmatpush1.msra.mxu0 %v908
        %2871 = vmatprep.subr.mxu0 %v913
        %2872 = vmatpush1.msra.mxu0 %v912
        %2873 = vmatprep.subr.mxu0 %v917
        %2874 = vmatpush1.msra.mxu0 %v916
        %2875 = vmatprep.subr.mxu0 %v921
        %2876 = vmatpush1.msra.mxu0 %v920
        %2877 = vmatprep.subr.mxu0 %v925
        %2878 = vmatpush1.msra.mxu0 %v924
        %2879 = vmatprep.subr.mxu0 %v929
        %2880 = vmatpush1.msra.mxu0 %v928
        %2881 = vmatprep.subr.mxu0 %v933
        %2882 = vmatpush1.msra.mxu0 %v932
        %2883 = vmatprep.subr.mxu0 %v937
        %2884 = vmatpush1.msra.mxu0 %v936
        %2885 = vmatprep.subr.mxu0 %v941
        %2886 = vmatpush1.msra.mxu0 %v940
        %2887 = vmatprep.subr.mxu0 %v945
        %2888 = vmatpush1.msra.mxu0 %v944
        %2889 = vmatprep.subr.mxu0 %v949
        %2890 = vmatpush1.msra.mxu0 %v948
        %2891 = vmatprep.subr.mxu0 %v953
        %2892 = vmatpush1.msra.mxu0 %v952
        %2893 = vmatprep.subr.mxu0 %v957
        %2894 = vmatpush1.msra.mxu0 %v956
        %2895 = vmatprep.subr.mxu0 %v961
        %2896 = vmatpush1.msra.mxu0 %v960
        %2897 = vmatprep.subr.mxu0 %v965
        %2898 = vmatpush1.msra.mxu0 %v964
        %2899 = vmatprep.subr.mxu0 %v969
        %2900 = vmatpush1.msra.mxu0 %v968
        %2901 = vmatprep.subr.mxu0 %v973
        %2902 = vmatpush1.msra.mxu0 %v972
        %2903 = vmatprep.subr.mxu0 %v977
        %2904 = vmatpush1.msra.mxu0 %v976
        %2905 = vmatprep.subr.mxu0 %v981
        %2906 = vmatpush1.msra.mxu0 %v980
        %2907 = vmatprep.subr.mxu0 %v985
        %2908 = vmatpush1.msra.mxu0 %v984
        %2909 = vmatprep.subr.mxu0 %v989
        %2910 = vmatpush1.msra.mxu0 %v988
        %2911 = vmatprep.subr.mxu0 %v993
        %2912 = vmatpush1.msra.mxu0 %v992
        %2913 = vmatprep.subr.mxu0 %v997
        %2914 = vmatpush1.msra.mxu0 %v996
        %2915 = vmatprep.subr.mxu0 %v1001
        %2916 = vmatpush1.msra.mxu0 %v1000
        %2917 = vmatprep.subr.mxu0 %v1005
        %2918 = vmatpush1.msra.mxu0 %v1004
        %2919 = vmatprep.subr.mxu0 %v1009
        %2920 = vmatpush1.msra.mxu0 %v1008
        %2921 = vmatprep.subr.mxu0 %v1013
        %2922 = vmatpush1.msra.mxu0 %v1012
        %2923 = vmatprep.subr.mxu0 %v1017
        %2924 = vmatpush1.msra.mxu0 %v1016
        %2925 = vmatprep.subr.mxu0 %v1021
        %2926 = vmatpush1.msra.mxu0 %v1020
        %2927 = vmatprep.subr.mxu0 %v1025
        %2928 = vmatpush1.msra.mxu0 %v1024
        %2929 = vmatprep.mubr.f32.mxu0 %v2004
        %2930 = vmatmul.mubr.f32.gmra.mrb[0].mxu0 %v2000
        %v2931 = vpop.f32.mrb[0].mxu0
        %v2932 = vadd.f32 %v2861, %v2931
        %v2933 = vpop.f32.mrb[0].mxu0
        %v2934 = vadd.f32 %v2863, %v2933
        %2935 = vdwg.mxu0
        %2936 = vmatprep.subr.mxu0 %v1029
        %2937 = vmatpush1.msra.mxu0 %v1028
        %2938 = vmatprep.subr.mxu0 %v1033
        %2939 = vmatpush1.msra.mxu0 %v1032
        %2940 = vmatprep.subr.mxu0 %v1037
        %2941 = vmatpush1.msra.mxu0 %v1036
        %2942 = vmatprep.subr.mxu0 %v1041
        %2943 = vmatpush1.msra.mxu0 %v1040
        %2944 = vmatprep.subr.mxu0 %v1045
        %2945 = vmatpush1.msra.mxu0 %v1044
        %2946 = vmatprep.subr.mxu0 %v1049
        %2947 = vmatpush1.msra.mxu0 %v1048
        %2948 = vmatprep.subr.mxu0 %v1053
        %2949 = vmatpush1.msra.mxu0 %v1052
        %2950 = vmatprep.subr.mxu0 %v1057
        %2951 = vmatpush1.msra.mxu0 %v1056
        %2952 = vmatprep.subr.mxu0 %v1061
        %2953 = vmatpush1.msra.mxu0 %v1060
        %2954 = vmatprep.subr.mxu0 %v1065
        %2955 = vmatpush1.msra.mxu0 %v1064
        %2956 = vmatprep.subr.mxu0 %v1069
        %2957 = vmatpush1.msra.mxu0 %v1068
        %2958 = vmatprep.subr.mxu0 %v1073
        %2959 = vmatpush1.msra.mxu0 %v1072
        %2960 = vmatprep.subr.mxu0 %v1077
        %2961 = vmatpush1.msra.mxu0 %v1076
        %2962 = vmatprep.subr.mxu0 %v1081
        %2963 = vmatpush1.msra.mxu0 %v1080
        %2964 = vmatprep.subr.mxu0 %v1085
        %2965 = vmatpush1.msra.mxu0 %v1084
        %2966 = vmatprep.subr.mxu0 %v1089
        %2967 = vmatpush1.msra.mxu0 %v1088
        %2968 = vmatprep.subr.mxu0 %v1093
        %2969 = vmatpush1.msra.mxu0 %v1092
        %2970 = vmatprep.subr.mxu0 %v1097
        %2971 = vmatpush1.msra.mxu0 %v1096
        %2972 = vmatprep.subr.mxu0 %v1101
        %2973 = vmatpush1.msra.mxu0 %v1100
        %2974 = vmatprep.subr.mxu0 %v1105
        %2975 = vmatpush1.msra.mxu0 %v1104
        %2976 = vmatprep.subr.mxu0 %v1109
        %2977 = vmatpush1.msra.mxu0 %v1108
        %2978 = vmatprep.subr.mxu0 %v1113
        %2979 = vmatpush1.msra.mxu0 %v1112
        %2980 = vmatprep.subr.mxu0 %v1117
        %2981 = vmatpush1.msra.mxu0 %v1116
        %2982 = vmatprep.subr.mxu0 %v1121
        %2983 = vmatpush1.msra.mxu0 %v1120
        %2984 = vmatprep.subr.mxu0 %v1125
        %2985 = vmatpush1.msra.mxu0 %v1124
        %2986 = vmatprep.subr.mxu0 %v1129
        %2987 = vmatpush1.msra.mxu0 %v1128
        %2988 = vmatprep.subr.mxu0 %v1133
        %2989 = vmatpush1.msra.mxu0 %v1132
        %2990 = vmatprep.subr.mxu0 %v1137
        %2991 = vmatpush1.msra.mxu0 %v1136
        %2992 = vmatprep.subr.mxu0 %v1141
        %2993 = vmatpush1.msra.mxu0 %v1140
        %2994 = vmatprep.subr.mxu0 %v1145
        %2995 = vmatpush1.msra.mxu0 %v1144
        %2996 = vmatprep.subr.mxu0 %v1149
        %2997 = vmatpush1.msra.mxu0 %v1148
        %2998 = vmatprep.subr.mxu0 %v1153
        %2999 = vmatpush1.msra.mxu0 %v1152
        %3000 = vmatprep.mubr.f32.mxu0 %v2012
        %3001 = vmatmul.mubr.f32.gmra.mrb[0].mxu0 %v2008
        %v3002 = vpop.f32.mrb[0].mxu0
        %v3003 = vadd.f32 %v2932, %v3002
        %v3004 = vpop.f32.mrb[0].mxu0
        %v3005 = vadd.f32 %v2934, %v3004
        %3006 = vdwg.mxu0
        %3007 = vmatprep.subr.mxu0 %v1157
        %3008 = vmatpush1.msra.mxu0 %v1156
        %3009 = vmatprep.subr.mxu0 %v1161
        %3010 = vmatpush1.msra.mxu0 %v1160
        %3011 = vmatprep.subr.mxu0 %v1165
        %3012 = vmatpush1.msra.mxu0 %v1164
        %3013 = vmatprep.subr.mxu0 %v1169
        %3014 = vmatpush1.msra.mxu0 %v1168
        %3015 = vmatprep.subr.mxu0 %v1173
        %3016 = vmatpush1.msra.mxu0 %v1172
        %3017 = vmatprep.subr.mxu0 %v1177
        %3018 = vmatpush1.msra.mxu0 %v1176
        %3019 = vmatprep.subr.mxu0 %v1181
        %3020 = vmatpush1.msra.mxu0 %v1180
        %3021 = vmatprep.subr.mxu0 %v1185
        %3022 = vmatpush1.msra.mxu0 %v1184
        %3023 = vmatprep.subr.mxu0 %v1189
        %3024 = vmatpush1.msra.mxu0 %v1188
        %3025 = vmatprep.subr.mxu0 %v1193
        %3026 = vmatpush1.msra.mxu0 %v1192
        %3027 = vmatprep.subr.mxu0 %v1197
        %3028 = vmatpush1.msra.mxu0 %v1196
        %3029 = vmatprep.subr.mxu0 %v1201
        %3030 = vmatpush1.msra.mxu0 %v1200
        %3031 = vmatprep.subr.mxu0 %v1205
        %3032 = vmatpush1.msra.mxu0 %v1204
        %3033 = vmatprep.subr.mxu0 %v1209
        %3034 = vmatpush1.msra.mxu0 %v1208
        %3035 = vmatprep.subr.mxu0 %v1213
        %3036 = vmatpush1.msra.mxu0 %v1212
        %3037 = vmatprep.subr.mxu0 %v1217
        %3038 = vmatpush1.msra.mxu0 %v1216
        %3039 = vmatprep.subr.mxu0 %v1221
        %3040 = vmatpush1.msra.mxu0 %v1220
        %3041 = vmatprep.subr.mxu0 %v1225
        %3042 = vmatpush1.msra.mxu0 %v1224
        %3043 = vmatprep.subr.mxu0 %v1229
        %3044 = vmatpush1.msra.mxu0 %v1228
        %3045 = vmatprep.subr.mxu0 %v1233
        %3046 = vmatpush1.msra.mxu0 %v1232
        %3047 = vmatprep.subr.mxu0 %v1237
        %3048 = vmatpush1.msra.mxu0 %v1236
        %3049 = vmatprep.subr.mxu0 %v1241
        %3050 = vmatpush1.msra.mxu0 %v1240
        %3051 = vmatprep.subr.mxu0 %v1245
        %3052 = vmatpush1.msra.mxu0 %v1244
        %3053 = vmatprep.subr.mxu0 %v1249
        %3054 = vmatpush1.msra.mxu0 %v1248
        %3055 = vmatprep.subr.mxu0 %v1253
        %3056 = vmatpush1.msra.mxu0 %v1252
        %3057 = vmatprep.subr.mxu0 %v1257
        %3058 = vmatpush1.msra.mxu0 %v1256
        %3059 = vmatprep.subr.mxu0 %v1261
        %3060 = vmatpush1.msra.mxu0 %v1260
        %3061 = vmatprep.subr.mxu0 %v1265
        %3062 = vmatpush1.msra.mxu0 %v1264
        %3063 = vmatprep.subr.mxu0 %v1269
        %3064 = vmatpush1.msra.mxu0 %v1268
        %3065 = vmatprep.subr.mxu0 %v1273
        %3066 = vmatpush1.msra.mxu0 %v1272
        %3067 = vmatprep.subr.mxu0 %v1277
        %3068 = vmatpush1.msra.mxu0 %v1276
        %3069 = vmatprep.subr.mxu0 %v1281
        %3070 = vmatpush1.msra.mxu0 %v1280
        %3071 = vmatprep.mubr.f32.mxu0 %v2020
        %3072 = vmatmul.mubr.f32.gmra.mrb[0].mxu0 %v2016
        %v3073 = vpop.f32.mrb[0].mxu0
        %v3074 = vadd.f32 %v3003, %v3073
        %v3075 = vpop.f32.mrb[0].mxu0
        %v3076 = vadd.f32 %v3005, %v3075
        %3077 = vdwg.mxu0
        %3078 = vmatprep.subr.mxu0 %v1285
        %3079 = vmatpush1.msra.mxu0 %v1284
        %3080 = vmatprep.subr.mxu0 %v1289
        %3081 = vmatpush1.msra.mxu0 %v1288
        %3082 = vmatprep.subr.mxu0 %v1293
        %3083 = vmatpush1.msra.mxu0 %v1292
        %3084 = vmatprep.subr.mxu0 %v1297
        %3085 = vmatpush1.msra.mxu0 %v1296
        %3086 = vmatprep.subr.mxu0 %v1301
        %3087 = vmatpush1.msra.mxu0 %v1300
        %3088 = vmatprep.subr.mxu0 %v1305
        %3089 = vmatpush1.msra.mxu0 %v1304
        %3090 = vmatprep.subr.mxu0 %v1309
        %3091 = vmatpush1.msra.mxu0 %v1308
        %3092 = vmatprep.subr.mxu0 %v1313
        %3093 = vmatpush1.msra.mxu0 %v1312
        %3094 = vmatprep.subr.mxu0 %v1317
        %3095 = vmatpush1.msra.mxu0 %v1316
        %3096 = vmatprep.subr.mxu0 %v1321
        %3097 = vmatpush1.msra.mxu0 %v1320
        %3098 = vmatprep.subr.mxu0 %v1325
        %3099 = vmatpush1.msra.mxu0 %v1324
        %3100 = vmatprep.subr.mxu0 %v1329
        %3101 = vmatpush1.msra.mxu0 %v1328
        %3102 = vmatprep.subr.mxu0 %v1333
        %3103 = vmatpush1.msra.mxu0 %v1332
        %3104 = vmatprep.subr.mxu0 %v1337
        %3105 = vmatpush1.msra.mxu0 %v1336
        %3106 = vmatprep.subr.mxu0 %v1341
        %3107 = vmatpush1.msra.mxu0 %v1340
        %3108 = vmatprep.subr.mxu0 %v1345
        %3109 = vmatpush1.msra.mxu0 %v1344
        %3110 = vmatprep.subr.mxu0 %v1349
        %3111 = vmatpush1.msra.mxu0 %v1348
        %3112 = vmatprep.subr.mxu0 %v1353
        %3113 = vmatpush1.msra.mxu0 %v1352
        %3114 = vmatprep.subr.mxu0 %v1357
        %3115 = vmatpush1.msra.mxu0 %v1356
        %3116 = vmatprep.subr.mxu0 %v1361
        %3117 = vmatpush1.msra.mxu0 %v1360
        %3118 = vmatprep.subr.mxu0 %v1365
        %3119 = vmatpush1.msra.mxu0 %v1364
        %3120 = vmatprep.subr.mxu0 %v1369
        %3121 = vmatpush1.msra.mxu0 %v1368
        %3122 = vmatprep.subr.mxu0 %v1373
        %3123 = vmatpush1.msra.mxu0 %v1372
        %3124 = vmatprep.subr.mxu0 %v1377
        %3125 = vmatpush1.msra.mxu0 %v1376
        %3126 = vmatprep.subr.mxu0 %v1381
        %3127 = vmatpush1.msra.mxu0 %v1380
        %3128 = vmatprep.subr.mxu0 %v1385
        %3129 = vmatpush1.msra.mxu0 %v1384
        %3130 = vmatprep.subr.mxu0 %v1389
        %3131 = vmatpush1.msra.mxu0 %v1388
        %3132 = vmatprep.subr.mxu0 %v1393
        %3133 = vmatpush1.msra.mxu0 %v1392
        %3134 = vmatprep.subr.mxu0 %v1397
        %3135 = vmatpush1.msra.mxu0 %v1396
        %3136 = vmatprep.subr.mxu0 %v1401
        %3137 = vmatpush1.msra.mxu0 %v1400
        %3138 = vmatprep.subr.mxu0 %v1405
        %3139 = vmatpush1.msra.mxu0 %v1404
        %3140 = vmatprep.subr.mxu0 %v1409
        %3141 = vmatpush1.msra.mxu0 %v1408
        %3142 = vmatprep.mubr.f32.mxu0 %v2028
        %3143 = vmatmul.mubr.f32.gmra.mrb[0].mxu0 %v2024
        %v3144 = vpop.f32.mrb[0].mxu0
        %v3145 = vadd.f32 %v3074, %v3144
        %v3146 = vpop.f32.mrb[0].mxu0
        %v3147 = vadd.f32 %v3076, %v3146
        %3148 = vdwg.mxu0
        %3149 = vmatprep.subr.mxu0 %v1413
        %3150 = vmatpush1.msra.mxu0 %v1412
        %3151 = vmatprep.subr.mxu0 %v1417
        %3152 = vmatpush1.msra.mxu0 %v1416
        %3153 = vmatprep.subr.mxu0 %v1421
        %3154 = vmatpush1.msra.mxu0 %v1420
        %3155 = vmatprep.subr.mxu0 %v1425
        %3156 = vmatpush1.msra.mxu0 %v1424
        %3157 = vmatprep.subr.mxu0 %v1429
        %3158 = vmatpush1.msra.mxu0 %v1428
        %3159 = vmatprep.subr.mxu0 %v1433
        %3160 = vmatpush1.msra.mxu0 %v1432
        %3161 = vmatprep.subr.mxu0 %v1437
        %3162 = vmatpush1.msra.mxu0 %v1436
        %3163 = vmatprep.subr.mxu0 %v1441
        %3164 = vmatpush1.msra.mxu0 %v1440
        %3165 = vmatprep.subr.mxu0 %v1445
        %3166 = vmatpush1.msra.mxu0 %v1444
        %3167 = vmatprep.subr.mxu0 %v1449
        %3168 = vmatpush1.msra.mxu0 %v1448
        %3169 = vmatprep.subr.mxu0 %v1453
        %3170 = vmatpush1.msra.mxu0 %v1452
        %3171 = vmatprep.subr.mxu0 %v1457
        %3172 = vmatpush1.msra.mxu0 %v1456
        %3173 = vmatprep.subr.mxu0 %v1461
        %3174 = vmatpush1.msra.mxu0 %v1460
        %3175 = vmatprep.subr.mxu0 %v1465
        %3176 = vmatpush1.msra.mxu0 %v1464
        %3177 = vmatprep.subr.mxu0 %v1469
        %3178 = vmatpush1.msra.mxu0 %v1468
        %3179 = vmatprep.subr.mxu0 %v1473
        %3180 = vmatpush1.msra.mxu0 %v1472
        %3181 = vmatprep.subr.mxu0 %v1477
        %3182 = vmatpush1.msra.mxu0 %v1476
        %3183 = vmatprep.subr.mxu0 %v1481
        %3184 = vmatpush1.msra.mxu0 %v1480
        %3185 = vmatprep.subr.mxu0 %v1485
        %3186 = vmatpush1.msra.mxu0 %v1484
        %3187 = vmatprep.subr.mxu0 %v1489
        %3188 = vmatpush1.msra.mxu0 %v1488
        %3189 = vmatprep.subr.mxu0 %v1493
        %3190 = vmatpush1.msra.mxu0 %v1492
        %3191 = vmatprep.subr.mxu0 %v1497
        %3192 = vmatpush1.msra.mxu0 %v1496
        %3193 = vmatprep.subr.mxu0 %v1501
        %3194 = vmatpush1.msra.mxu0 %v1500
        %3195 = vmatprep.subr.mxu0 %v1505
        %3196 = vmatpush1.msra.mxu0 %v1504
        %3197 = vmatprep.subr.mxu0 %v1509
        %3198 = vmatpush1.msra.mxu0 %v1508
        %3199 = vmatprep.subr.mxu0 %v1513
        %3200 = vmatpush1.msra.mxu0 %v1512
        %3201 = vmatprep.subr.mxu0 %v1517
        %3202 = vmatpush1.msra.mxu0 %v1516
        %3203 = vmatprep.subr.mxu0 %v1521
        %3204 = vmatpush1.msra.mxu0 %v1520
        %3205 = vmatprep.subr.mxu0 %v1525
        %3206 = vmatpush1.msra.mxu0 %v1524
        %3207 = vmatprep.subr.mxu0 %v1529
        %3208 = vmatpush1.msra.mxu0 %v1528
        %3209 = vmatprep.subr.mxu0 %v1533
        %3210 = vmatpush1.msra.mxu0 %v1532
        %3211 = vmatprep.subr.mxu0 %v1537
        %3212 = vmatpush1.msra.mxu0 %v1536
        %3213 = vmatprep.mubr.f32.mxu0 %v2036
        %3214 = vmatmul.mubr.f32.gmra.mrb[0].mxu0 %v2032
        %v3215 = vpop.f32.mrb[0].mxu0
        %v3216 = vadd.f32 %v3145, %v3215
        %v3217 = vpop.f32.mrb[0].mxu0
        %v3218 = vadd.f32 %v3147, %v3217
        %3219 = vdwg.mxu0
        %3220 = vmatprep.subr.mxu0 %v1541
        %3221 = vmatpush1.msra.mxu0 %v1540
        %3222 = vmatprep.subr.mxu0 %v1545
        %3223 = vmatpush1.msra.mxu0 %v1544
        %3224 = vmatprep.subr.mxu0 %v1549
        %3225 = vmatpush1.msra.mxu0 %v1548
        %3226 = vmatprep.subr.mxu0 %v1553
        %3227 = vmatpush1.msra.mxu0 %v1552
        %3228 = vmatprep.subr.mxu0 %v1557
        %3229 = vmatpush1.msra.mxu0 %v1556
        %3230 = vmatprep.subr.mxu0 %v1561
        %3231 = vmatpush1.msra.mxu0 %v1560
        %3232 = vmatprep.subr.mxu0 %v1565
        %3233 = vmatpush1.msra.mxu0 %v1564
        %3234 = vmatprep.subr.mxu0 %v1569
        %3235 = vmatpush1.msra.mxu0 %v1568
        %3236 = vmatprep.subr.mxu0 %v1573
        %3237 = vmatpush1.msra.mxu0 %v1572
        %3238 = vmatprep.subr.mxu0 %v1577
        %3239 = vmatpush1.msra.mxu0 %v1576
        %3240 = vmatprep.subr.mxu0 %v1581
        %3241 = vmatpush1.msra.mxu0 %v1580
        %3242 = vmatprep.subr.mxu0 %v1585
        %3243 = vmatpush1.msra.mxu0 %v1584
        %3244 = vmatprep.subr.mxu0 %v1589
        %3245 = vmatpush1.msra.mxu0 %v1588
        %3246 = vmatprep.subr.mxu0 %v1593
        %3247 = vmatpush1.msra.mxu0 %v1592
        %3248 = vmatprep.subr.mxu0 %v1597
        %3249 = vmatpush1.msra.mxu0 %v1596
        %3250 = vmatprep.subr.mxu0 %v1601
        %3251 = vmatpush1.msra.mxu0 %v1600
        %3252 = vmatprep.subr.mxu0 %v1605
        %3253 = vmatpush1.msra.mxu0 %v1604
        %3254 = vmatprep.subr.mxu0 %v1609
        %3255 = vmatpush1.msra.mxu0 %v1608
        %3256 = vmatprep.subr.mxu0 %v1613
        %3257 = vmatpush1.msra.mxu0 %v1612
        %3258 = vmatprep.subr.mxu0 %v1617
        %3259 = vmatpush1.msra.mxu0 %v1616
        %3260 = vmatprep.subr.mxu0 %v1621
        %3261 = vmatpush1.msra.mxu0 %v1620
        %3262 = vmatprep.subr.mxu0 %v1625
        %3263 = vmatpush1.msra.mxu0 %v1624
        %3264 = vmatprep.subr.mxu0 %v1629
        %3265 = vmatpush1.msra.mxu0 %v1628
        %3266 = vmatprep.subr.mxu0 %v1633
        %3267 = vmatpush1.msra.mxu0 %v1632
        %3268 = vmatprep.subr.mxu0 %v1637
        %3269 = vmatpush1.msra.mxu0 %v1636
        %3270 = vmatprep.subr.mxu0 %v1641
        %3271 = vmatpush1.msra.mxu0 %v1640
        %3272 = vmatprep.subr.mxu0 %v1645
        %3273 = vmatpush1.msra.mxu0 %v1644
        %3274 = vmatprep.subr.mxu0 %v1649
        %3275 = vmatpush1.msra.mxu0 %v1648
        %3276 = vmatprep.subr.mxu0 %v1653
        %3277 = vmatpush1.msra.mxu0 %v1652
        %3278 = vmatprep.subr.mxu0 %v1657
        %3279 = vmatpush1.msra.mxu0 %v1656
        %3280 = vmatprep.subr.mxu0 %v1661
        %3281 = vmatpush1.msra.mxu0 %v1660
        %3282 = vmatprep.subr.mxu0 %v1665
        %3283 = vmatpush1.msra.mxu0 %v1664
        %3284 = vmatprep.mubr.f32.mxu0 %v2044
        %3285 = vmatmul.mubr.f32.gmra.mrb[0].mxu0 %v2040
        %v3286 = vpop.f32.mrb[0].mxu0
        %v3287 = vadd.f32 %v3216, %v3286
        %v3288 = vpop.f32.mrb[0].mxu0
        %v3289 = vadd.f32 %v3218, %v3288
        %3290 = vdwg.mxu0
        %3291 = vmatprep.subr.mxu0 %v1669
        %3292 = vmatpush1.msra.mxu0 %v1668
        %3293 = vmatprep.subr.mxu0 %v1673
        %3294 = vmatpush1.msra.mxu0 %v1672
        %3295 = vmatprep.subr.mxu0 %v1677
        %3296 = vmatpush1.msra.mxu0 %v1676
        %3297 = vmatprep.subr.mxu0 %v1681
        %3298 = vmatpush1.msra.mxu0 %v1680
        %3299 = vmatprep.subr.mxu0 %v1685
        %3300 = vmatpush1.msra.mxu0 %v1684
        %3301 = vmatprep.subr.mxu0 %v1689
        %3302 = vmatpush1.msra.mxu0 %v1688
        %3303 = vmatprep.subr.mxu0 %v1693
        %3304 = vmatpush1.msra.mxu0 %v1692
        %3305 = vmatprep.subr.mxu0 %v1697
        %3306 = vmatpush1.msra.mxu0 %v1696
        %3307 = vmatprep.subr.mxu0 %v1701
        %3308 = vmatpush1.msra.mxu0 %v1700
        %3309 = vmatprep.subr.mxu0 %v1705
        %3310 = vmatpush1.msra.mxu0 %v1704
        %3311 = vmatprep.subr.mxu0 %v1709
        %3312 = vmatpush1.msra.mxu0 %v1708
        %3313 = vmatprep.subr.mxu0 %v1713
        %3314 = vmatpush1.msra.mxu0 %v1712
        %3315 = vmatprep.subr.mxu0 %v1717
        %3316 = vmatpush1.msra.mxu0 %v1716
        %3317 = vmatprep.subr.mxu0 %v1721
        %3318 = vmatpush1.msra.mxu0 %v1720
        %3319 = vmatprep.subr.mxu0 %v1725
        %3320 = vmatpush1.msra.mxu0 %v1724
        %3321 = vmatprep.subr.mxu0 %v1729
        %3322 = vmatpush1.msra.mxu0 %v1728
        %3323 = vmatprep.subr.mxu0 %v1733
        %3324 = vmatpush1.msra.mxu0 %v1732
        %3325 = vmatprep.subr.mxu0 %v1737
        %3326 = vmatpush1.msra.mxu0 %v1736
        %3327 = vmatprep.subr.mxu0 %v1741
        %3328 = vmatpush1.msra.mxu0 %v1740
        %3329 = vmatprep.subr.mxu0 %v1745
        %3330 = vmatpush1.msra.mxu0 %v1744
        %3331 = vmatprep.subr.mxu0 %v1749
        %3332 = vmatpush1.msra.mxu0 %v1748
        %3333 = vmatprep.subr.mxu0 %v1753
        %3334 = vmatpush1.msra.mxu0 %v1752
        %3335 = vmatprep.subr.mxu0 %v1757
        %3336 = vmatpush1.msra.mxu0 %v1756
        %3337 = vmatprep.subr.mxu0 %v1761
        %3338 = vmatpush1.msra.mxu0 %v1760
        %3339 = vmatprep.subr.mxu0 %v1765
        %3340 = vmatpush1.msra.mxu0 %v1764
        %3341 = vmatprep.subr.mxu0 %v1769
        %3342 = vmatpush1.msra.mxu0 %v1768
        %3343 = vmatprep.subr.mxu0 %v1773
        %3344 = vmatpush1.msra.mxu0 %v1772
        %3345 = vmatprep.subr.mxu0 %v1777
        %3346 = vmatpush1.msra.mxu0 %v1776
        %3347 = vmatprep.subr.mxu0 %v1781
        %3348 = vmatpush1.msra.mxu0 %v1780
        %3349 = vmatprep.subr.mxu0 %v1785
        %3350 = vmatpush1.msra.mxu0 %v1784
        %3351 = vmatprep.subr.mxu0 %v1789
        %3352 = vmatpush1.msra.mxu0 %v1788
        %3353 = vmatprep.subr.mxu0 %v1793
        %3354 = vmatpush1.msra.mxu0 %v1792
        %3355 = vmatprep.mubr.f32.mxu0 %v2052
        %3356 = vmatmul.mubr.f32.gmra.mrb[0].mxu0 %v2048
        %v3357 = vpop.f32.mrb[0].mxu0
        %v3358 = vadd.f32 %v3287, %v3357
        %v3359 = vpop.f32.mrb[0].mxu0
        %v3360 = vadd.f32 %v3289, %v3359
        %3361 = vdwg.mxu0
        %3362 = vmatprep.subr.mxu0 %v1797
        %3363 = vmatpush1.msra.mxu0 %v1796
        %3364 = vmatprep.subr.mxu0 %v1801
        %3365 = vmatpush1.msra.mxu0 %v1800
        %3366 = vmatprep.subr.mxu0 %v1805
        %3367 = vmatpush1.msra.mxu0 %v1804
        %3368 = vmatprep.subr.mxu0 %v1809
        %3369 = vmatpush1.msra.mxu0 %v1808
        %3370 = vmatprep.subr.mxu0 %v1813
        %3371 = vmatpush1.msra.mxu0 %v1812
        %3372 = vmatprep.subr.mxu0 %v1817
        %3373 = vmatpush1.msra.mxu0 %v1816
        %3374 = vmatprep.subr.mxu0 %v1821
        %3375 = vmatpush1.msra.mxu0 %v1820
        %3376 = vmatprep.subr.mxu0 %v1825
        %3377 = vmatpush1.msra.mxu0 %v1824
        %3378 = vmatprep.subr.mxu0 %v1829
        %3379 = vmatpush1.msra.mxu0 %v1828
        %3380 = vmatprep.subr.mxu0 %v1833
        %3381 = vmatpush1.msra.mxu0 %v1832
        %3382 = vmatprep.subr.mxu0 %v1837
        %3383 = vmatpush1.msra.mxu0 %v1836
        %3384 = vmatprep.subr.mxu0 %v1841
        %3385 = vmatpush1.msra.mxu0 %v1840
        %3386 = vmatprep.subr.mxu0 %v1845
        %3387 = vmatpush1.msra.mxu0 %v1844
        %3388 = vmatprep.subr.mxu0 %v1849
        %3389 = vmatpush1.msra.mxu0 %v1848
        %3390 = vmatprep.subr.mxu0 %v1853
        %3391 = vmatpush1.msra.mxu0 %v1852
        %3392 = vmatprep.subr.mxu0 %v1857
        %3393 = vmatpush1.msra.mxu0 %v1856
        %3394 = vmatprep.subr.mxu0 %v1861
        %3395 = vmatpush1.msra.mxu0 %v1860
        %3396 = vmatprep.subr.mxu0 %v1865
        %3397 = vmatpush1.msra.mxu0 %v1864
        %3398 = vmatprep.subr.mxu0 %v1869
        %3399 = vmatpush1.msra.mxu0 %v1868
        %3400 = vmatprep.subr.mxu0 %v1873
        %3401 = vmatpush1.msra.mxu0 %v1872
        %3402 = vmatprep.subr.mxu0 %v1877
        %3403 = vmatpush1.msra.mxu0 %v1876
        %3404 = vmatprep.subr.mxu0 %v1881
        %3405 = vmatpush1.msra.mxu0 %v1880
        %3406 = vmatprep.subr.mxu0 %v1885
        %3407 = vmatpush1.msra.mxu0 %v1884
        %3408 = vmatprep.subr.mxu0 %v1889
        %3409 = vmatpush1.msra.mxu0 %v1888
        %3410 = vmatprep.subr.mxu0 %v1893
        %3411 = vmatpush1.msra.mxu0 %v1892
        %3412 = vmatprep.subr.mxu0 %v1897
        %3413 = vmatpush1.msra.mxu0 %v1896
        %3414 = vmatprep.subr.mxu0 %v1901
        %3415 = vmatpush1.msra.mxu0 %v1900
        %3416 = vmatprep.subr.mxu0 %v1905
        %3417 = vmatpush1.msra.mxu0 %v1904
        %3418 = vmatprep.subr.mxu0 %v1909
        %3419 = vmatpush1.msra.mxu0 %v1908
        %3420 = vmatprep.subr.mxu0 %v1913
        %3421 = vmatpush1.msra.mxu0 %v1912
        %3422 = vmatprep.subr.mxu0 %v1917
        %3423 = vmatpush1.msra.mxu0 %v1916
        %3424 = vmatprep.subr.mxu0 %v1921
        %3425 = vmatpush1.msra.mxu0 %v1920
        %3426 = vmatprep.mubr.f32.mxu0 %v2060
        %3427 = vmatmul.mubr.f32.gmra.mrb[0].mxu0 %v2056
        %v3428 = vpop.f32.mrb[0].mxu0
        %v3429 = vadd.f32 %v3358, %v3428
        %v3430 = vpop.f32.mrb[0].mxu0
        %v3431 = vadd.f32 %v3360, %v3430
        %3432 = vdwg.mxu0
        %3433 = vmatprep.subr.mxu0 %v1925
        %3434 = vmatpush1.msra.mxu0 %v1924
        %3435 = vmatprep.subr.mxu0 %v1929
        %3436 = vmatpush1.msra.mxu0 %v1928
        %3437 = vmatprep.subr.mxu0 %v1933
        %3438 = vmatpush1.msra.mxu0 %v1932
        %3439 = vmatprep.subr.mxu0 %v1937
        %3440 = vmatpush1.msra.mxu0 %v1936
        %3441 = vmatprep.subr.mxu0 %v1941
        %3442 = vmatpush1.msra.mxu0 %v1940
        %3443 = vmatprep.subr.mxu0 %v1945
        %3444 = vmatpush1.msra.mxu0 %v1944
        %3445 = vmatprep.subr.mxu0 %v1949
        %3446 = vmatpush1.msra.mxu0 %v1948
        %3447 = vmatprep.subr.mxu0 %v1953
        %3448 = vmatpush1.msra.mxu0 %v1952
        %3449 = vmatprep.subr.mxu0 %v1957
        %3450 = vmatpush1.msra.mxu0 %v1956
        %3451 = vmatprep.subr.mxu0 %v1961
        %3452 = vmatpush1.msra.mxu0 %v1960
        %3453 = vmatprep.subr.mxu0 %v1965
        %3454 = vmatpush1.msra.mxu0 %v1964
        %3455 = vmatprep.subr.mxu0 %v1969
        %3456 = vmatpush1.msra.mxu0 %v1968
        %3457 = vmatprep.subr.mxu0 %v1973
        %3458 = vmatpush1.msra.mxu0 %v1972
        %3459 = vmatprep.subr.mxu0 %v1977
        %3460 = vmatpush1.msra.mxu0 %v1976
        %3461 = vmatprep.subr.mxu0 %v1981
        %3462 = vmatpush1.msra.mxu0 %v1980
        %3463 = vmatprep.subr.mxu0 %v1985
        %3464 = vmatpush1.msra.mxu0 %v1984
        %3465 = vmatprep.subr.mxu0 0.0
        %3466 = vmatpush1.msra.mxu0 0.0
        %3467 = vmatprep.subr.mxu0 0.0
        %3468 = vmatpush1.msra.mxu0 0.0
        %3469 = vmatprep.subr.mxu0 0.0
        %3470 = vmatpush1.msra.mxu0 0.0
        %3471 = vmatprep.subr.mxu0 0.0
        %3472 = vmatpush1.msra.mxu0 0.0
        %3473 = vmatprep.subr.mxu0 0.0
        %3474 = vmatpush1.msra.mxu0 0.0
        %3475 = vmatprep.subr.mxu0 0.0
        %3476 = vmatpush1.msra.mxu0 0.0
        %3477 = vmatprep.subr.mxu0 0.0
        %3478 = vmatpush1.msra.mxu0 0.0
        %3479 = vmatprep.subr.mxu0 0.0
        %3480 = vmatpush1.msra.mxu0 0.0
        %3481 = vmatprep.subr.mxu0 0.0
        %3482 = vmatpush1.msra.mxu0 0.0
        %3483 = vmatprep.subr.mxu0 0.0
        %3484 = vmatpush1.msra.mxu0 0.0
        %3485 = vmatprep.subr.mxu0 0.0
        %3486 = vmatpush1.msra.mxu0 0.0
        %3487 = vmatprep.subr.mxu0 0.0
        %3488 = vmatpush1.msra.mxu0 0.0
        %3489 = vmatprep.subr.mxu0 0.0
        %3490 = vmatpush1.msra.mxu0 0.0
        %3491 = vmatprep.subr.mxu0 0.0
        %3492 = vmatpush1.msra.mxu0 0.0
        %3493 = vmatprep.subr.mxu0 0.0
        %3494 = vmatpush1.msra.mxu0 0.0
        %3495 = vmatprep.subr.mxu0 0.0
        %3496 = vmatpush1.msra.mxu0 0.0
        %3497 = vmatprep.mubr.f32.mxu0 0.0
        %3498 = vmatmul.mubr.f32.gmra.mrb[0].mxu0 %v2064
        %v3499 = vpop.f32.mrb[0].mxu0
        %v3500 = vadd.f32 %v3429, %v3499
        %v3501 = vpop.f32.mrb[0].mxu0
        %v3502 = vadd.f32 %v3431, %v3501
        %3503 = vdwg.mxu0
        %v3508 = vcombine.low %v2790, %v2792
        %v3509 = vcombine.low %v3500, %v3502
        %v3511 = vunpack.c.l.s4 1966171168
        %v3512 = vunpack.c.0.s8 %v3511
        %v3513 = vlaneseq
        %v3514 = vshrl.u32 %v3513, 7
        %v3515 = vsub.s32 %v3512, %v3514
        %v3516 = vrot.slane %v3508, %v3515
        %v3518 = vunpack.c.l.s4 1966171168
        %v3519 = vunpack.c.0.s8 %v3518
        %v3520 = vlaneseq
        %v3521 = vshrl.u32 %v3520, 7
        %v3522 = vsub.s32 %v3519, %v3521
        %v3523 = vrot.slane %v3509, %v3522
        %v3524 = vcombine.low %v3516, %v3523
        %v3526 = vunpack.c.l.s4 1966171168
        %v3527 = vunpack.c.0.s8 %v3526
        %v3528 = vlaneseq
        %v3529 = vshrl.u32 %v3528, 7
        %v3530 = vsub.s32 %v3527, %v3529
        %v3531 = vrot.slane %v3524, %v3530
        %v3533 = vadd.f32 %v766, %v3531
        %v3534 = vlaneseq
        %vm3535 = vcmp.ge.s32.totalorder %v3534, 0
        %vm3536 = vcmp.lt.s32.totalorder %v3534, 512
        %vm3537 = vmand %vm3535, %vm3536
        %3538 = vst.msk [vmem:[#allocation2] sm:$0xf] %vm3537, %v3533
        %p3539 = scmp.eq.s32.totalorder %s51, 1
        // Predicated region
        $region141: #{network_forward.1} parent=95 // pred_check
          %p3540 = pneg %p3539
        $region142: #{network_forward.1} parent=95 // pred_check_branch
          %3542 = sbr.rel (%p3540) target = $region144
        $region143: #{network_forward.1} parent=95 // pred_region
          %v3543 = vld [vmem:[#allocation2] sm:$0xf]
          %v3544 = vld [vmem:[#allocation12] sm:$0xf]
          %v3545 = vadd.f32 %v3543, %v3544
          %v3546 = vld [vmem:[#allocation3] sm:$0x1]
          %v3547 = vld [vmem:[#allocation4] sm:$0x1]
          %v3549 = vlaneseq
          %v3550 = vshrl.u32 %v3549, 7
          %v3551 = vsub.s32 0, %v3550
          %v3552 = vrot.slane %v3545, %v3551
          %v3553 = vlaneseq
          %v3554 = vshrl.u32 %v3553, 7
          %v3555 = vsub.s32 1, %v3554
          %v3556 = vrot.slane %v3545, %v3555
          %v3557 = vlaneseq
          %v3558 = vshrl.u32 %v3557, 7
          %v3559 = vsub.s32 2, %v3558
          %v3560 = vrot.slane %v3545, %v3559
          %v3561 = vlaneseq
          %v3562 = vshrl.u32 %v3561, 7
          %v3563 = vsub.s32 3, %v3562
          %v3564 = vrot.slane %v3545, %v3563
          %vm3569 = vcmask 1040384
          %v3570 = vsel %vm3569, %v3552, 0.0
          %v3571 = vsel %vm3569, %v3556, 0.0
          %v3572 = vadd.f32 %v3570, %v3571
          %v3573 = vsel %vm3569, %v3560, 0.0
          %v3574 = vadd.f32 %v3572, %v3573
          %v3575 = vsel %vm3569, %v3564, 0.0
          %v3576 = vadd.f32 %v3574, %v3575
          %3577 = vadd.xlane.f32.xlu0 %v3576
          %v3578 = vpop.xlane.xlu0 %3577
          %v3579 = vrcp.pop 512.0
          %v3580 = vmul.f32 %v3578, %v3579
          %v3582 = vlaneseq
          %v3583 = vshrl.u32 %v3582, 7
          %v3584 = vsub.s32 0, %v3583
          %v3585 = vrot.slane %v3580, %v3584
          %v3587 = vsub.f32 %v3545, %v3585
          %v3588 = vmul.f32 %v3587, %v3587
          %v3590 = vlaneseq
          %v3591 = vshrl.u32 %v3590, 7
          %v3592 = vsub.s32 0, %v3591
          %v3593 = vrot.slane %v3588, %v3592
          %v3594 = vlaneseq
          %v3595 = vshrl.u32 %v3594, 7
          %v3596 = vsub.s32 1, %v3595
          %v3597 = vrot.slane %v3588, %v3596
          %v3598 = vlaneseq
          %v3599 = vshrl.u32 %v3598, 7
          %v3600 = vsub.s32 2, %v3599
          %v3601 = vrot.slane %v3588, %v3600
          %v3602 = vlaneseq
          %v3603 = vshrl.u32 %v3602, 7
          %v3604 = vsub.s32 3, %v3603
          %v3605 = vrot.slane %v3588, %v3604
          %v3610 = vsel %vm3569, %v3593, 0.0
          %v3611 = vsel %vm3569, %v3597, 0.0
          %v3612 = vadd.f32 %v3610, %v3611
          %v3613 = vsel %vm3569, %v3601, 0.0
          %v3614 = vadd.f32 %v3612, %v3613
          %v3615 = vsel %vm3569, %v3605, 0.0
          %v3616 = vadd.f32 %v3614, %v3615
          %3617 = vadd.xlane.f32.xlu0 %v3616
          %v3618 = vpop.xlane.xlu0 %3617
          %v3619 = vmul.f32 %v3618, %v3579
          %v3620 = vadd.f32 %v3619, 1e-05
          %v3621 = vrsqrt.pop %v3620
          %v3623 = vlaneseq
          %v3624 = vshrl.u32 %v3623, 7
          %v3625 = vsub.s32 0, %v3624
          %v3626 = vrot.slane %v3621, %v3625
          %v3628 = vmul.f32 %v3587, %v3626
          %3630 = vset.pattern.permute.xlu0 0
          %3631 = vperm.xlu0 %3630, %v3546
          %v3632 = vpop.permute.xlu0 %3631
          %v3634 = vlaneseq
          %v3635 = vshrl.u32 %v3634, 7
          %v3636 = vsub.s32 0, %v3635
          %v3637 = vrot.slane %v3632, %v3636
          %v3638 = vmul.f32 %v3628, %v3637
          %3640 = vset.pattern.permute.xlu0 0
          %3641 = vperm.xlu0 %3640, %v3547
          %v3642 = vpop.permute.xlu0 %3641
          %v3644 = vlaneseq
          %v3645 = vshrl.u32 %v3644, 7
          %v3646 = vsub.s32 0, %v3645
          %v3647 = vrot.slane %v3642, %v3646
          %v3648 = vadd.f32 %v3638, %v3647
          %v3649 = vmax.f32 %v3648, 0.0
          %v3650 = vld [vmem:[#allocation14] sm:$0xff]
          %v3651 = vld [vmem:[#allocation14 + $0x8] sm:$0xff]
          %v3652 = vld [vmem:[#allocation14 + $0x10] sm:$0xff]
          %v3653 = vld [vmem:[#allocation14 + $0x18] sm:$0xff]
          %v3654 = vld [vmem:[#allocation14 + $0x20] sm:$0xff]
          %v3655 = vld [vmem:[#allocation14 + $0x28] sm:$0xff]
          %v3656 = vld [vmem:[#allocation14 + $0x30] sm:$0xff]
          %v3657 = vld [vmem:[#allocation14 + $0x38] sm:$0xff]
          %v3658 = vld [vmem:[#allocation14 + $0x40] sm:$0xff]
          %v3659 = vld [vmem:[#allocation14 + $0x48] sm:$0xff]
          %v3660 = vld [vmem:[#allocation14 + $0x50] sm:$0xff]
          %v3661 = vld [vmem:[#allocation14 + $0x58] sm:$0xff]
          %v3662 = vld [vmem:[#allocation14 + $0x60] sm:$0xff]
          %v3663 = vld [vmem:[#allocation14 + $0x68] sm:$0xff]
          %v3664 = vld [vmem:[#allocation14 + $0x70] sm:$0xff]
          %v3665 = vld [vmem:[#allocation14 + $0x78] sm:$0xff]
          %v3666 = vld [vmem:[#allocation14 + $0x80] sm:$0xff]
          %v3667 = vld [vmem:[#allocation14 + $0x88] sm:$0xff]
          %v3668 = vld [vmem:[#allocation14 + $0x90] sm:$0xff]
          %v3669 = vld [vmem:[#allocation14 + $0x98] sm:$0xff]
          %v3670 = vld [vmem:[#allocation14 + $0xa0] sm:$0xff]
          %v3671 = vld [vmem:[#allocation14 + $0xa8] sm:$0xff]
          %v3672 = vld [vmem:[#allocation14 + $0xb0] sm:$0xff]
          %v3673 = vld [vmem:[#allocation14 + $0xb8] sm:$0xff]
          %v3674 = vld [vmem:[#allocation14 + $0xc0] sm:$0xff]
          %v3675 = vld [vmem:[#allocation14 + $0xc8] sm:$0xff]
          %v3676 = vld [vmem:[#allocation14 + $0xd0] sm:$0xff]
          %v3677 = vld [vmem:[#allocation14 + $0xd8] sm:$0xff]
          %v3678 = vld [vmem:[#allocation14 + $0xe0] sm:$0xff]
          %v3679 = vld [vmem:[#allocation14 + $0xe8] sm:$0xff]
          %v3680 = vld [vmem:[#allocation14 + $0xf0] sm:$0xff]
          %v3681 = vld [vmem:[#allocation14 + $0xf8] sm:$0xff]
          %v3682 = vld [vmem:[#allocation14 + $0x100] sm:$0xff]
          %v3683 = vld [vmem:[#allocation14 + $0x108] sm:$0xff]
          %v3684 = vld [vmem:[#allocation14 + $0x110] sm:$0xff]
          %v3685 = vld [vmem:[#allocation14 + $0x118] sm:$0xff]
          %v3686 = vld [vmem:[#allocation14 + $0x120] sm:$0xff]
          %v3687 = vld [vmem:[#allocation14 + $0x128] sm:$0xff]
          %v3688 = vld [vmem:[#allocation14 + $0x130] sm:$0xff]
          %v3689 = vld [vmem:[#allocation14 + $0x138] sm:$0xff]
          %v3690 = vld [vmem:[#allocation14 + $0x140] sm:$0xff]
          %v3691 = vld [vmem:[#allocation14 + $0x148] sm:$0xff]
          %v3692 = vld [vmem:[#allocation14 + $0x150] sm:$0xff]
          %v3693 = vld [vmem:[#allocation14 + $0x158] sm:$0xff]
          %v3694 = vld [vmem:[#allocation14 + $0x160] sm:$0xff]
          %v3695 = vld [vmem:[#allocation14 + $0x168] sm:$0xff]
          %v3696 = vld [vmem:[#allocation14 + $0x170] sm:$0xff]
          %v3697 = vld [vmem:[#allocation14 + $0x178] sm:$0xff]
          %v3698 = vld [vmem:[#allocation14 + $0x180] sm:$0xff]
          %v3699 = vld [vmem:[#allocation14 + $0x188] sm:$0xff]
          %v3700 = vld [vmem:[#allocation14 + $0x190] sm:$0xff]
          %v3701 = vld [vmem:[#allocation14 + $0x198] sm:$0xff]
          %v3702 = vld [vmem:[#allocation14 + $0x1a0] sm:$0xff]
          %v3703 = vld [vmem:[#allocation14 + $0x1a8] sm:$0xff]
          %v3704 = vld [vmem:[#allocation14 + $0x1b0] sm:$0xff]
          %v3705 = vld [vmem:[#allocation14 + $0x1b8] sm:$0xff]
          %v3706 = vld [vmem:[#allocation14 + $0x1c0] sm:$0xff]
          %v3707 = vld [vmem:[#allocation14 + $0x1c8] sm:$0xff]
          %v3708 = vld [vmem:[#allocation14 + $0x1d0] sm:$0xff]
          %v3709 = vld [vmem:[#allocation14 + $0x1d8] sm:$0xff]
          %v3710 = vld [vmem:[#allocation14 + $0x1e0] sm:$0xff]
          %v3711 = vld [vmem:[#allocation14 + $0x1e8] sm:$0xff]
          %v3712 = vld [vmem:[#allocation14 + $0x1f0] sm:$0xff]
          %v3713 = vld [vmem:[#allocation14 + $0x1f8] sm:$0xff]
          %v3714 = vld [vmem:[#allocation15] sm:$0x1]
          %v3716 = vlaneseq
          %v3717 = vshrl.u32 %v3716, 7
          %v3718 = vsub.s32 0, %v3717
          %v3719 = vrot.slane %v3649, %v3718
          %v3720 = vlaneseq
          %v3721 = vshrl.u32 %v3720, 7
          %v3722 = vsub.s32 1, %v3721
          %v3723 = vrot.slane %v3649, %v3722
          %v3724 = vlaneseq
          %v3725 = vshrl.u32 %v3724, 7
          %v3726 = vsub.s32 2, %v3725
          %v3727 = vrot.slane %v3649, %v3726
          %v3728 = vlaneseq
          %v3729 = vshrl.u32 %v3728, 7
          %v3730 = vsub.s32 3, %v3729
          %v3731 = vrot.slane %v3649, %v3730
          %3736 = vmatprep.subr.mxu0 0.0
          %3737 = vmatpush1.msra.mxu0 %v3650
          %3738 = vmatprep.subr.mxu0 0.0
          %3739 = vmatpush1.msra.mxu0 %v3651
          %3740 = vmatprep.subr.mxu0 0.0
          %3741 = vmatpush1.msra.mxu0 %v3652
          %3742 = vmatprep.subr.mxu0 0.0
          %3743 = vmatpush1.msra.mxu0 %v3653
          %3744 = vmatprep.subr.mxu0 0.0
          %3745 = vmatpush1.msra.mxu0 %v3654
          %3746 = vmatprep.subr.mxu0 0.0
          %3747 = vmatpush1.msra.mxu0 %v3655
          %3748 = vmatprep.subr.mxu0 0.0
          %3749 = vmatpush1.msra.mxu0 %v3656
          %3750 = vmatprep.subr.mxu0 0.0
          %3751 = vmatpush1.msra.mxu0 %v3657
          %3752 = vmatprep.subr.mxu0 0.0
          %3753 = vmatpush1.msra.mxu0 %v3658
          %3754 = vmatprep.subr.mxu0 0.0
          %3755 = vmatpush1.msra.mxu0 %v3659
          %3756 = vmatprep.subr.mxu0 0.0
          %3757 = vmatpush1.msra.mxu0 %v3660
          %3758 = vmatprep.subr.mxu0 0.0
          %3759 = vmatpush1.msra.mxu0 %v3661
          %3760 = vmatprep.subr.mxu0 0.0
          %3761 = vmatpush1.msra.mxu0 %v3662
          %3762 = vmatprep.subr.mxu0 0.0
          %3763 = vmatpush1.msra.mxu0 %v3663
          %3764 = vmatprep.subr.mxu0 0.0
          %3765 = vmatpush1.msra.mxu0 %v3664
          %3766 = vmatprep.subr.mxu0 0.0
          %3767 = vmatpush1.msra.mxu0 %v3665
          %3768 = vmatprep.subr.mxu0 0.0
          %3769 = vmatpush1.msra.mxu0 %v3666
          %3770 = vmatprep.subr.mxu0 0.0
          %3771 = vmatpush1.msra.mxu0 %v3667
          %3772 = vmatprep.subr.mxu0 0.0
          %3773 = vmatpush1.msra.mxu0 %v3668
          %3774 = vmatprep.subr.mxu0 0.0
          %3775 = vmatpush1.msra.mxu0 %v3669
          %3776 = vmatprep.subr.mxu0 0.0
          %3777 = vmatpush1.msra.mxu0 %v3670
          %3778 = vmatprep.subr.mxu0 0.0
          %3779 = vmatpush1.msra.mxu0 %v3671
          %3780 = vmatprep.subr.mxu0 0.0
          %3781 = vmatpush1.msra.mxu0 %v3672
          %3782 = vmatprep.subr.mxu0 0.0
          %3783 = vmatpush1.msra.mxu0 %v3673
          %3784 = vmatprep.subr.mxu0 0.0
          %3785 = vmatpush1.msra.mxu0 %v3674
          %3786 = vmatprep.subr.mxu0 0.0
          %3787 = vmatpush1.msra.mxu0 %v3675
          %3788 = vmatprep.subr.mxu0 0.0
          %3789 = vmatpush1.msra.mxu0 %v3676
          %3790 = vmatprep.subr.mxu0 0.0
          %3791 = vmatpush1.msra.mxu0 %v3677
          %3792 = vmatprep.subr.mxu0 0.0
          %3793 = vmatpush1.msra.mxu0 %v3678
          %3794 = vmatprep.subr.mxu0 0.0
          %3795 = vmatpush1.msra.mxu0 %v3679
          %3796 = vmatprep.subr.mxu0 0.0
          %3797 = vmatpush1.msra.mxu0 %v3680
          %3798 = vmatprep.subr.mxu0 0.0
          %3799 = vmatpush1.msra.mxu0 %v3681
          %3800 = vmatprep.mubr.f32.mxu0 %v3723
          %3801 = vmatmul.mubr.f32.gmra.mrb[0].mxu0 %v3719
          %v3802 = vpop.f32.mrb[0].mxu0
          %v3803 = vadd.f32 %v3714, %v3802
          %v3804 = vpop.f32.mrb[0].mxu0
          %3805 = vdwg.mxu0
          %3806 = vmatprep.subr.mxu0 0.0
          %3807 = vmatpush1.msra.mxu0 %v3682
          %3808 = vmatprep.subr.mxu0 0.0
          %3809 = vmatpush1.msra.mxu0 %v3683
          %3810 = vmatprep.subr.mxu0 0.0
          %3811 = vmatpush1.msra.mxu0 %v3684
          %3812 = vmatprep.subr.mxu0 0.0
          %3813 = vmatpush1.msra.mxu0 %v3685
          %3814 = vmatprep.subr.mxu0 0.0
          %3815 = vmatpush1.msra.mxu0 %v3686
          %3816 = vmatprep.subr.mxu0 0.0
          %3817 = vmatpush1.msra.mxu0 %v3687
          %3818 = vmatprep.subr.mxu0 0.0
          %3819 = vmatpush1.msra.mxu0 %v3688
          %3820 = vmatprep.subr.mxu0 0.0
          %3821 = vmatpush1.msra.mxu0 %v3689
          %3822 = vmatprep.subr.mxu0 0.0
          %3823 = vmatpush1.msra.mxu0 %v3690
          %3824 = vmatprep.subr.mxu0 0.0
          %3825 = vmatpush1.msra.mxu0 %v3691
          %3826 = vmatprep.subr.mxu0 0.0
          %3827 = vmatpush1.msra.mxu0 %v3692
          %3828 = vmatprep.subr.mxu0 0.0
          %3829 = vmatpush1.msra.mxu0 %v3693
          %3830 = vmatprep.subr.mxu0 0.0
          %3831 = vmatpush1.msra.mxu0 %v3694
          %3832 = vmatprep.subr.mxu0 0.0
          %3833 = vmatpush1.msra.mxu0 %v3695
          %3834 = vmatprep.subr.mxu0 0.0
          %3835 = vmatpush1.msra.mxu0 %v3696
          %3836 = vmatprep.subr.mxu0 0.0
          %3837 = vmatpush1.msra.mxu0 %v3697
          %3838 = vmatprep.subr.mxu0 0.0
          %3839 = vmatpush1.msra.mxu0 %v3698
          %3840 = vmatprep.subr.mxu0 0.0
          %3841 = vmatpush1.msra.mxu0 %v3699
          %3842 = vmatprep.subr.mxu0 0.0
          %3843 = vmatpush1.msra.mxu0 %v3700
          %3844 = vmatprep.subr.mxu0 0.0
          %3845 = vmatpush1.msra.mxu0 %v3701
          %3846 = vmatprep.subr.mxu0 0.0
          %3847 = vmatpush1.msra.mxu0 %v3702
          %3848 = vmatprep.subr.mxu0 0.0
          %3849 = vmatpush1.msra.mxu0 %v3703
          %3850 = vmatprep.subr.mxu0 0.0
          %3851 = vmatpush1.msra.mxu0 %v3704
          %3852 = vmatprep.subr.mxu0 0.0
          %3853 = vmatpush1.msra.mxu0 %v3705
          %3854 = vmatprep.subr.mxu0 0.0
          %3855 = vmatpush1.msra.mxu0 %v3706
          %3856 = vmatprep.subr.mxu0 0.0
          %3857 = vmatpush1.msra.mxu0 %v3707
          %3858 = vmatprep.subr.mxu0 0.0
          %3859 = vmatpush1.msra.mxu0 %v3708
          %3860 = vmatprep.subr.mxu0 0.0
          %3861 = vmatpush1.msra.mxu0 %v3709
          %3862 = vmatprep.subr.mxu0 0.0
          %3863 = vmatpush1.msra.mxu0 %v3710
          %3864 = vmatprep.subr.mxu0 0.0
          %3865 = vmatpush1.msra.mxu0 %v3711
          %3866 = vmatprep.subr.mxu0 0.0
          %3867 = vmatpush1.msra.mxu0 %v3712
          %3868 = vmatprep.subr.mxu0 0.0
          %3869 = vmatpush1.msra.mxu0 %v3713
          %3870 = vmatprep.mubr.f32.mxu0 %v3731
          %3871 = vmatmul.mubr.f32.gmra.mrb[0].mxu0 %v3727
          %v3872 = vpop.f32.mrb[0].mxu0
          %v3873 = vadd.f32 %v3803, %v3872
          %v3874 = vpop.f32.mrb[0].mxu0
          %3875 = vdwg.mxu0
          %v3876 = vld [vmem:[#allocation5] sm:$0x1]
          %v3877 = vld [vmem:[#allocation6] sm:$0x1]
          %v3878 = vsel %vm3569, %v3873, 0.0
          %3879 = vadd.xlane.f32.xlu0 %v3878
          %v3880 = vpop.xlane.xlu0 %3879
          %v3881 = vrcp.pop 128.0
          %v3882 = vmul.f32 %v3880, %v3881
          %v3883 = vsub.f32 %v3873, %v3882
          %v3884 = vmul.f32 %v3883, %v3883
          %v3885 = vsel %vm3569, %v3884, 0.0
          %3886 = vadd.xlane.f32.xlu0 %v3885
          %v3887 = vpop.xlane.xlu0 %3886
          %v3888 = vmul.f32 %v3887, %v3881
          %v3889 = vadd.f32 %v3888, 1e-05
          %v3890 = vrsqrt.pop %v3889
          %v3891 = vmul.f32 %v3883, %v3890
          %3893 = vset.pattern.permute.xlu0 0
          %3894 = vperm.xlu0 %3893, %v3876
          %v3895 = vpop.permute.xlu0 %3894
          %v3897 = vlaneseq
          %v3898 = vshrl.u32 %v3897, 7
          %v3899 = vsub.s32 0, %v3898
          %v3900 = vrot.slane %v3895, %v3899
          %v3901 = vmul.f32 %v3891, %v3900
          %3903 = vset.pattern.permute.xlu0 0
          %3904 = vperm.xlu0 %3903, %v3877
          %v3905 = vpop.permute.xlu0 %3904
          %v3907 = vlaneseq
          %v3908 = vshrl.u32 %v3907, 7
          %v3909 = vsub.s32 0, %v3908
          %v3910 = vrot.slane %v3905, %v3909
          %v3911 = vadd.f32 %v3901, %v3910
          %v3912 = vmax.f32 %v3911, 0.0
          %v3913 = vld [vmem:[%s9] sm:$0xff]
          %v3914 = vld [vmem:[%s9 + $0x8] sm:$0xff]
          %v3915 = vld [vmem:[%s9 + $0x10] sm:$0xff]
          %v3916 = vld [vmem:[%s9 + $0x18] sm:$0xff]
          %v3917 = vld [vmem:[%s9 + $0x20] sm:$0xff]
          %v3918 = vld [vmem:[%s9 + $0x28] sm:$0xff]
          %v3919 = vld [vmem:[%s9 + $0x30] sm:$0xff]
          %v3920 = vld [vmem:[%s9 + $0x38] sm:$0xff]
          %v3921 = vld [vmem:[%s9 + $0x40] sm:$0xff]
          %v3922 = vld [vmem:[%s9 + $0x48] sm:$0xff]
          %v3923 = vld [vmem:[%s9 + $0x50] sm:$0xff]
          %v3924 = vld [vmem:[%s9 + $0x58] sm:$0xff]
          %v3925 = vld [vmem:[%s9 + $0x60] sm:$0xff]
          %v3926 = vld [vmem:[%s9 + $0x68] sm:$0xff]
          %v3927 = vld [vmem:[%s9 + $0x70] sm:$0xff]
          %v3928 = vld [vmem:[%s9 + $0x78] sm:$0xff]
          %v3929 = vld [vmem:[#allocation17] sm:$0x1]
          %3930 = vmatprep.subr.mxu0 0.0
          %3931 = vmatpush1.msra.mxu0 %v3913
          %3932 = vmatprep.subr.mxu0 0.0
          %3933 = vmatpush1.msra.mxu0 %v3914
          %3934 = vmatprep.subr.mxu0 0.0
          %3935 = vmatpush1.msra.mxu0 %v3915
          %3936 = vmatprep.subr.mxu0 0.0
          %3937 = vmatpush1.msra.mxu0 %v3916
          %3938 = vmatprep.subr.mxu0 0.0
          %3939 = vmatpush1.msra.mxu0 %v3917
          %3940 = vmatprep.subr.mxu0 0.0
          %3941 = vmatpush1.msra.mxu0 %v3918
          %3942 = vmatprep.subr.mxu0 0.0
          %3943 = vmatpush1.msra.mxu0 %v3919
          %3944 = vmatprep.subr.mxu0 0.0
          %3945 = vmatpush1.msra.mxu0 %v3920
          %3946 = vmatprep.subr.mxu0 0.0
          %3947 = vmatpush1.msra.mxu0 %v3921
          %3948 = vmatprep.subr.mxu0 0.0
          %3949 = vmatpush1.msra.mxu0 %v3922
          %3950 = vmatprep.subr.mxu0 0.0
          %3951 = vmatpush1.msra.mxu0 %v3923
          %3952 = vmatprep.subr.mxu0 0.0
          %3953 = vmatpush1.msra.mxu0 %v3924
          %3954 = vmatprep.subr.mxu0 0.0
          %3955 = vmatpush1.msra.mxu0 %v3925
          %3956 = vmatprep.subr.mxu0 0.0
          %3957 = vmatpush1.msra.mxu0 %v3926
          %3958 = vmatprep.subr.mxu0 0.0
          %3959 = vmatpush1.msra.mxu0 %v3927
          %3960 = vmatprep.subr.mxu0 0.0
          %3961 = vmatpush1.msra.mxu0 %v3928
          %3962 = vmatprep.subr.mxu0 0.0
          %3963 = vmatpush1.msra.mxu0 0.0
          %3964 = vmatprep.subr.mxu0 0.0
          %3965 = vmatpush1.msra.mxu0 0.0
          %3966 = vmatprep.subr.mxu0 0.0
          %3967 = vmatpush1.msra.mxu0 0.0
          %3968 = vmatprep.subr.mxu0 0.0
          %3969 = vmatpush1.msra.mxu0 0.0
          %3970 = vmatprep.subr.mxu0 0.0
          %3971 = vmatpush1.msra.mxu0 0.0
          %3972 = vmatprep.subr.mxu0 0.0
          %3973 = vmatpush1.msra.mxu0 0.0
          %3974 = vmatprep.subr.mxu0 0.0
          %3975 = vmatpush1.msra.mxu0 0.0
          %3976 = vmatprep.subr.mxu0 0.0
          %3977 = vmatpush1.msra.mxu0 0.0
          %3978 = vmatprep.subr.mxu0 0.0
          %3979 = vmatpush1.msra.mxu0 0.0
          %3980 = vmatprep.subr.mxu0 0.0
          %3981 = vmatpush1.msra.mxu0 0.0
          %3982 = vmatprep.subr.mxu0 0.0
          %3983 = vmatpush1.msra.mxu0 0.0
          %3984 = vmatprep.subr.mxu0 0.0
          %3985 = vmatpush1.msra.mxu0 0.0
          %3986 = vmatprep.subr.mxu0 0.0
          %3987 = vmatpush1.msra.mxu0 0.0
          %3988 = vmatprep.subr.mxu0 0.0
          %3989 = vmatpush1.msra.mxu0 0.0
          %3990 = vmatprep.subr.mxu0 0.0
          %3991 = vmatpush1.msra.mxu0 0.0
          %3992 = vmatprep.subr.mxu0 0.0
          %3993 = vmatpush1.msra.mxu0 0.0
          %3994 = vmatprep.mubr.f32.mxu0 0.0
          %3995 = vmatmul.mubr.f32.gmra.mrb[0].mxu0 %v3912
          %v3996 = vpop.f32.mrb[0].mxu0
          %v3997 = vadd.f32 %v3929, %v3996
          %v3998 = vpop.f32.mrb[0].mxu0
          %3999 = vdwg.mxu0
          %v4000 = vld [vmem:[#allocation7] sm:$0x1]
          %v4001 = vld [vmem:[#allocation8] sm:$0x1]
          %vm4002 = vcmask 516096
          %v4003 = vsel %vm4002, %v3997, 0.0
          %4004 = vadd.xlane.f32.xlu0 %v4003
          %v4005 = vpop.xlane.xlu0 %4004
          %v4006 = vrcp.pop 64.0
          %v4007 = vmul.f32 %v4005, %v4006
          %v4008 = vsub.f32 %v3997, %v4007
          %v4009 = vmul.f32 %v4008, %v4008
          %v4010 = vsel %vm4002, %v4009, 0.0
          %4011 = vadd.xlane.f32.xlu0 %v4010
          %v4012 = vpop.xlane.xlu0 %4011
          %v4013 = vmul.f32 %v4012, %v4006
          %v4014 = vadd.f32 %v4013, 1e-05
          %v4015 = vrsqrt.pop %v4014
          %v4016 = vmul.f32 %v4008, %v4015
          %4018 = vset.pattern.permute.xlu0 0
          %4019 = vperm.xlu0 %4018, %v4000
          %v4020 = vpop.permute.xlu0 %4019
          %v4022 = vlaneseq
          %v4023 = vshrl.u32 %v4022, 7
          %v4024 = vsub.s32 0, %v4023
          %v4025 = vrot.slane %v4020, %v4024
          %v4026 = vmul.f32 %v4016, %v4025
          %4028 = vset.pattern.permute.xlu0 0
          %4029 = vperm.xlu0 %4028, %v4001
          %v4030 = vpop.permute.xlu0 %4029
          %v4032 = vlaneseq
          %v4033 = vshrl.u32 %v4032, 7
          %v4034 = vsub.s32 0, %v4033
          %v4035 = vrot.slane %v4030, %v4034
          %v4036 = vadd.f32 %v4026, %v4035
          %v4037 = vmax.f32 %v4036, 0.0
          %v4038 = vld [vmem:[%s13] sm:$0xff]
          %v4039 = vld [vmem:[%s13 + $0x8] sm:$0xff]
          %v4040 = vld [vmem:[%s13 + $0x10] sm:$0xff]
          %v4041 = vld [vmem:[%s13 + $0x18] sm:$0xff]
          %v4042 = vld [vmem:[%s13 + $0x20] sm:$0xff]
          %v4043 = vld [vmem:[%s13 + $0x28] sm:$0xff]
          %v4044 = vld [vmem:[%s13 + $0x30] sm:$0xff]
          %v4045 = vld [vmem:[%s13 + $0x38] sm:$0xff]
          %v4046 = vld [vmem:[#allocation18] sm:$0x1]
          %vm4047 = vcmask 523264
          %v4049 = vsel %vm4047, %v4037, 0
          %4051 = vmatprep.subr.mxu0 0.0
          %4052 = vmatpush1.msra.mxu0 %v4038
          %4053 = vmatprep.subr.mxu0 0.0
          %4054 = vmatpush1.msra.mxu0 %v4039
          %4055 = vmatprep.subr.mxu0 0.0
          %4056 = vmatpush1.msra.mxu0 %v4040
          %4057 = vmatprep.subr.mxu0 0.0
          %4058 = vmatpush1.msra.mxu0 %v4041
          %4059 = vmatprep.subr.mxu0 0.0
          %4060 = vmatpush1.msra.mxu0 %v4042
          %4061 = vmatprep.subr.mxu0 0.0
          %4062 = vmatpush1.msra.mxu0 %v4043
          %4063 = vmatprep.subr.mxu0 0.0
          %4064 = vmatpush1.msra.mxu0 %v4044
          %4065 = vmatprep.subr.mxu0 0.0
          %4066 = vmatpush1.msra.mxu0 %v4045
          %4067 = vmatprep.subr.mxu0 0.0
          %4068 = vmatpush1.msra.mxu0 0.0
          %4069 = vmatprep.subr.mxu0 0.0
          %4070 = vmatpush1.msra.mxu0 0.0
          %4071 = vmatprep.subr.mxu0 0.0
          %4072 = vmatpush1.msra.mxu0 0.0
          %4073 = vmatprep.subr.mxu0 0.0
          %4074 = vmatpush1.msra.mxu0 0.0
          %4075 = vmatprep.subr.mxu0 0.0
          %4076 = vmatpush1.msra.mxu0 0.0
          %4077 = vmatprep.subr.mxu0 0.0
          %4078 = vmatpush1.msra.mxu0 0.0
          %4079 = vmatprep.subr.mxu0 0.0
          %4080 = vmatpush1.msra.mxu0 0.0
          %4081 = vmatprep.subr.mxu0 0.0
          %4082 = vmatpush1.msra.mxu0 0.0
          %4083 = vmatprep.subr.mxu0 0.0
          %4084 = vmatpush1.msra.mxu0 0.0
          %4085 = vmatprep.subr.mxu0 0.0
          %4086 = vmatpush1.msra.mxu0 0.0
          %4087 = vmatprep.subr.mxu0 0.0
          %4088 = vmatpush1.msra.mxu0 0.0
          %4089 = vmatprep.subr.mxu0 0.0
          %4090 = vmatpush1.msra.mxu0 0.0
          %4091 = vmatprep.subr.mxu0 0.0
          %4092 = vmatpush1.msra.mxu0 0.0
          %4093 = vmatprep.subr.mxu0 0.0
          %4094 = vmatpush1.msra.mxu0 0.0
          %4095 = vmatprep.subr.mxu0 0.0
          %4096 = vmatpush1.msra.mxu0 0.0
          %4097 = vmatprep.subr.mxu0 0.0
          %4098 = vmatpush1.msra.mxu0 0.0
          %4099 = vmatprep.subr.mxu0 0.0
          %4100 = vmatpush1.msra.mxu0 0.0
          %4101 = vmatprep.subr.mxu0 0.0
          %4102 = vmatpush1.msra.mxu0 0.0
          %4103 = vmatprep.subr.mxu0 0.0
          %4104 = vmatpush1.msra.mxu0 0.0
          %4105 = vmatprep.subr.mxu0 0.0
          %4106 = vmatpush1.msra.mxu0 0.0
          %4107 = vmatprep.subr.mxu0 0.0
          %4108 = vmatpush1.msra.mxu0 0.0
          %4109 = vmatprep.subr.mxu0 0.0
          %4110 = vmatpush1.msra.mxu0 0.0
          %4111 = vmatprep.subr.mxu0 0.0
          %4112 = vmatpush1.msra.mxu0 0.0
          %4113 = vmatprep.subr.mxu0 0.0
          %4114 = vmatpush1.msra.mxu0 0.0
          %4115 = vmatprep.mubr.f32.mxu0 0.0
          %4116 = vmatmul.mubr.f32.gmra.mrb[0].mxu0 %v4049
          %v4117 = vpop.f32.mrb[0].mxu0
          %v4118 = vadd.f32 %v4046, %v4117
          %v4119 = vpop.f32.mrb[0].mxu0
          %4120 = vdwg.mxu0
          %v4121 = vxor.u32 %v4118, 2147483648
          %v4122 = vmul.f32 %v4121, 1.442695
          %v4123 = vpow.pop %v4122
          %v4124 = vadd.f32 %v4123, 1.0
          %v4125 = vrcp.pop %v4124
          %v4126 = vmul.f32 1.0, %v4125
          %v4127 = vtanh.pop %v4118
          %4129 = vrot.lane.b32.xlu0 %v4127, 112
          %v4130 = vpop.permute.xlu0 %4129
          %v4132 = vmul.f32 %v4126, %v4130
          %v4133 = vtanh.pop %v4132
          %4135 = vrot.lane.b32.xlu0 %v4133, 24
          %v4136 = vpop.permute.xlu0 %4135
          %v4138 = vmul.f32 %v4126, %v4136
          %v4139 = vld [vmem:[#allocation20] sm:$0xff]
          %v4140 = vld [vmem:[#allocation21] sm:$0x1]
          %4142 = vrot.lane.b32.xlu0 %v4138, 104
          %v4143 = vpop.permute.xlu0 %4142
          %vm4144 = vcmask 64512
          %v4145 = vsel %vm4144, %v4143, 0
          %4147 = vmatprep.subr.mxu0 0.0
          %4148 = vmatpush1.msra.mxu0 %v4139
          %4149 = vmatprep.subr.mxu0 0.0
          %4150 = vmatpush1.msra.mxu0 0.0
          %4151 = vmatprep.subr.mxu0 0.0
          %4152 = vmatpush1.msra.mxu0 0.0
          %4153 = vmatprep.subr.mxu0 0.0
          %4154 = vmatpush1.msra.mxu0 0.0
          %4155 = vmatprep.subr.mxu0 0.0
          %4156 = vmatpush1.msra.mxu0 0.0
          %4157 = vmatprep.subr.mxu0 0.0
          %4158 = vmatpush1.msra.mxu0 0.0
          %4159 = vmatprep.subr.mxu0 0.0
          %4160 = vmatpush1.msra.mxu0 0.0
          %4161 = vmatprep.subr.mxu0 0.0
          %4162 = vmatpush1.msra.mxu0 0.0
          %4163 = vmatprep.subr.mxu0 0.0
          %4164 = vmatpush1.msra.mxu0 0.0
          %4165 = vmatprep.subr.mxu0 0.0
          %4166 = vmatpush1.msra.mxu0 0.0
          %4167 = vmatprep.subr.mxu0 0.0
          %4168 = vmatpush1.msra.mxu0 0.0
          %4169 = vmatprep.subr.mxu0 0.0
          %4170 = vmatpush1.msra.mxu0 0.0
          %4171 = vmatprep.subr.mxu0 0.0
          %4172 = vmatpush1.msra.mxu0 0.0
          %4173 = vmatprep.subr.mxu0 0.0
          %4174 = vmatpush1.msra.mxu0 0.0
          %4175 = vmatprep.subr.mxu0 0.0
          %4176 = vmatpush1.msra.mxu0 0.0
          %4177 = vmatprep.subr.mxu0 0.0
          %4178 = vmatpush1.msra.mxu0 0.0
          %4179 = vmatprep.subr.mxu0 0.0
          %4180 = vmatpush1.msra.mxu0 0.0
          %4181 = vmatprep.subr.mxu0 0.0
          %4182 = vmatpush1.msra.mxu0 0.0
          %4183 = vmatprep.subr.mxu0 0.0
          %4184 = vmatpush1.msra.mxu0 0.0
          %4185 = vmatprep.subr.mxu0 0.0
          %4186 = vmatpush1.msra.mxu0 0.0
          %4187 = vmatprep.subr.mxu0 0.0
          %4188 = vmatpush1.msra.mxu0 0.0
          %4189 = vmatprep.subr.mxu0 0.0
          %4190 = vmatpush1.msra.mxu0 0.0
          %4191 = vmatprep.subr.mxu0 0.0
          %4192 = vmatpush1.msra.mxu0 0.0
          %4193 = vmatprep.subr.mxu0 0.0
          %4194 = vmatpush1.msra.mxu0 0.0
          %4195 = vmatprep.subr.mxu0 0.0
          %4196 = vmatpush1.msra.mxu0 0.0
          %4197 = vmatprep.subr.mxu0 0.0
          %4198 = vmatpush1.msra.mxu0 0.0
          %4199 = vmatprep.subr.mxu0 0.0
          %4200 = vmatpush1.msra.mxu0 0.0
          %4201 = vmatprep.subr.mxu0 0.0
          %4202 = vmatpush1.msra.mxu0 0.0
          %4203 = vmatprep.subr.mxu0 0.0
          %4204 = vmatpush1.msra.mxu0 0.0
          %4205 = vmatprep.subr.mxu0 0.0
          %4206 = vmatpush1.msra.mxu0 0.0
          %4207 = vmatprep.subr.mxu0 0.0
          %4208 = vmatpush1.msra.mxu0 0.0
          %4209 = vmatprep.subr.mxu0 0.0
          %4210 = vmatpush1.msra.mxu0 0.0
          %4211 = vmatprep.mubr.f32.mxu0 0.0
          %4212 = vmatmul.mubr.f32.gmra.mrb[0].mxu0 %v4145
          %v4213 = vpop.f32.mrb[0].mxu0
          %v4214 = vadd.f32 %v4140, %v4213
          %v4215 = vpop.f32.mrb[0].mxu0
          %4216 = vdwg.mxu0
          %v4217 = vxor.u32 %v4214, 2147483648
          %v4218 = vmul.f32 %v4217, 1.442695
          %v4219 = vpow.pop %v4218
          %v4220 = vadd.f32 %v4219, 1.0
          %v4221 = vrcp.pop %v4220
          %v4222 = vmul.f32 1.0, %v4221
          %v4223 = vtanh.pop %v4214
          %4225 = vrot.lane.b32.xlu0 %v4223, 112
          %v4226 = vpop.permute.xlu0 %4225
          %v4228 = vmul.f32 %v4222, %v4226
          %v4229 = vtanh.pop %v4228
          %4231 = vrot.lane.b32.xlu0 %v4229, 24
          %v4232 = vpop.permute.xlu0 %4231
          %v4234 = vmul.f32 %v4222, %v4232
          %v4235 = vld [vmem:[#allocation23] sm:$0xff]
          %v4236 = vld [vmem:[#allocation24] sm:$0x1]
          %4238 = vrot.lane.b32.xlu0 %v4234, 104
          %v4239 = vpop.permute.xlu0 %4238
          %v4240 = vsel %vm4144, %v4239, 0
          %4242 = vmatprep.subr.mxu0 0.0
          %4243 = vmatpush1.msra.mxu0 %v4235
          %4244 = vmatprep.subr.mxu0 0.0
          %4245 = vmatpush1.msra.mxu0 0.0
          %4246 = vmatprep.subr.mxu0 0.0
          %4247 = vmatpush1.msra.mxu0 0.0
          %4248 = vmatprep.subr.mxu0 0.0
          %4249 = vmatpush1.msra.mxu0 0.0
          %4250 = vmatprep.subr.mxu0 0.0
          %4251 = vmatpush1.msra.mxu0 0.0
          %4252 = vmatprep.subr.mxu0 0.0
          %4253 = vmatpush1.msra.mxu0 0.0
          %4254 = vmatprep.subr.mxu0 0.0
          %4255 = vmatpush1.msra.mxu0 0.0
          %4256 = vmatprep.subr.mxu0 0.0
          %4257 = vmatpush1.msra.mxu0 0.0
          %4258 = vmatprep.subr.mxu0 0.0
          %4259 = vmatpush1.msra.mxu0 0.0
          %4260 = vmatprep.subr.mxu0 0.0
          %4261 = vmatpush1.msra.mxu0 0.0
          %4262 = vmatprep.subr.mxu0 0.0
          %4263 = vmatpush1.msra.mxu0 0.0
          %4264 = vmatprep.subr.mxu0 0.0
          %4265 = vmatpush1.msra.mxu0 0.0
          %4266 = vmatprep.subr.mxu0 0.0
          %4267 = vmatpush1.msra.mxu0 0.0
          %4268 = vmatprep.subr.mxu0 0.0
          %4269 = vmatpush1.msra.mxu0 0.0
          %4270 = vmatprep.subr.mxu0 0.0
          %4271 = vmatpush1.msra.mxu0 0.0
          %4272 = vmatprep.subr.mxu0 0.0
          %4273 = vmatpush1.msra.mxu0 0.0
          %4274 = vmatprep.subr.mxu0 0.0
          %4275 = vmatpush1.msra.mxu0 0.0
          %4276 = vmatprep.subr.mxu0 0.0
          %4277 = vmatpush1.msra.mxu0 0.0
          %4278 = vmatprep.subr.mxu0 0.0
          %4279 = vmatpush1.msra.mxu0 0.0
          %4280 = vmatprep.subr.mxu0 0.0
          %4281 = vmatpush1.msra.mxu0 0.0
          %4282 = vmatprep.subr.mxu0 0.0
          %4283 = vmatpush1.msra.mxu0 0.0
          %4284 = vmatprep.subr.mxu0 0.0
          %4285 = vmatpush1.msra.mxu0 0.0
          %4286 = vmatprep.subr.mxu0 0.0
          %4287 = vmatpush1.msra.mxu0 0.0
          %4288 = vmatprep.subr.mxu0 0.0
          %4289 = vmatpush1.msra.mxu0 0.0
          %4290 = vmatprep.subr.mxu0 0.0
          %4291 = vmatpush1.msra.mxu0 0.0
          %4292 = vmatprep.subr.mxu0 0.0
          %4293 = vmatpush1.msra.mxu0 0.0
          %4294 = vmatprep.subr.mxu0 0.0
          %4295 = vmatpush1.msra.mxu0 0.0
          %4296 = vmatprep.subr.mxu0 0.0
          %4297 = vmatpush1.msra.mxu0 0.0
          %4298 = vmatprep.subr.mxu0 0.0
          %4299 = vmatpush1.msra.mxu0 0.0
          %4300 = vmatprep.subr.mxu0 0.0
          %4301 = vmatpush1.msra.mxu0 0.0
          %4302 = vmatprep.subr.mxu0 0.0
          %4303 = vmatpush1.msra.mxu0 0.0
          %4304 = vmatprep.subr.mxu0 0.0
          %4305 = vmatpush1.msra.mxu0 0.0
          %4306 = vmatprep.mubr.f32.mxu0 0.0
          %4307 = vmatmul.mubr.f32.gmra.mrb[0].mxu0 %v4240
          %v4308 = vpop.f32.mrb[0].mxu0
          %v4309 = vadd.f32 %v4236, %v4308
          %v4310 = vpop.f32.mrb[0].mxu0
          %4311 = vdwg.mxu0
          %v4312 = vmax.f32 %v4309, 0.0
          %vm4313 = vcmask 40960
          %4314 = vst.msk [vmem:[#allocation26] sm:$0x1] %vm4313, %v4312
        $region144: #{network_forward.1} parent=95 // pred_fallthru
          _
        // Predicated region
        $region145: #{network_forward.1} parent=95 // pred_check
          %p4315 = pneg %p473
        $region146: #{network_forward.1} parent=95 // pred_check_branch
          %4317 = sbr.rel (%p4315) target = $region148
        $region147: #{network_forward.1} parent=95 // pred_region
          %s4319 = ssub.s32 16, 16
          %4320 = vsyncadd [#allocation11], %s4319
          %s4322 = sshll.u32 [#allocation26], 4
          %s4323 = int_to_ptr.vmem [resolvable:$true] %s4322
          %4325 = dma.vmem_to_hbm [thread:$0]  %s4323, 16, %s19, [#allocation11]
        $region148: #{network_forward.1} parent=95 // pred_fallthru
          _
        // Predicated region
        $region149: #{network_forward.1} parent=95 // pred_check
          %p4326 = pneg %p473
        $region150: #{network_forward.1} parent=95 // pred_check_branch
          %4328 = sbr.rel (%p4326) target = $region152
        $region151: #{network_forward.1} parent=95 // pred_region
          %4329 = dma.done [#allocation11], 16
        $region152: #{network_forward.1} parent=95 // pred_fallthru
          _
      $region96: #{network_forward.1} parent=5 // pred_fallthru
        _
      %p4330 = scmp.le.s32.totalorder 2, %s46
      // Predicated region
      $region153: #{network_forward.1} parent=5 // pred_check
        %p4331 = pneg %p4330
      $region154: #{network_forward.1} parent=5 // pred_check_branch
        %4333 = sbr.rel (%p4331) target = $region156
      $region155: #{network_forward.1} parent=5 // pred_region
        %s4334 = ssub.s32 %s46, 2
      $region156: #{network_forward.1} parent=5 // pred_fallthru
        _
    $region6: #{network_forward.1} parent=1 // loop_footer
      %s50 = sadd.s32 1, %s46
    $region7: #{network_forward.1} parent=1 // loop_footer_branch
      %45 = sbr.rel target = $region3
    $region8: #{network_forward.1} parent=1 // loop_exit
      _
    %4335 = vsyncpa [#allocation10], 1
    %s4336 = scalar_lea.sflag [#allocation10], 1
    %4337 = vsyncpa %s4336, 1
    %4338 = vsyncpa [#allocation13], 1
    %4339 = vsyncpa [#allocation16], 1
    %4340 = vsyncpa [#allocation19], 1
    %4341 = vsyncpa [#allocation22], 1
    %4342 = vsyncpa [#allocation25], 1
    %4343 = vsyncpa [#allocation11], 1
    %s4344 = scalar_lea.sflag [#allocation11], 1
    %4345 = vsyncpa %s4344, 1

</llo_original>
